<compile_context>
chip_gen: v7x
topology: tpu7x:2x2x1
jax: 0.10.0
libtpu: 0.0.40
codegen_flags: <defaults>
</compile_context>

<pallas_src>
import math
import functools

import jax
import jax.numpy as jnp
from jax.experimental import pallas as pl
from jax.experimental.pallas import tpu as pltpu


def _round_up(x, m):
    return -(-x // m) * m


def _pick_chunk(T, max_chunk=32):
    """Timesteps per grid step: one chunk if T is small, else a divisor<=32."""
    if T <= max_chunk:
        return T
    for tc in range(max_chunk, 7, -1):
        if T % tc == 0:
            return tc
    return max_chunk          # falls back to padding + masking


def _fast_sigmoid(x):
    # sigmoid(x) == 0.5 * tanh(0.5 * x) + 0.5  : one EUP op instead of two.
    return 0.5 * jnp.tanh(0.5 * x) + 0.5


# ---------------------------------------------------------------------------
# Fused LSTM kernel: per grid step, process a chunk of Tc timesteps.
#   gates_t = x_t @ W_ih^T + h_{t-1} @ W_hh^T + (b_ih + b_hh)   (order i,f,g,o)
#   c_t = f*c_{t-1} + i*g ;  h_t = o * tanh(c_t)
# State (h, c) lives in the constant-index output blocks -> resident in VMEM
# across all grid steps; weights are resident bf16 blocks.
# ---------------------------------------------------------------------------
def _lstm_chunk_kernel(Tc, T, H, needs_mask,
                       x_ref,      # (Tc, B, D)  bf16, time-major chunk
                       wih_ref,    # (D, 4H)     bf16, resident
                       whh_ref,    # (H, 4H)     bf16, resident
                       b_ref,      # (1, 4H)     f32,  resident (b_ih + b_hh)
                       out_ref,    # (Tc, B, H)  f32,  time-major chunk
                       hn_ref,     # (B, H)      f32,  resident state carrier
                       cn_ref):    # (B, H)      f32,  resident state carrier
    cid = pl.program_id(0)

    @pl.when(cid == 0)
    def _():
        hn_ref[...] = jnp.zeros_like(hn_ref)
        cn_ref[...] = jnp.zeros_like(cn_ref)

    wih = wih_ref[...]
    whh = whh_ref[...]
    bias = b_ref[...]

    h = hn_ref[...]
    c = cn_ref[...]

    # Fully unrolled inner loop over the chunk: all indices are static, the
    # x-projection dot has no dependence on h so the scheduler overlaps it
    # with the previous step's EUP/VPU work.
    for t in range(Tc):
        x_t = x_ref[t]                                   # (B, D) bf16
        gates = (jnp.dot(x_t, wih, preferred_element_type=jnp.float32)
                 + jnp.dot(h.astype(jnp.bfloat16), whh,
                           preferred_element_type=jnp.float32)
                 + bias)                                  # (B, 4H) f32

        i_g = _fast_sigmoid(gates[:, 0 * H:1 * H])
        f_g = _fast_sigmoid(gates[:, 1 * H:2 * H])
        g_g = jnp.tanh(gates[:, 2 * H:3 * H])
        o_g = _fast_sigmoid(gates[:, 3 * H:4 * H])

        c_new = f_g * c + i_g * g_g
        h_new = o_g * jnp.tanh(c_new)

        if needs_mask:                                    # only traced if T % Tc != 0
            valid = (cid * Tc + t) < T
            c_new = jnp.where(valid, c_new, c)
            h_new = jnp.where(valid, h_new, h)

        h, c = h_new, c_new
        out_ref[t] = h                                    # (B, H) slab, static idx

    hn_ref[...] = h
    cn_ref[...] = c


def _lstm_layer_pallas(x, w_ih, w_hh, b_ih, b_hh):
    """x: (B, T, D) f32 -> outputs (B, T, H) f32, h_n (B, H), c_n (B, H)."""
    B, T, D = x.shape
    H = w_hh.shape[1]
    N = 4 * H

    Tc = _pick_chunk(T)
    Tp = _round_up(T, Tc)
    needs_mask = (Tp != T)

    # One fused relayout+cast in the wrapper (time-major, bf16 halves x DMA).
    x_tm = jnp.transpose(x, (1, 0, 2)).astype(jnp.bfloat16)     # (T, B, D)
    if needs_mask:
        x_tm = jnp.pad(x_tm, ((0, Tp - T), (0, 0), (0, 0)))

    wih_t = w_ih.T.astype(jnp.bfloat16)                          # (D, 4H)
    whh_t = w_hh.T.astype(jnp.bfloat16)                          # (H, 4H)
    bias = (b_ih + b_hh).reshape(1, N).astype(jnp.float32)       # folded bias

    kernel = functools.partial(_lstm_chunk_kernel, Tc, T, H, needs_mask)

    out_tm, h_n, c_n = pl.pallas_call(
        kernel,
        out_shape=(
            jax.ShapeDtypeStruct((Tp, B, H), jnp.float32),
            jax.ShapeDtypeStruct((B, H), jnp.float32),
            jax.ShapeDtypeStruct((B, H), jnp.float32),
        ),
        grid=(Tp // Tc,),
        in_specs=[
            pl.BlockSpec((Tc, B, D), lambda i: (i, 0, 0)),   # x time-chunk
            pl.BlockSpec((D, N), lambda i: (0, 0)),          # W_ih^T resident
            pl.BlockSpec((H, N), lambda i: (0, 0)),          # W_hh^T resident
            pl.BlockSpec((1, N), lambda i: (0, 0)),          # folded bias
        ],
        out_specs=(
            pl.BlockSpec((Tc, B, H), lambda i: (i, 0, 0)),   # outputs chunk
            pl.BlockSpec((B, H), lambda i: (0, 0)),          # h_n (state carrier)
            pl.BlockSpec((B, H), lambda i: (0, 0)),          # c_n (state carrier)
        ),
        compiler_params=pltpu.CompilerParams(
            dimension_semantics=("arbitrary",),              # sequential scan
            vmem_limit_bytes=32 * 1024 * 1024,
        ),
    )(x_tm, wih_t, whh_t, bias)

    if needs_mask:
        out_tm = out_tm[:T]
    outputs = jnp.transpose(out_tm, (1, 0, 2))               # (B, T, H)
    return outputs, h_n, c_n


# ---------------------------------------------------------------------------
# Parameters (deterministic in-script init; matches nn.LSTM's U(-k, k))
# ---------------------------------------------------------------------------
def _init_lstm_layer(key, input_size, hid_size):
    k = 1.0 / math.sqrt(hid_size)
    k1, k2, k3, k4 = jax.random.split(key, 4)
    return dict(
        w_ih=jax.random.uniform(k1, (4 * hid_size, input_size), jnp.float32, -k, k),
        w_hh=jax.random.uniform(k2, (4 * hid_size, hid_size), jnp.float32, -k, k),
        b_ih=jax.random.uniform(k3, (4 * hid_size,), jnp.float32, -k, k),
        b_hh=jax.random.uniform(k4, (4 * hid_size,), jnp.float32, -k, k),
    )


def init_rnn_params(key, input_size, hid_size, num_rnn_layers=1):
    layers = []
    for li in range(num_rnn_layers):
        key, sub = jax.random.split(key)
        in_sz = input_size if li == 0 else hid_size
        layers.append(_init_lstm_layer(sub, in_sz, hid_size))
    return layers


# ---------------------------------------------------------------------------
# Forward pass: matches RNN.forward -> (outputs, (h_n, c_n)), batch_first=True
# ---------------------------------------------------------------------------
@jax.jit
def rnn_forward(params, x):
    h_list, c_list = [], []
    out = x
    for layer in params:
        out, h_n, c_n = _lstm_layer_pallas(
            out, layer["w_ih"], layer["w_hh"], layer["b_ih"], layer["b_hh"])
        h_list.append(h_n)
        c_list.append(c_n)
    # (num_layers * num_directions, B, H) -- unidirectional here.
    return out, (jnp.stack(h_list, axis=0), jnp.stack(c_list, axis=0))


# ---------------------------------------------------------------------------
# Pure-JAX reference (emulates the kernel's bf16-input / f32-accumulate math)
# ---------------------------------------------------------------------------
def _lstm_reference(layer, x):
    B, T, D = x.shape
    H = layer["w_hh"].shape[1]

    def bf16_round(a):
        return a.astype(jnp.bfloat16).astype(jnp.float32)

    wih = bf16_round(layer["w_ih"])
    whh = bf16_round(layer["w_hh"])
    b = (layer["b_ih"] + layer["b_hh"]).astype(jnp.float32)
    x_tm = bf16_round(jnp.transpose(x, (1, 0, 2)))           # (T, B, D)

    def step(carry, x_t):
        h, c = carry
        g = x_t @ wih.T + bf16_round(h) @ whh.T + b
        i = jax.nn.sigmoid(g[:, 0 * H:1 * H])
        f = jax.nn.sigmoid(g[:, 1 * H:2 * H])
        gg = jnp.tanh(g[:, 2 * H:3 * H])
        o = jax.nn.sigmoid(g[:, 3 * H:4 * H])
        c = f * c + i * gg
        h = o * jnp.tanh(c)
        return (h, c), h

    z = jnp.zeros((B, H), jnp.float32)
    (h_n, c_n), ys = jax.lax.scan(step, (z, z), x_tm)
    return jnp.transpose(ys, (1, 0, 2)), h_n, c_n


if __name__ == "__main__":
    key = jax.random.PRNGKey(0)
    pkey, xkey = jax.random.split(key)

    input_size, hid_size = 64, 128
    batch, seq = 8, 16

    params = init_rnn_params(pkey, input_size, hid_size, num_rnn_layers=1)
    x = jax.random.normal(xkey, (batch, seq, input_size), jnp.float32)

    outputs, (h_n, c_n) = rnn_forward(params, x)
    outputs = jax.block_until_ready(outputs)
    h_n = jax.block_until_ready(h_n)
    c_n = jax.block_until_ready(c_n)

    assert outputs.shape == (batch, seq, hid_size) and outputs.dtype == jnp.float32
    assert h_n.shape == (1, batch, hid_size)
    assert c_n.shape == (1, batch, hid_size)
    assert bool(jnp.isfinite(outputs).all())
    assert bool(jnp.isfinite(h_n).all()) and bool(jnp.isfinite(c_n).all())

    # Correctness vs. a pure-JAX reference using the same precision recipe
    # (bf16 matmul inputs, f32 accumulate/state) -- loose tolerance covers
    # EUP-approximation / accumulation-order differences only.
    ref_out, ref_h, ref_c = _lstm_reference(params[0], x)
    err = float(jnp.max(jnp.abs(outputs - ref_out)))
    assert err < 5e-2, f"max|outputs - reference| = {err}"

    print("KERNEL_OK")
</pallas_src>

<mosaic_0001>
module attributes {stable_mosaic.version = 11 : i64} {
  func.func @_lstm_chunk_kernel(%arg0: i32, %arg1: memref<16x8x64xbf16, #tpu.memory_space<vmem>>, %arg2: memref<64x512xbf16, #tpu.memory_space<vmem>>, %arg3: memref<128x512xbf16, #tpu.memory_space<vmem>>, %arg4: memref<1x512xf32, #tpu.memory_space<vmem>>, %arg5: memref<16x8x128xf32, #tpu.memory_space<vmem>>, %arg6: memref<8x128xf32, #tpu.memory_space<vmem>>, %arg7: memref<8x128xf32, #tpu.memory_space<vmem>>) attributes {dimension_semantics = [#tpu.dimension_semantics<arbitrary>], iteration_bounds = array<i64: 1>, scalar_prefetch = 0 : i64, scratch_operands = 0 : i64, tpu.core_type = #tpu.core_type<tc>, window_params = [{transform_indices = @transform_0, window_bounds = array<i64: 16, 8, 64>}, {pipeline_mode = #tpu.pipeline_mode<synchronous>, transform_indices = @transform_1, window_bounds = array<i64: 64, 512>}, {pipeline_mode = #tpu.pipeline_mode<synchronous>, transform_indices = @transform_2, window_bounds = array<i64: 128, 512>}, {pipeline_mode = #tpu.pipeline_mode<synchronous>, transform_indices = @transform_3, window_bounds = array<i64: 1, 512>}, {transform_indices = @transform_4, window_bounds = array<i64: 16, 8, 128>}, {pipeline_mode = #tpu.pipeline_mode<synchronous>, transform_indices = @transform_5, window_bounds = array<i64: 8, 128>}, {pipeline_mode = #tpu.pipeline_mode<synchronous>, transform_indices = @transform_6, window_bounds = array<i64: 8, 128>}]} {
    %c0_i32 = arith.constant 0 : i32
    %0 = arith.cmpi eq, %arg0, %c0_i32 : i32
    %1 = arith.extui %0 : i1 to i32
    %c0_i32_0 = arith.constant 0 : i32
    %2 = arith.cmpi ne, %1, %c0_i32_0 : i32
    scf.if %2 {
      %cst_270 = arith.constant 0.000000e+00 : f32
      %682 = vector.broadcast %cst_270 : f32 to vector<8x128xf32>
      %c0_271 = arith.constant 0 : index
      %c0_272 = arith.constant 0 : index
      %683 = vector.load %arg6[%c0_271, %c0_272] : memref<8x128xf32, #tpu.memory_space<vmem>>, vector<8x128xf32>
      tpu.vector_store %arg6[%c0_271, %c0_272], %682 {strides = array<i32>} : memref<8x128xf32, #tpu.memory_space<vmem>>, vector<8x128xf32>,
      %cst_273 = arith.constant 0.000000e+00 : f32
      %684 = vector.broadcast %cst_273 : f32 to vector<8x128xf32>
      %c0_274 = arith.constant 0 : index
      %c0_275 = arith.constant 0 : index
      %685 = vector.load %arg7[%c0_274, %c0_275] : memref<8x128xf32, #tpu.memory_space<vmem>>, vector<8x128xf32>
      tpu.vector_store %arg7[%c0_274, %c0_275], %684 {strides = array<i32>} : memref<8x128xf32, #tpu.memory_space<vmem>>, vector<8x128xf32>,
    } else {
    }
    %c0 = arith.constant 0 : index
    %c0_1 = arith.constant 0 : index
    %3 = vector.load %arg2[%c0, %c0_1] : memref<64x512xbf16, #tpu.memory_space<vmem>>, vector<64x512xbf16>
    %c0_2 = arith.constant 0 : index
    %c0_3 = arith.constant 0 : index
    %4 = vector.load %arg3[%c0_2, %c0_3] : memref<128x512xbf16, #tpu.memory_space<vmem>>, vector<128x512xbf16>
    %c0_4 = arith.constant 0 : index
    %c0_5 = arith.constant 0 : index
    %5 = vector.load %arg4[%c0_4, %c0_5] : memref<1x512xf32, #tpu.memory_space<vmem>>, vector<1x512xf32>
    %c0_6 = arith.constant 0 : index
    %c0_7 = arith.constant 0 : index
    %6 = vector.load %arg6[%c0_6, %c0_7] : memref<8x128xf32, #tpu.memory_space<vmem>>, vector<8x128xf32>
    %c0_8 = arith.constant 0 : index
    %c0_9 = arith.constant 0 : index
    %7 = vector.load %arg7[%c0_8, %c0_9] : memref<8x128xf32, #tpu.memory_space<vmem>>, vector<8x128xf32>
    %c0_10 = arith.constant 0 : index
    %c0_11 = arith.constant 0 : index
    %c0_12 = arith.constant 0 : index
    %8 = vector.load %arg1[%c0_10, %c0_11, %c0_12] : memref<16x8x64xbf16, #tpu.memory_space<vmem>>, vector<1x8x64xbf16>
    %9 = vector.shape_cast %8 : vector<1x8x64xbf16> to vector<8x64xbf16>
    %cst = arith.constant dense<0.000000e+00> : vector<8x512xf32>
    %10 = tpu.matmul %9, %3, %cst {dimension_numbers = #tpu.dot_dimension_numbers<[1], [0], [0], [1], [0, 0, 1, 1], [], []>} : vector<8x64xbf16>, vector<64x512xbf16>, vector<8x512xf32> -> vector<8x512xf32>
    %11 = arith.truncf %6 : vector<8x128xf32> to vector<8x128xbf16>
    %cst_13 = arith.constant dense<0.000000e+00> : vector<8x512xf32>
    %12 = tpu.matmul %11, %4, %cst_13 {dimension_numbers = #tpu.dot_dimension_numbers<[1], [0], [0], [1], [0, 0, 1, 1], [], []>} : vector<8x128xbf16>, vector<128x512xbf16>, vector<8x512xf32> -> vector<8x512xf32>
    %13 = arith.addf %10, %12 : vector<8x512xf32>
    %14 = vector.broadcast %5 : vector<1x512xf32> to vector<8x512xf32>
    %15 = arith.addf %13, %14 : vector<8x512xf32>
    %16 = vector.extract_strided_slice %15 {offsets = [0, 0], sizes = [8, 128], strides = [1, 1]} : vector<8x512xf32> to vector<8x128xf32>
    %cst_14 = arith.constant 5.000000e-01 : f32
    %17 = vector.broadcast %cst_14 : f32 to vector<8x128xf32>
    %18 = arith.mulf %17, %16 : vector<8x128xf32>
    %19 = math.tanh %18 : vector<8x128xf32>
    %cst_15 = arith.constant 5.000000e-01 : f32
    %20 = vector.broadcast %cst_15 : f32 to vector<8x128xf32>
    %21 = arith.mulf %20, %19 : vector<8x128xf32>
    %cst_16 = arith.constant 5.000000e-01 : f32
    %22 = vector.broadcast %cst_16 : f32 to vector<8x128xf32>
    %23 = arith.addf %21, %22 : vector<8x128xf32>
    %24 = vector.extract_strided_slice %15 {offsets = [0, 128], sizes = [8, 128], strides = [1, 1]} : vector<8x512xf32> to vector<8x128xf32>
    %cst_17 = arith.constant 5.000000e-01 : f32
    %25 = vector.broadcast %cst_17 : f32 to vector<8x128xf32>
    %26 = arith.mulf %25, %24 : vector<8x128xf32>
    %27 = math.tanh %26 : vector<8x128xf32>
    %cst_18 = arith.constant 5.000000e-01 : f32
    %28 = vector.broadcast %cst_18 : f32 to vector<8x128xf32>
    %29 = arith.mulf %28, %27 : vector<8x128xf32>
    %cst_19 = arith.constant 5.000000e-01 : f32
    %30 = vector.broadcast %cst_19 : f32 to vector<8x128xf32>
    %31 = arith.addf %29, %30 : vector<8x128xf32>
    %32 = vector.extract_strided_slice %15 {offsets = [0, 256], sizes = [8, 128], strides = [1, 1]} : vector<8x512xf32> to vector<8x128xf32>
    %33 = math.tanh %32 : vector<8x128xf32>
    %34 = vector.extract_strided_slice %15 {offsets = [0, 384], sizes = [8, 128], strides = [1, 1]} : vector<8x512xf32> to vector<8x128xf32>
    %cst_20 = arith.constant 5.000000e-01 : f32
    %35 = vector.broadcast %cst_20 : f32 to vector<8x128xf32>
    %36 = arith.mulf %35, %34 : vector<8x128xf32>
    %37 = math.tanh %36 : vector<8x128xf32>
    %cst_21 = arith.constant 5.000000e-01 : f32
    %38 = vector.broadcast %cst_21 : f32 to vector<8x128xf32>
    %39 = arith.mulf %38, %37 : vector<8x128xf32>
    %cst_22 = arith.constant 5.000000e-01 : f32
    %40 = vector.broadcast %cst_22 : f32 to vector<8x128xf32>
    %41 = arith.addf %39, %40 : vector<8x128xf32>
    %42 = arith.mulf %31, %7 : vector<8x128xf32>
    %43 = arith.mulf %23, %33 : vector<8x128xf32>
    %44 = arith.addf %42, %43 : vector<8x128xf32>
    %45 = math.tanh %44 : vector<8x128xf32>
    %46 = arith.mulf %41, %45 : vector<8x128xf32>
    %c0_23 = arith.constant 0 : index
    %c0_24 = arith.constant 0 : index
    %c0_25 = arith.constant 0 : index
    %47 = vector.load %arg5[%c0_23, %c0_24, %c0_25] : memref<16x8x128xf32, #tpu.memory_space<vmem>>, vector<1x8x128xf32>
    %48 = vector.shape_cast %47 : vector<1x8x128xf32> to vector<8x128xf32>
    %49 = vector.shape_cast %46 : vector<8x128xf32> to vector<1x8x128xf32>
    tpu.vector_store %arg5[%c0_23, %c0_24, %c0_25], %49 {strides = array<i32>} : memref<16x8x128xf32, #tpu.memory_space<vmem>>, vector<1x8x128xf32>,
    %c1 = arith.constant 1 : index
    %c0_26 = arith.constant 0 : index
    %c0_27 = arith.constant 0 : index
    %50 = vector.load %arg1[%c1, %c0_26, %c0_27] : memref<16x8x64xbf16, #tpu.memory_space<vmem>>, vector<1x8x64xbf16>
    %51 = vector.shape_cast %50 : vector<1x8x64xbf16> to vector<8x64xbf16>
    %cst_28 = arith.constant dense<0.000000e+00> : vector<8x512xf32>
    %52 = tpu.matmul %51, %3, %cst_28 {dimension_numbers = #tpu.dot_dimension_numbers<[1], [0], [0], [1], [0, 0, 1, 1], [], []>} : vector<8x64xbf16>, vector<64x512xbf16>, vector<8x512xf32> -> vector<8x512xf32>
    %53 = arith.truncf %46 : vector<8x128xf32> to vector<8x128xbf16>
    %cst_29 = arith.constant dense<0.000000e+00> : vector<8x512xf32>
    %54 = tpu.matmul %53, %4, %cst_29 {dimension_numbers = #tpu.dot_dimension_numbers<[1], [0], [0], [1], [0, 0, 1, 1], [], []>} : vector<8x128xbf16>, vector<128x512xbf16>, vector<8x512xf32> -> vector<8x512xf32>
    %55 = arith.addf %52, %54 : vector<8x512xf32>
    %56 = vector.broadcast %5 : vector<1x512xf32> to vector<8x512xf32>
    %57 = arith.addf %55, %56 : vector<8x512xf32>
    %58 = vector.extract_strided_slice %57 {offsets = [0, 0], sizes = [8, 128], strides = [1, 1]} : vector<8x512xf32> to vector<8x128xf32>
    %cst_30 = arith.constant 5.000000e-01 : f32
    %59 = vector.broadcast %cst_30 : f32 to vector<8x128xf32>
    %60 = arith.mulf %59, %58 : vector<8x128xf32>
    %61 = math.tanh %60 : vector<8x128xf32>
    %cst_31 = arith.constant 5.000000e-01 : f32
    %62 = vector.broadcast %cst_31 : f32 to vector<8x128xf32>
    %63 = arith.mulf %62, %61 : vector<8x128xf32>
    %cst_32 = arith.constant 5.000000e-01 : f32
    %64 = vector.broadcast %cst_32 : f32 to vector<8x128xf32>
    %65 = arith.addf %63, %64 : vector<8x128xf32>
    %66 = vector.extract_strided_slice %57 {offsets = [0, 128], sizes = [8, 128], strides = [1, 1]} : vector<8x512xf32> to vector<8x128xf32>
    %cst_33 = arith.constant 5.000000e-01 : f32
    %67 = vector.broadcast %cst_33 : f32 to vector<8x128xf32>
    %68 = arith.mulf %67, %66 : vector<8x128xf32>
    %69 = math.tanh %68 : vector<8x128xf32>
    %cst_34 = arith.constant 5.000000e-01 : f32
    %70 = vector.broadcast %cst_34 : f32 to vector<8x128xf32>
    %71 = arith.mulf %70, %69 : vector<8x128xf32>
    %cst_35 = arith.constant 5.000000e-01 : f32
    %72 = vector.broadcast %cst_35 : f32 to vector<8x128xf32>
    %73 = arith.addf %71, %72 : vector<8x128xf32>
    %74 = vector.extract_strided_slice %57 {offsets = [0, 256], sizes = [8, 128], strides = [1, 1]} : vector<8x512xf32> to vector<8x128xf32>
    %75 = math.tanh %74 : vector<8x128xf32>
    %76 = vector.extract_strided_slice %57 {offsets = [0, 384], sizes = [8, 128], strides = [1, 1]} : vector<8x512xf32> to vector<8x128xf32>
    %cst_36 = arith.constant 5.000000e-01 : f32
    %77 = vector.broadcast %cst_36 : f32 to vector<8x128xf32>
    %78 = arith.mulf %77, %76 : vector<8x128xf32>
    %79 = math.tanh %78 : vector<8x128xf32>
    %cst_37 = arith.constant 5.000000e-01 : f32
    %80 = vector.broadcast %cst_37 : f32 to vector<8x128xf32>
    %81 = arith.mulf %80, %79 : vector<8x128xf32>
    %cst_38 = arith.constant 5.000000e-01 : f32
    %82 = vector.broadcast %cst_38 : f32 to vector<8x128xf32>
    %83 = arith.addf %81, %82 : vector<8x128xf32>
    %84 = arith.mulf %73, %44 : vector<8x128xf32>
    %85 = arith.mulf %65, %75 : vector<8x128xf32>
    %86 = arith.addf %84, %85 : vector<8x128xf32>
    %87 = math.tanh %86 : vector<8x128xf32>
    %88 = arith.mulf %83, %87 : vector<8x128xf32>
    %c1_39 = arith.constant 1 : index
    %c0_40 = arith.constant 0 : index
    %c0_41 = arith.constant 0 : index
    %89 = vector.load %arg5[%c1_39, %c0_40, %c0_41] : memref<16x8x128xf32, #tpu.memory_space<vmem>>, vector<1x8x128xf32>
    %90 = vector.shape_cast %89 : vector<1x8x128xf32> to vector<8x128xf32>
    %91 = vector.shape_cast %88 : vector<8x128xf32> to vector<1x8x128xf32>
    tpu.vector_store %arg5[%c1_39, %c0_40, %c0_41], %91 {strides = array<i32>} : memref<16x8x128xf32, #tpu.memory_space<vmem>>, vector<1x8x128xf32>,
    %c2 = arith.constant 2 : index
    %c0_42 = arith.constant 0 : index
    %c0_43 = arith.constant 0 : index
    %92 = vector.load %arg1[%c2, %c0_42, %c0_43] : memref<16x8x64xbf16, #tpu.memory_space<vmem>>, vector<1x8x64xbf16>
    %93 = vector.shape_cast %92 : vector<1x8x64xbf16> to vector<8x64xbf16>
    %cst_44 = arith.constant dense<0.000000e+00> : vector<8x512xf32>
    %94 = tpu.matmul %93, %3, %cst_44 {dimension_numbers = #tpu.dot_dimension_numbers<[1], [0], [0], [1], [0, 0, 1, 1], [], []>} : vector<8x64xbf16>, vector<64x512xbf16>, vector<8x512xf32> -> vector<8x512xf32>
    %95 = arith.truncf %88 : vector<8x128xf32> to vector<8x128xbf16>
    %cst_45 = arith.constant dense<0.000000e+00> : vector<8x512xf32>
    %96 = tpu.matmul %95, %4, %cst_45 {dimension_numbers = #tpu.dot_dimension_numbers<[1], [0], [0], [1], [0, 0, 1, 1], [], []>} : vector<8x128xbf16>, vector<128x512xbf16>, vector<8x512xf32> -> vector<8x512xf32>
    %97 = arith.addf %94, %96 : vector<8x512xf32>
    %98 = vector.broadcast %5 : vector<1x512xf32> to vector<8x512xf32>
    %99 = arith.addf %97, %98 : vector<8x512xf32>
    %100 = vector.extract_strided_slice %99 {offsets = [0, 0], sizes = [8, 128], strides = [1, 1]} : vector<8x512xf32> to vector<8x128xf32>
    %cst_46 = arith.constant 5.000000e-01 : f32
    %101 = vector.broadcast %cst_46 : f32 to vector<8x128xf32>
    %102 = arith.mulf %101, %100 : vector<8x128xf32>
    %103 = math.tanh %102 : vector<8x128xf32>
    %cst_47 = arith.constant 5.000000e-01 : f32
    %104 = vector.broadcast %cst_47 : f32 to vector<8x128xf32>
    %105 = arith.mulf %104, %103 : vector<8x128xf32>
    %cst_48 = arith.constant 5.000000e-01 : f32
    %106 = vector.broadcast %cst_48 : f32 to vector<8x128xf32>
    %107 = arith.addf %105, %106 : vector<8x128xf32>
    %108 = vector.extract_strided_slice %99 {offsets = [0, 128], sizes = [8, 128], strides = [1, 1]} : vector<8x512xf32> to vector<8x128xf32>
    %cst_49 = arith.constant 5.000000e-01 : f32
    %109 = vector.broadcast %cst_49 : f32 to vector<8x128xf32>
    %110 = arith.mulf %109, %108 : vector<8x128xf32>
    %111 = math.tanh %110 : vector<8x128xf32>
    %cst_50 = arith.constant 5.000000e-01 : f32
    %112 = vector.broadcast %cst_50 : f32 to vector<8x128xf32>
    %113 = arith.mulf %112, %111 : vector<8x128xf32>
    %cst_51 = arith.constant 5.000000e-01 : f32
    %114 = vector.broadcast %cst_51 : f32 to vector<8x128xf32>
    %115 = arith.addf %113, %114 : vector<8x128xf32>
    %116 = vector.extract_strided_slice %99 {offsets = [0, 256], sizes = [8, 128], strides = [1, 1]} : vector<8x512xf32> to vector<8x128xf32>
    %117 = math.tanh %116 : vector<8x128xf32>
    %118 = vector.extract_strided_slice %99 {offsets = [0, 384], sizes = [8, 128], strides = [1, 1]} : vector<8x512xf32> to vector<8x128xf32>
    %cst_52 = arith.constant 5.000000e-01 : f32
    %119 = vector.broadcast %cst_52 : f32 to vector<8x128xf32>
    %120 = arith.mulf %119, %118 : vector<8x128xf32>
    %121 = math.tanh %120 : vector<8x128xf32>
    %cst_53 = arith.constant 5.000000e-01 : f32
    %122 = vector.broadcast %cst_53 : f32 to vector<8x128xf32>
    %123 = arith.mulf %122, %121 : vector<8x128xf32>
    %cst_54 = arith.constant 5.000000e-01 : f32
    %124 = vector.broadcast %cst_54 : f32 to vector<8x128xf32>
    %125 = arith.addf %123, %124 : vector<8x128xf32>
    %126 = arith.mulf %115, %86 : vector<8x128xf32>
    %127 = arith.mulf %107, %117 : vector<8x128xf32>
    %128 = arith.addf %126, %127 : vector<8x128xf32>
    %129 = math.tanh %128 : vector<8x128xf32>
    %130 = arith.mulf %125, %129 : vector<8x128xf32>
    %c2_55 = arith.constant 2 : index
    %c0_56 = arith.constant 0 : index
    %c0_57 = arith.constant 0 : index
    %131 = vector.load %arg5[%c2_55, %c0_56, %c0_57] : memref<16x8x128xf32, #tpu.memory_space<vmem>>, vector<1x8x128xf32>
    %132 = vector.shape_cast %131 : vector<1x8x128xf32> to vector<8x128xf32>
    %133 = vector.shape_cast %130 : vector<8x128xf32> to vector<1x8x128xf32>
    tpu.vector_store %arg5[%c2_55, %c0_56, %c0_57], %133 {strides = array<i32>} : memref<16x8x128xf32, #tpu.memory_space<vmem>>, vector<1x8x128xf32>,
    %c3 = arith.constant 3 : index
    %c0_58 = arith.constant 0 : index
    %c0_59 = arith.constant 0 : index
    %134 = vector.load %arg1[%c3, %c0_58, %c0_59] : memref<16x8x64xbf16, #tpu.memory_space<vmem>>, vector<1x8x64xbf16>
    %135 = vector.shape_cast %134 : vector<1x8x64xbf16> to vector<8x64xbf16>
    %cst_60 = arith.constant dense<0.000000e+00> : vector<8x512xf32>
    %136 = tpu.matmul %135, %3, %cst_60 {dimension_numbers = #tpu.dot_dimension_numbers<[1], [0], [0], [1], [0, 0, 1, 1], [], []>} : vector<8x64xbf16>, vector<64x512xbf16>, vector<8x512xf32> -> vector<8x512xf32>
    %137 = arith.truncf %130 : vector<8x128xf32> to vector<8x128xbf16>
    %cst_61 = arith.constant dense<0.000000e+00> : vector<8x512xf32>
    %138 = tpu.matmul %137, %4, %cst_61 {dimension_numbers = #tpu.dot_dimension_numbers<[1], [0], [0], [1], [0, 0, 1, 1], [], []>} : vector<8x128xbf16>, vector<128x512xbf16>, vector<8x512xf32> -> vector<8x512xf32>
    %139 = arith.addf %136, %138 : vector<8x512xf32>
    %140 = vector.broadcast %5 : vector<1x512xf32> to vector<8x512xf32>
    %141 = arith.addf %139, %140 : vector<8x512xf32>
    %142 = vector.extract_strided_slice %141 {offsets = [0, 0], sizes = [8, 128], strides = [1, 1]} : vector<8x512xf32> to vector<8x128xf32>
    %cst_62 = arith.constant 5.000000e-01 : f32
    %143 = vector.broadcast %cst_62 : f32 to vector<8x128xf32>
    %144 = arith.mulf %143, %142 : vector<8x128xf32>
    %145 = math.tanh %144 : vector<8x128xf32>
    %cst_63 = arith.constant 5.000000e-01 : f32
    %146 = vector.broadcast %cst_63 : f32 to vector<8x128xf32>
    %147 = arith.mulf %146, %145 : vector<8x128xf32>
    %cst_64 = arith.constant 5.000000e-01 : f32
    %148 = vector.broadcast %cst_64 : f32 to vector<8x128xf32>
    %149 = arith.addf %147, %148 : vector<8x128xf32>
    %150 = vector.extract_strided_slice %141 {offsets = [0, 128], sizes = [8, 128], strides = [1, 1]} : vector<8x512xf32> to vector<8x128xf32>
    %cst_65 = arith.constant 5.000000e-01 : f32
    %151 = vector.broadcast %cst_65 : f32 to vector<8x128xf32>
    %152 = arith.mulf %151, %150 : vector<8x128xf32>
    %153 = math.tanh %152 : vector<8x128xf32>
    %cst_66 = arith.constant 5.000000e-01 : f32
    %154 = vector.broadcast %cst_66 : f32 to vector<8x128xf32>
    %155 = arith.mulf %154, %153 : vector<8x128xf32>
    %cst_67 = arith.constant 5.000000e-01 : f32
    %156 = vector.broadcast %cst_67 : f32 to vector<8x128xf32>
    %157 = arith.addf %155, %156 : vector<8x128xf32>
    %158 = vector.extract_strided_slice %141 {offsets = [0, 256], sizes = [8, 128], strides = [1, 1]} : vector<8x512xf32> to vector<8x128xf32>
    %159 = math.tanh %158 : vector<8x128xf32>
    %160 = vector.extract_strided_slice %141 {offsets = [0, 384], sizes = [8, 128], strides = [1, 1]} : vector<8x512xf32> to vector<8x128xf32>
    %cst_68 = arith.constant 5.000000e-01 : f32
    %161 = vector.broadcast %cst_68 : f32 to vector<8x128xf32>
    %162 = arith.mulf %161, %160 : vector<8x128xf32>
    %163 = math.tanh %162 : vector<8x128xf32>
    %cst_69 = arith.constant 5.000000e-01 : f32
    %164 = vector.broadcast %cst_69 : f32 to vector<8x128xf32>
    %165 = arith.mulf %164, %163 : vector<8x128xf32>
    %cst_70 = arith.constant 5.000000e-01 : f32
    %166 = vector.broadcast %cst_70 : f32 to vector<8x128xf32>
    %167 = arith.addf %165, %166 : vector<8x128xf32>
    %168 = arith.mulf %157, %128 : vector<8x128xf32>
    %169 = arith.mulf %149, %159 : vector<8x128xf32>
    %170 = arith.addf %168, %169 : vector<8x128xf32>
    %171 = math.tanh %170 : vector<8x128xf32>
    %172 = arith.mulf %167, %171 : vector<8x128xf32>
    %c3_71 = arith.constant 3 : index
    %c0_72 = arith.constant 0 : index
    %c0_73 = arith.constant 0 : index
    %173 = vector.load %arg5[%c3_71, %c0_72, %c0_73] : memref<16x8x128xf32, #tpu.memory_space<vmem>>, vector<1x8x128xf32>
    %174 = vector.shape_cast %173 : vector<1x8x128xf32> to vector<8x128xf32>
    %175 = vector.shape_cast %172 : vector<8x128xf32> to vector<1x8x128xf32>
    tpu.vector_store %arg5[%c3_71, %c0_72, %c0_73], %175 {strides = array<i32>} : memref<16x8x128xf32, #tpu.memory_space<vmem>>, vector<1x8x128xf32>,
    %c4 = arith.constant 4 : index
    %c0_74 = arith.constant 0 : index
    %c0_75 = arith.constant 0 : index
    %176 = vector.load %arg1[%c4, %c0_74, %c0_75] : memref<16x8x64xbf16, #tpu.memory_space<vmem>>, vector<1x8x64xbf16>
    %177 = vector.shape_cast %176 : vector<1x8x64xbf16> to vector<8x64xbf16>
    %cst_76 = arith.constant dense<0.000000e+00> : vector<8x512xf32>
    %178 = tpu.matmul %177, %3, %cst_76 {dimension_numbers = #tpu.dot_dimension_numbers<[1], [0], [0], [1], [0, 0, 1, 1], [], []>} : vector<8x64xbf16>, vector<64x512xbf16>, vector<8x512xf32> -> vector<8x512xf32>
    %179 = arith.truncf %172 : vector<8x128xf32> to vector<8x128xbf16>
    %cst_77 = arith.constant dense<0.000000e+00> : vector<8x512xf32>
    %180 = tpu.matmul %179, %4, %cst_77 {dimension_numbers = #tpu.dot_dimension_numbers<[1], [0], [0], [1], [0, 0, 1, 1], [], []>} : vector<8x128xbf16>, vector<128x512xbf16>, vector<8x512xf32> -> vector<8x512xf32>
    %181 = arith.addf %178, %180 : vector<8x512xf32>
    %182 = vector.broadcast %5 : vector<1x512xf32> to vector<8x512xf32>
    %183 = arith.addf %181, %182 : vector<8x512xf32>
    %184 = vector.extract_strided_slice %183 {offsets = [0, 0], sizes = [8, 128], strides = [1, 1]} : vector<8x512xf32> to vector<8x128xf32>
    %cst_78 = arith.constant 5.000000e-01 : f32
    %185 = vector.broadcast %cst_78 : f32 to vector<8x128xf32>
    %186 = arith.mulf %185, %184 : vector<8x128xf32>
    %187 = math.tanh %186 : vector<8x128xf32>
    %cst_79 = arith.constant 5.000000e-01 : f32
    %188 = vector.broadcast %cst_79 : f32 to vector<8x128xf32>
    %189 = arith.mulf %188, %187 : vector<8x128xf32>
    %cst_80 = arith.constant 5.000000e-01 : f32
    %190 = vector.broadcast %cst_80 : f32 to vector<8x128xf32>
    %191 = arith.addf %189, %190 : vector<8x128xf32>
    %192 = vector.extract_strided_slice %183 {offsets = [0, 128], sizes = [8, 128], strides = [1, 1]} : vector<8x512xf32> to vector<8x128xf32>
    %cst_81 = arith.constant 5.000000e-01 : f32
    %193 = vector.broadcast %cst_81 : f32 to vector<8x128xf32>
    %194 = arith.mulf %193, %192 : vector<8x128xf32>
    %195 = math.tanh %194 : vector<8x128xf32>
    %cst_82 = arith.constant 5.000000e-01 : f32
    %196 = vector.broadcast %cst_82 : f32 to vector<8x128xf32>
    %197 = arith.mulf %196, %195 : vector<8x128xf32>
    %cst_83 = arith.constant 5.000000e-01 : f32
    %198 = vector.broadcast %cst_83 : f32 to vector<8x128xf32>
    %199 = arith.addf %197, %198 : vector<8x128xf32>
    %200 = vector.extract_strided_slice %183 {offsets = [0, 256], sizes = [8, 128], strides = [1, 1]} : vector<8x512xf32> to vector<8x128xf32>
    %201 = math.tanh %200 : vector<8x128xf32>
    %202 = vector.extract_strided_slice %183 {offsets = [0, 384], sizes = [8, 128], strides = [1, 1]} : vector<8x512xf32> to vector<8x128xf32>
    %cst_84 = arith.constant 5.000000e-01 : f32
    %203 = vector.broadcast %cst_84 : f32 to vector<8x128xf32>
    %204 = arith.mulf %203, %202 : vector<8x128xf32>
    %205 = math.tanh %204 : vector<8x128xf32>
    %cst_85 = arith.constant 5.000000e-01 : f32
    %206 = vector.broadcast %cst_85 : f32 to vector<8x128xf32>
    %207 = arith.mulf %206, %205 : vector<8x128xf32>
    %cst_86 = arith.constant 5.000000e-01 : f32
    %208 = vector.broadcast %cst_86 : f32 to vector<8x128xf32>
    %209 = arith.addf %207, %208 : vector<8x128xf32>
    %210 = arith.mulf %199, %170 : vector<8x128xf32>
    %211 = arith.mulf %191, %201 : vector<8x128xf32>
    %212 = arith.addf %210, %211 : vector<8x128xf32>
    %213 = math.tanh %212 : vector<8x128xf32>
    %214 = arith.mulf %209, %213 : vector<8x128xf32>
    %c4_87 = arith.constant 4 : index
    %c0_88 = arith.constant 0 : index
    %c0_89 = arith.constant 0 : index
    %215 = vector.load %arg5[%c4_87, %c0_88, %c0_89] : memref<16x8x128xf32, #tpu.memory_space<vmem>>, vector<1x8x128xf32>
    %216 = vector.shape_cast %215 : vector<1x8x128xf32> to vector<8x128xf32>
    %217 = vector.shape_cast %214 : vector<8x128xf32> to vector<1x8x128xf32>
    tpu.vector_store %arg5[%c4_87, %c0_88, %c0_89], %217 {strides = array<i32>} : memref<16x8x128xf32, #tpu.memory_space<vmem>>, vector<1x8x128xf32>,
    %c5 = arith.constant 5 : index
    %c0_90 = arith.constant 0 : index
    %c0_91 = arith.constant 0 : index
    %218 = vector.load %arg1[%c5, %c0_90, %c0_91] : memref<16x8x64xbf16, #tpu.memory_space<vmem>>, vector<1x8x64xbf16>
    %219 = vector.shape_cast %218 : vector<1x8x64xbf16> to vector<8x64xbf16>
    %cst_92 = arith.constant dense<0.000000e+00> : vector<8x512xf32>
    %220 = tpu.matmul %219, %3, %cst_92 {dimension_numbers = #tpu.dot_dimension_numbers<[1], [0], [0], [1], [0, 0, 1, 1], [], []>} : vector<8x64xbf16>, vector<64x512xbf16>, vector<8x512xf32> -> vector<8x512xf32>
    %221 = arith.truncf %214 : vector<8x128xf32> to vector<8x128xbf16>
    %cst_93 = arith.constant dense<0.000000e+00> : vector<8x512xf32>
    %222 = tpu.matmul %221, %4, %cst_93 {dimension_numbers = #tpu.dot_dimension_numbers<[1], [0], [0], [1], [0, 0, 1, 1], [], []>} : vector<8x128xbf16>, vector<128x512xbf16>, vector<8x512xf32> -> vector<8x512xf32>
    %223 = arith.addf %220, %222 : vector<8x512xf32>
    %224 = vector.broadcast %5 : vector<1x512xf32> to vector<8x512xf32>
    %225 = arith.addf %223, %224 : vector<8x512xf32>
    %226 = vector.extract_strided_slice %225 {offsets = [0, 0], sizes = [8, 128], strides = [1, 1]} : vector<8x512xf32> to vector<8x128xf32>
    %cst_94 = arith.constant 5.000000e-01 : f32
    %227 = vector.broadcast %cst_94 : f32 to vector<8x128xf32>
    %228 = arith.mulf %227, %226 : vector<8x128xf32>
    %229 = math.tanh %228 : vector<8x128xf32>
    %cst_95 = arith.constant 5.000000e-01 : f32
    %230 = vector.broadcast %cst_95 : f32 to vector<8x128xf32>
    %231 = arith.mulf %230, %229 : vector<8x128xf32>
    %cst_96 = arith.constant 5.000000e-01 : f32
    %232 = vector.broadcast %cst_96 : f32 to vector<8x128xf32>
    %233 = arith.addf %231, %232 : vector<8x128xf32>
    %234 = vector.extract_strided_slice %225 {offsets = [0, 128], sizes = [8, 128], strides = [1, 1]} : vector<8x512xf32> to vector<8x128xf32>
    %cst_97 = arith.constant 5.000000e-01 : f32
    %235 = vector.broadcast %cst_97 : f32 to vector<8x128xf32>
    %236 = arith.mulf %235, %234 : vector<8x128xf32>
    %237 = math.tanh %236 : vector<8x128xf32>
    %cst_98 = arith.constant 5.000000e-01 : f32
    %238 = vector.broadcast %cst_98 : f32 to vector<8x128xf32>
    %239 = arith.mulf %238, %237 : vector<8x128xf32>
    %cst_99 = arith.constant 5.000000e-01 : f32
    %240 = vector.broadcast %cst_99 : f32 to vector<8x128xf32>
    %241 = arith.addf %239, %240 : vector<8x128xf32>
    %242 = vector.extract_strided_slice %225 {offsets = [0, 256], sizes = [8, 128], strides = [1, 1]} : vector<8x512xf32> to vector<8x128xf32>
    %243 = math.tanh %242 : vector<8x128xf32>
    %244 = vector.extract_strided_slice %225 {offsets = [0, 384], sizes = [8, 128], strides = [1, 1]} : vector<8x512xf32> to vector<8x128xf32>
    %cst_100 = arith.constant 5.000000e-01 : f32
    %245 = vector.broadcast %cst_100 : f32 to vector<8x128xf32>
    %246 = arith.mulf %245, %244 : vector<8x128xf32>
    %247 = math.tanh %246 : vector<8x128xf32>
    %cst_101 = arith.constant 5.000000e-01 : f32
    %248 = vector.broadcast %cst_101 : f32 to vector<8x128xf32>
    %249 = arith.mulf %248, %247 : vector<8x128xf32>
    %cst_102 = arith.constant 5.000000e-01 : f32
    %250 = vector.broadcast %cst_102 : f32 to vector<8x128xf32>
    %251 = arith.addf %249, %250 : vector<8x128xf32>
    %252 = arith.mulf %241, %212 : vector<8x128xf32>
    %253 = arith.mulf %233, %243 : vector<8x128xf32>
    %254 = arith.addf %252, %253 : vector<8x128xf32>
    %255 = math.tanh %254 : vector<8x128xf32>
    %256 = arith.mulf %251, %255 : vector<8x128xf32>
    %c5_103 = arith.constant 5 : index
    %c0_104 = arith.constant 0 : index
    %c0_105 = arith.constant 0 : index
    %257 = vector.load %arg5[%c5_103, %c0_104, %c0_105] : memref<16x8x128xf32, #tpu.memory_space<vmem>>, vector<1x8x128xf32>
    %258 = vector.shape_cast %257 : vector<1x8x128xf32> to vector<8x128xf32>
    %259 = vector.shape_cast %256 : vector<8x128xf32> to vector<1x8x128xf32>
    tpu.vector_store %arg5[%c5_103, %c0_104, %c0_105], %259 {strides = array<i32>} : memref<16x8x128xf32, #tpu.memory_space<vmem>>, vector<1x8x128xf32>,
    %c6 = arith.constant 6 : index
    %c0_106 = arith.constant 0 : index
    %c0_107 = arith.constant 0 : index
    %260 = vector.load %arg1[%c6, %c0_106, %c0_107] : memref<16x8x64xbf16, #tpu.memory_space<vmem>>, vector<1x8x64xbf16>
    %261 = vector.shape_cast %260 : vector<1x8x64xbf16> to vector<8x64xbf16>
    %cst_108 = arith.constant dense<0.000000e+00> : vector<8x512xf32>
    %262 = tpu.matmul %261, %3, %cst_108 {dimension_numbers = #tpu.dot_dimension_numbers<[1], [0], [0], [1], [0, 0, 1, 1], [], []>} : vector<8x64xbf16>, vector<64x512xbf16>, vector<8x512xf32> -> vector<8x512xf32>
    %263 = arith.truncf %256 : vector<8x128xf32> to vector<8x128xbf16>
    %cst_109 = arith.constant dense<0.000000e+00> : vector<8x512xf32>
    %264 = tpu.matmul %263, %4, %cst_109 {dimension_numbers = #tpu.dot_dimension_numbers<[1], [0], [0], [1], [0, 0, 1, 1], [], []>} : vector<8x128xbf16>, vector<128x512xbf16>, vector<8x512xf32> -> vector<8x512xf32>
    %265 = arith.addf %262, %264 : vector<8x512xf32>
    %266 = vector.broadcast %5 : vector<1x512xf32> to vector<8x512xf32>
    %267 = arith.addf %265, %266 : vector<8x512xf32>
    %268 = vector.extract_strided_slice %267 {offsets = [0, 0], sizes = [8, 128], strides = [1, 1]} : vector<8x512xf32> to vector<8x128xf32>
    %cst_110 = arith.constant 5.000000e-01 : f32
    %269 = vector.broadcast %cst_110 : f32 to vector<8x128xf32>
    %270 = arith.mulf %269, %268 : vector<8x128xf32>
    %271 = math.tanh %270 : vector<8x128xf32>
    %cst_111 = arith.constant 5.000000e-01 : f32
    %272 = vector.broadcast %cst_111 : f32 to vector<8x128xf32>
    %273 = arith.mulf %272, %271 : vector<8x128xf32>
    %cst_112 = arith.constant 5.000000e-01 : f32
    %274 = vector.broadcast %cst_112 : f32 to vector<8x128xf32>
    %275 = arith.addf %273, %274 : vector<8x128xf32>
    %276 = vector.extract_strided_slice %267 {offsets = [0, 128], sizes = [8, 128], strides = [1, 1]} : vector<8x512xf32> to vector<8x128xf32>
    %cst_113 = arith.constant 5.000000e-01 : f32
    %277 = vector.broadcast %cst_113 : f32 to vector<8x128xf32>
    %278 = arith.mulf %277, %276 : vector<8x128xf32>
    %279 = math.tanh %278 : vector<8x128xf32>
    %cst_114 = arith.constant 5.000000e-01 : f32
    %280 = vector.broadcast %cst_114 : f32 to vector<8x128xf32>
    %281 = arith.mulf %280, %279 : vector<8x128xf32>
    %cst_115 = arith.constant 5.000000e-01 : f32
    %282 = vector.broadcast %cst_115 : f32 to vector<8x128xf32>
    %283 = arith.addf %281, %282 : vector<8x128xf32>
    %284 = vector.extract_strided_slice %267 {offsets = [0, 256], sizes = [8, 128], strides = [1, 1]} : vector<8x512xf32> to vector<8x128xf32>
    %285 = math.tanh %284 : vector<8x128xf32>
    %286 = vector.extract_strided_slice %267 {offsets = [0, 384], sizes = [8, 128], strides = [1, 1]} : vector<8x512xf32> to vector<8x128xf32>
    %cst_116 = arith.constant 5.000000e-01 : f32
    %287 = vector.broadcast %cst_116 : f32 to vector<8x128xf32>
    %288 = arith.mulf %287, %286 : vector<8x128xf32>
    %289 = math.tanh %288 : vector<8x128xf32>
    %cst_117 = arith.constant 5.000000e-01 : f32
    %290 = vector.broadcast %cst_117 : f32 to vector<8x128xf32>
    %291 = arith.mulf %290, %289 : vector<8x128xf32>
    %cst_118 = arith.constant 5.000000e-01 : f32
    %292 = vector.broadcast %cst_118 : f32 to vector<8x128xf32>
    %293 = arith.addf %291, %292 : vector<8x128xf32>
    %294 = arith.mulf %283, %254 : vector<8x128xf32>
    %295 = arith.mulf %275, %285 : vector<8x128xf32>
    %296 = arith.addf %294, %295 : vector<8x128xf32>
    %297 = math.tanh %296 : vector<8x128xf32>
    %298 = arith.mulf %293, %297 : vector<8x128xf32>
    %c6_119 = arith.constant 6 : index
    %c0_120 = arith.constant 0 : index
    %c0_121 = arith.constant 0 : index
    %299 = vector.load %arg5[%c6_119, %c0_120, %c0_121] : memref<16x8x128xf32, #tpu.memory_space<vmem>>, vector<1x8x128xf32>
    %300 = vector.shape_cast %299 : vector<1x8x128xf32> to vector<8x128xf32>
    %301 = vector.shape_cast %298 : vector<8x128xf32> to vector<1x8x128xf32>
    tpu.vector_store %arg5[%c6_119, %c0_120, %c0_121], %301 {strides = array<i32>} : memref<16x8x128xf32, #tpu.memory_space<vmem>>, vector<1x8x128xf32>,
    %c7 = arith.constant 7 : index
    %c0_122 = arith.constant 0 : index
    %c0_123 = arith.constant 0 : index
    %302 = vector.load %arg1[%c7, %c0_122, %c0_123] : memref<16x8x64xbf16, #tpu.memory_space<vmem>>, vector<1x8x64xbf16>
    %303 = vector.shape_cast %302 : vector<1x8x64xbf16> to vector<8x64xbf16>
    %cst_124 = arith.constant dense<0.000000e+00> : vector<8x512xf32>
    %304 = tpu.matmul %303, %3, %cst_124 {dimension_numbers = #tpu.dot_dimension_numbers<[1], [0], [0], [1], [0, 0, 1, 1], [], []>} : vector<8x64xbf16>, vector<64x512xbf16>, vector<8x512xf32> -> vector<8x512xf32>
    %305 = arith.truncf %298 : vector<8x128xf32> to vector<8x128xbf16>
    %cst_125 = arith.constant dense<0.000000e+00> : vector<8x512xf32>
    %306 = tpu.matmul %305, %4, %cst_125 {dimension_numbers = #tpu.dot_dimension_numbers<[1], [0], [0], [1], [0, 0, 1, 1], [], []>} : vector<8x128xbf16>, vector<128x512xbf16>, vector<8x512xf32> -> vector<8x512xf32>
    %307 = arith.addf %304, %306 : vector<8x512xf32>
    %308 = vector.broadcast %5 : vector<1x512xf32> to vector<8x512xf32>
    %309 = arith.addf %307, %308 : vector<8x512xf32>
    %310 = vector.extract_strided_slice %309 {offsets = [0, 0], sizes = [8, 128], strides = [1, 1]} : vector<8x512xf32> to vector<8x128xf32>
    %cst_126 = arith.constant 5.000000e-01 : f32
    %311 = vector.broadcast %cst_126 : f32 to vector<8x128xf32>
    %312 = arith.mulf %311, %310 : vector<8x128xf32>
    %313 = math.tanh %312 : vector<8x128xf32>
    %cst_127 = arith.constant 5.000000e-01 : f32
    %314 = vector.broadcast %cst_127 : f32 to vector<8x128xf32>
    %315 = arith.mulf %314, %313 : vector<8x128xf32>
    %cst_128 = arith.constant 5.000000e-01 : f32
    %316 = vector.broadcast %cst_128 : f32 to vector<8x128xf32>
    %317 = arith.addf %315, %316 : vector<8x128xf32>
    %318 = vector.extract_strided_slice %309 {offsets = [0, 128], sizes = [8, 128], strides = [1, 1]} : vector<8x512xf32> to vector<8x128xf32>
    %cst_129 = arith.constant 5.000000e-01 : f32
    %319 = vector.broadcast %cst_129 : f32 to vector<8x128xf32>
    %320 = arith.mulf %319, %318 : vector<8x128xf32>
    %321 = math.tanh %320 : vector<8x128xf32>
    %cst_130 = arith.constant 5.000000e-01 : f32
    %322 = vector.broadcast %cst_130 : f32 to vector<8x128xf32>
    %323 = arith.mulf %322, %321 : vector<8x128xf32>
    %cst_131 = arith.constant 5.000000e-01 : f32
    %324 = vector.broadcast %cst_131 : f32 to vector<8x128xf32>
    %325 = arith.addf %323, %324 : vector<8x128xf32>
    %326 = vector.extract_strided_slice %309 {offsets = [0, 256], sizes = [8, 128], strides = [1, 1]} : vector<8x512xf32> to vector<8x128xf32>
    %327 = math.tanh %326 : vector<8x128xf32>
    %328 = vector.extract_strided_slice %309 {offsets = [0, 384], sizes = [8, 128], strides = [1, 1]} : vector<8x512xf32> to vector<8x128xf32>
    %cst_132 = arith.constant 5.000000e-01 : f32
    %329 = vector.broadcast %cst_132 : f32 to vector<8x128xf32>
    %330 = arith.mulf %329, %328 : vector<8x128xf32>
    %331 = math.tanh %330 : vector<8x128xf32>
    %cst_133 = arith.constant 5.000000e-01 : f32
    %332 = vector.broadcast %cst_133 : f32 to vector<8x128xf32>
    %333 = arith.mulf %332, %331 : vector<8x128xf32>
    %cst_134 = arith.constant 5.000000e-01 : f32
    %334 = vector.broadcast %cst_134 : f32 to vector<8x128xf32>
    %335 = arith.addf %333, %334 : vector<8x128xf32>
    %336 = arith.mulf %325, %296 : vector<8x128xf32>
    %337 = arith.mulf %317, %327 : vector<8x128xf32>
    %338 = arith.addf %336, %337 : vector<8x128xf32>
    %339 = math.tanh %338 : vector<8x128xf32>
    %340 = arith.mulf %335, %339 : vector<8x128xf32>
    %c7_135 = arith.constant 7 : index
    %c0_136 = arith.constant 0 : index
    %c0_137 = arith.constant 0 : index
    %341 = vector.load %arg5[%c7_135, %c0_136, %c0_137] : memref<16x8x128xf32, #tpu.memory_space<vmem>>, vector<1x8x128xf32>
    %342 = vector.shape_cast %341 : vector<1x8x128xf32> to vector<8x128xf32>
    %343 = vector.shape_cast %340 : vector<8x128xf32> to vector<1x8x128xf32>
    tpu.vector_store %arg5[%c7_135, %c0_136, %c0_137], %343 {strides = array<i32>} : memref<16x8x128xf32, #tpu.memory_space<vmem>>, vector<1x8x128xf32>,
    %c8 = arith.constant 8 : index
    %c0_138 = arith.constant 0 : index
    %c0_139 = arith.constant 0 : index
    %344 = vector.load %arg1[%c8, %c0_138, %c0_139] : memref<16x8x64xbf16, #tpu.memory_space<vmem>>, vector<1x8x64xbf16>
    %345 = vector.shape_cast %344 : vector<1x8x64xbf16> to vector<8x64xbf16>
    %cst_140 = arith.constant dense<0.000000e+00> : vector<8x512xf32>
    %346 = tpu.matmul %345, %3, %cst_140 {dimension_numbers = #tpu.dot_dimension_numbers<[1], [0], [0], [1], [0, 0, 1, 1], [], []>} : vector<8x64xbf16>, vector<64x512xbf16>, vector<8x512xf32> -> vector<8x512xf32>
    %347 = arith.truncf %340 : vector<8x128xf32> to vector<8x128xbf16>
    %cst_141 = arith.constant dense<0.000000e+00> : vector<8x512xf32>
    %348 = tpu.matmul %347, %4, %cst_141 {dimension_numbers = #tpu.dot_dimension_numbers<[1], [0], [0], [1], [0, 0, 1, 1], [], []>} : vector<8x128xbf16>, vector<128x512xbf16>, vector<8x512xf32> -> vector<8x512xf32>
    %349 = arith.addf %346, %348 : vector<8x512xf32>
    %350 = vector.broadcast %5 : vector<1x512xf32> to vector<8x512xf32>
    %351 = arith.addf %349, %350 : vector<8x512xf32>
    %352 = vector.extract_strided_slice %351 {offsets = [0, 0], sizes = [8, 128], strides = [1, 1]} : vector<8x512xf32> to vector<8x128xf32>
    %cst_142 = arith.constant 5.000000e-01 : f32
    %353 = vector.broadcast %cst_142 : f32 to vector<8x128xf32>
    %354 = arith.mulf %353, %352 : vector<8x128xf32>
    %355 = math.tanh %354 : vector<8x128xf32>
    %cst_143 = arith.constant 5.000000e-01 : f32
    %356 = vector.broadcast %cst_143 : f32 to vector<8x128xf32>
    %357 = arith.mulf %356, %355 : vector<8x128xf32>
    %cst_144 = arith.constant 5.000000e-01 : f32
    %358 = vector.broadcast %cst_144 : f32 to vector<8x128xf32>
    %359 = arith.addf %357, %358 : vector<8x128xf32>
    %360 = vector.extract_strided_slice %351 {offsets = [0, 128], sizes = [8, 128], strides = [1, 1]} : vector<8x512xf32> to vector<8x128xf32>
    %cst_145 = arith.constant 5.000000e-01 : f32
    %361 = vector.broadcast %cst_145 : f32 to vector<8x128xf32>
    %362 = arith.mulf %361, %360 : vector<8x128xf32>
    %363 = math.tanh %362 : vector<8x128xf32>
    %cst_146 = arith.constant 5.000000e-01 : f32
    %364 = vector.broadcast %cst_146 : f32 to vector<8x128xf32>
    %365 = arith.mulf %364, %363 : vector<8x128xf32>
    %cst_147 = arith.constant 5.000000e-01 : f32
    %366 = vector.broadcast %cst_147 : f32 to vector<8x128xf32>
    %367 = arith.addf %365, %366 : vector<8x128xf32>
    %368 = vector.extract_strided_slice %351 {offsets = [0, 256], sizes = [8, 128], strides = [1, 1]} : vector<8x512xf32> to vector<8x128xf32>
    %369 = math.tanh %368 : vector<8x128xf32>
    %370 = vector.extract_strided_slice %351 {offsets = [0, 384], sizes = [8, 128], strides = [1, 1]} : vector<8x512xf32> to vector<8x128xf32>
    %cst_148 = arith.constant 5.000000e-01 : f32
    %371 = vector.broadcast %cst_148 : f32 to vector<8x128xf32>
    %372 = arith.mulf %371, %370 : vector<8x128xf32>
    %373 = math.tanh %372 : vector<8x128xf32>
    %cst_149 = arith.constant 5.000000e-01 : f32
    %374 = vector.broadcast %cst_149 : f32 to vector<8x128xf32>
    %375 = arith.mulf %374, %373 : vector<8x128xf32>
    %cst_150 = arith.constant 5.000000e-01 : f32
    %376 = vector.broadcast %cst_150 : f32 to vector<8x128xf32>
    %377 = arith.addf %375, %376 : vector<8x128xf32>
    %378 = arith.mulf %367, %338 : vector<8x128xf32>
    %379 = arith.mulf %359, %369 : vector<8x128xf32>
    %380 = arith.addf %378, %379 : vector<8x128xf32>
    %381 = math.tanh %380 : vector<8x128xf32>
    %382 = arith.mulf %377, %381 : vector<8x128xf32>
    %c8_151 = arith.constant 8 : index
    %c0_152 = arith.constant 0 : index
    %c0_153 = arith.constant 0 : index
    %383 = vector.load %arg5[%c8_151, %c0_152, %c0_153] : memref<16x8x128xf32, #tpu.memory_space<vmem>>, vector<1x8x128xf32>
    %384 = vector.shape_cast %383 : vector<1x8x128xf32> to vector<8x128xf32>
    %385 = vector.shape_cast %382 : vector<8x128xf32> to vector<1x8x128xf32>
    tpu.vector_store %arg5[%c8_151, %c0_152, %c0_153], %385 {strides = array<i32>} : memref<16x8x128xf32, #tpu.memory_space<vmem>>, vector<1x8x128xf32>,
    %c9 = arith.constant 9 : index
    %c0_154 = arith.constant 0 : index
    %c0_155 = arith.constant 0 : index
    %386 = vector.load %arg1[%c9, %c0_154, %c0_155] : memref<16x8x64xbf16, #tpu.memory_space<vmem>>, vector<1x8x64xbf16>
    %387 = vector.shape_cast %386 : vector<1x8x64xbf16> to vector<8x64xbf16>
    %cst_156 = arith.constant dense<0.000000e+00> : vector<8x512xf32>
    %388 = tpu.matmul %387, %3, %cst_156 {dimension_numbers = #tpu.dot_dimension_numbers<[1], [0], [0], [1], [0, 0, 1, 1], [], []>} : vector<8x64xbf16>, vector<64x512xbf16>, vector<8x512xf32> -> vector<8x512xf32>
    %389 = arith.truncf %382 : vector<8x128xf32> to vector<8x128xbf16>
    %cst_157 = arith.constant dense<0.000000e+00> : vector<8x512xf32>
    %390 = tpu.matmul %389, %4, %cst_157 {dimension_numbers = #tpu.dot_dimension_numbers<[1], [0], [0], [1], [0, 0, 1, 1], [], []>} : vector<8x128xbf16>, vector<128x512xbf16>, vector<8x512xf32> -> vector<8x512xf32>
    %391 = arith.addf %388, %390 : vector<8x512xf32>
    %392 = vector.broadcast %5 : vector<1x512xf32> to vector<8x512xf32>
    %393 = arith.addf %391, %392 : vector<8x512xf32>
    %394 = vector.extract_strided_slice %393 {offsets = [0, 0], sizes = [8, 128], strides = [1, 1]} : vector<8x512xf32> to vector<8x128xf32>
    %cst_158 = arith.constant 5.000000e-01 : f32
    %395 = vector.broadcast %cst_158 : f32 to vector<8x128xf32>
    %396 = arith.mulf %395, %394 : vector<8x128xf32>
    %397 = math.tanh %396 : vector<8x128xf32>
    %cst_159 = arith.constant 5.000000e-01 : f32
    %398 = vector.broadcast %cst_159 : f32 to vector<8x128xf32>
    %399 = arith.mulf %398, %397 : vector<8x128xf32>
    %cst_160 = arith.constant 5.000000e-01 : f32
    %400 = vector.broadcast %cst_160 : f32 to vector<8x128xf32>
    %401 = arith.addf %399, %400 : vector<8x128xf32>
    %402 = vector.extract_strided_slice %393 {offsets = [0, 128], sizes = [8, 128], strides = [1, 1]} : vector<8x512xf32> to vector<8x128xf32>
    %cst_161 = arith.constant 5.000000e-01 : f32
    %403 = vector.broadcast %cst_161 : f32 to vector<8x128xf32>
    %404 = arith.mulf %403, %402 : vector<8x128xf32>
    %405 = math.tanh %404 : vector<8x128xf32>
    %cst_162 = arith.constant 5.000000e-01 : f32
    %406 = vector.broadcast %cst_162 : f32 to vector<8x128xf32>
    %407 = arith.mulf %406, %405 : vector<8x128xf32>
    %cst_163 = arith.constant 5.000000e-01 : f32
    %408 = vector.broadcast %cst_163 : f32 to vector<8x128xf32>
    %409 = arith.addf %407, %408 : vector<8x128xf32>
    %410 = vector.extract_strided_slice %393 {offsets = [0, 256], sizes = [8, 128], strides = [1, 1]} : vector<8x512xf32> to vector<8x128xf32>
    %411 = math.tanh %410 : vector<8x128xf32>
    %412 = vector.extract_strided_slice %393 {offsets = [0, 384], sizes = [8, 128], strides = [1, 1]} : vector<8x512xf32> to vector<8x128xf32>
    %cst_164 = arith.constant 5.000000e-01 : f32
    %413 = vector.broadcast %cst_164 : f32 to vector<8x128xf32>
    %414 = arith.mulf %413, %412 : vector<8x128xf32>
    %415 = math.tanh %414 : vector<8x128xf32>
    %cst_165 = arith.constant 5.000000e-01 : f32
    %416 = vector.broadcast %cst_165 : f32 to vector<8x128xf32>
    %417 = arith.mulf %416, %415 : vector<8x128xf32>
    %cst_166 = arith.constant 5.000000e-01 : f32
    %418 = vector.broadcast %cst_166 : f32 to vector<8x128xf32>
    %419 = arith.addf %417, %418 : vector<8x128xf32>
    %420 = arith.mulf %409, %380 : vector<8x128xf32>
    %421 = arith.mulf %401, %411 : vector<8x128xf32>
    %422 = arith.addf %420, %421 : vector<8x128xf32>
    %423 = math.tanh %422 : vector<8x128xf32>
    %424 = arith.mulf %419, %423 : vector<8x128xf32>
    %c9_167 = arith.constant 9 : index
    %c0_168 = arith.constant 0 : index
    %c0_169 = arith.constant 0 : index
    %425 = vector.load %arg5[%c9_167, %c0_168, %c0_169] : memref<16x8x128xf32, #tpu.memory_space<vmem>>, vector<1x8x128xf32>
    %426 = vector.shape_cast %425 : vector<1x8x128xf32> to vector<8x128xf32>
    %427 = vector.shape_cast %424 : vector<8x128xf32> to vector<1x8x128xf32>
    tpu.vector_store %arg5[%c9_167, %c0_168, %c0_169], %427 {strides = array<i32>} : memref<16x8x128xf32, #tpu.memory_space<vmem>>, vector<1x8x128xf32>,
    %c10 = arith.constant 10 : index
    %c0_170 = arith.constant 0 : index
    %c0_171 = arith.constant 0 : index
    %428 = vector.load %arg1[%c10, %c0_170, %c0_171] : memref<16x8x64xbf16, #tpu.memory_space<vmem>>, vector<1x8x64xbf16>
    %429 = vector.shape_cast %428 : vector<1x8x64xbf16> to vector<8x64xbf16>
    %cst_172 = arith.constant dense<0.000000e+00> : vector<8x512xf32>
    %430 = tpu.matmul %429, %3, %cst_172 {dimension_numbers = #tpu.dot_dimension_numbers<[1], [0], [0], [1], [0, 0, 1, 1], [], []>} : vector<8x64xbf16>, vector<64x512xbf16>, vector<8x512xf32> -> vector<8x512xf32>
    %431 = arith.truncf %424 : vector<8x128xf32> to vector<8x128xbf16>
    %cst_173 = arith.constant dense<0.000000e+00> : vector<8x512xf32>
    %432 = tpu.matmul %431, %4, %cst_173 {dimension_numbers = #tpu.dot_dimension_numbers<[1], [0], [0], [1], [0, 0, 1, 1], [], []>} : vector<8x128xbf16>, vector<128x512xbf16>, vector<8x512xf32> -> vector<8x512xf32>
    %433 = arith.addf %430, %432 : vector<8x512xf32>
    %434 = vector.broadcast %5 : vector<1x512xf32> to vector<8x512xf32>
    %435 = arith.addf %433, %434 : vector<8x512xf32>
    %436 = vector.extract_strided_slice %435 {offsets = [0, 0], sizes = [8, 128], strides = [1, 1]} : vector<8x512xf32> to vector<8x128xf32>
    %cst_174 = arith.constant 5.000000e-01 : f32
    %437 = vector.broadcast %cst_174 : f32 to vector<8x128xf32>
    %438 = arith.mulf %437, %436 : vector<8x128xf32>
    %439 = math.tanh %438 : vector<8x128xf32>
    %cst_175 = arith.constant 5.000000e-01 : f32
    %440 = vector.broadcast %cst_175 : f32 to vector<8x128xf32>
    %441 = arith.mulf %440, %439 : vector<8x128xf32>
    %cst_176 = arith.constant 5.000000e-01 : f32
    %442 = vector.broadcast %cst_176 : f32 to vector<8x128xf32>
    %443 = arith.addf %441, %442 : vector<8x128xf32>
    %444 = vector.extract_strided_slice %435 {offsets = [0, 128], sizes = [8, 128], strides = [1, 1]} : vector<8x512xf32> to vector<8x128xf32>
    %cst_177 = arith.constant 5.000000e-01 : f32
    %445 = vector.broadcast %cst_177 : f32 to vector<8x128xf32>
    %446 = arith.mulf %445, %444 : vector<8x128xf32>
    %447 = math.tanh %446 : vector<8x128xf32>
    %cst_178 = arith.constant 5.000000e-01 : f32
    %448 = vector.broadcast %cst_178 : f32 to vector<8x128xf32>
    %449 = arith.mulf %448, %447 : vector<8x128xf32>
    %cst_179 = arith.constant 5.000000e-01 : f32
    %450 = vector.broadcast %cst_179 : f32 to vector<8x128xf32>
    %451 = arith.addf %449, %450 : vector<8x128xf32>
    %452 = vector.extract_strided_slice %435 {offsets = [0, 256], sizes = [8, 128], strides = [1, 1]} : vector<8x512xf32> to vector<8x128xf32>
    %453 = math.tanh %452 : vector<8x128xf32>
    %454 = vector.extract_strided_slice %435 {offsets = [0, 384], sizes = [8, 128], strides = [1, 1]} : vector<8x512xf32> to vector<8x128xf32>
    %cst_180 = arith.constant 5.000000e-01 : f32
    %455 = vector.broadcast %cst_180 : f32 to vector<8x128xf32>
    %456 = arith.mulf %455, %454 : vector<8x128xf32>
    %457 = math.tanh %456 : vector<8x128xf32>
    %cst_181 = arith.constant 5.000000e-01 : f32
    %458 = vector.broadcast %cst_181 : f32 to vector<8x128xf32>
    %459 = arith.mulf %458, %457 : vector<8x128xf32>
    %cst_182 = arith.constant 5.000000e-01 : f32
    %460 = vector.broadcast %cst_182 : f32 to vector<8x128xf32>
    %461 = arith.addf %459, %460 : vector<8x128xf32>
    %462 = arith.mulf %451, %422 : vector<8x128xf32>
    %463 = arith.mulf %443, %453 : vector<8x128xf32>
    %464 = arith.addf %462, %463 : vector<8x128xf32>
    %465 = math.tanh %464 : vector<8x128xf32>
    %466 = arith.mulf %461, %465 : vector<8x128xf32>
    %c10_183 = arith.constant 10 : index
    %c0_184 = arith.constant 0 : index
    %c0_185 = arith.constant 0 : index
    %467 = vector.load %arg5[%c10_183, %c0_184, %c0_185] : memref<16x8x128xf32, #tpu.memory_space<vmem>>, vector<1x8x128xf32>
    %468 = vector.shape_cast %467 : vector<1x8x128xf32> to vector<8x128xf32>
    %469 = vector.shape_cast %466 : vector<8x128xf32> to vector<1x8x128xf32>
    tpu.vector_store %arg5[%c10_183, %c0_184, %c0_185], %469 {strides = array<i32>} : memref<16x8x128xf32, #tpu.memory_space<vmem>>, vector<1x8x128xf32>,
    %c11 = arith.constant 11 : index
    %c0_186 = arith.constant 0 : index
    %c0_187 = arith.constant 0 : index
    %470 = vector.load %arg1[%c11, %c0_186, %c0_187] : memref<16x8x64xbf16, #tpu.memory_space<vmem>>, vector<1x8x64xbf16>
    %471 = vector.shape_cast %470 : vector<1x8x64xbf16> to vector<8x64xbf16>
    %cst_188 = arith.constant dense<0.000000e+00> : vector<8x512xf32>
    %472 = tpu.matmul %471, %3, %cst_188 {dimension_numbers = #tpu.dot_dimension_numbers<[1], [0], [0], [1], [0, 0, 1, 1], [], []>} : vector<8x64xbf16>, vector<64x512xbf16>, vector<8x512xf32> -> vector<8x512xf32>
    %473 = arith.truncf %466 : vector<8x128xf32> to vector<8x128xbf16>
    %cst_189 = arith.constant dense<0.000000e+00> : vector<8x512xf32>
    %474 = tpu.matmul %473, %4, %cst_189 {dimension_numbers = #tpu.dot_dimension_numbers<[1], [0], [0], [1], [0, 0, 1, 1], [], []>} : vector<8x128xbf16>, vector<128x512xbf16>, vector<8x512xf32> -> vector<8x512xf32>
    %475 = arith.addf %472, %474 : vector<8x512xf32>
    %476 = vector.broadcast %5 : vector<1x512xf32> to vector<8x512xf32>
    %477 = arith.addf %475, %476 : vector<8x512xf32>
    %478 = vector.extract_strided_slice %477 {offsets = [0, 0], sizes = [8, 128], strides = [1, 1]} : vector<8x512xf32> to vector<8x128xf32>
    %cst_190 = arith.constant 5.000000e-01 : f32
    %479 = vector.broadcast %cst_190 : f32 to vector<8x128xf32>
    %480 = arith.mulf %479, %478 : vector<8x128xf32>
    %481 = math.tanh %480 : vector<8x128xf32>
    %cst_191 = arith.constant 5.000000e-01 : f32
    %482 = vector.broadcast %cst_191 : f32 to vector<8x128xf32>
    %483 = arith.mulf %482, %481 : vector<8x128xf32>
    %cst_192 = arith.constant 5.000000e-01 : f32
    %484 = vector.broadcast %cst_192 : f32 to vector<8x128xf32>
    %485 = arith.addf %483, %484 : vector<8x128xf32>
    %486 = vector.extract_strided_slice %477 {offsets = [0, 128], sizes = [8, 128], strides = [1, 1]} : vector<8x512xf32> to vector<8x128xf32>
    %cst_193 = arith.constant 5.000000e-01 : f32
    %487 = vector.broadcast %cst_193 : f32 to vector<8x128xf32>
    %488 = arith.mulf %487, %486 : vector<8x128xf32>
    %489 = math.tanh %488 : vector<8x128xf32>
    %cst_194 = arith.constant 5.000000e-01 : f32
    %490 = vector.broadcast %cst_194 : f32 to vector<8x128xf32>
    %491 = arith.mulf %490, %489 : vector<8x128xf32>
    %cst_195 = arith.constant 5.000000e-01 : f32
    %492 = vector.broadcast %cst_195 : f32 to vector<8x128xf32>
    %493 = arith.addf %491, %492 : vector<8x128xf32>
    %494 = vector.extract_strided_slice %477 {offsets = [0, 256], sizes = [8, 128], strides = [1, 1]} : vector<8x512xf32> to vector<8x128xf32>
    %495 = math.tanh %494 : vector<8x128xf32>
    %496 = vector.extract_strided_slice %477 {offsets = [0, 384], sizes = [8, 128], strides = [1, 1]} : vector<8x512xf32> to vector<8x128xf32>
    %cst_196 = arith.constant 5.000000e-01 : f32
    %497 = vector.broadcast %cst_196 : f32 to vector<8x128xf32>
    %498 = arith.mulf %497, %496 : vector<8x128xf32>
    %499 = math.tanh %498 : vector<8x128xf32>
    %cst_197 = arith.constant 5.000000e-01 : f32
    %500 = vector.broadcast %cst_197 : f32 to vector<8x128xf32>
    %501 = arith.mulf %500, %499 : vector<8x128xf32>
    %cst_198 = arith.constant 5.000000e-01 : f32
    %502 = vector.broadcast %cst_198 : f32 to vector<8x128xf32>
    %503 = arith.addf %501, %502 : vector<8x128xf32>
    %504 = arith.mulf %493, %464 : vector<8x128xf32>
    %505 = arith.mulf %485, %495 : vector<8x128xf32>
    %506 = arith.addf %504, %505 : vector<8x128xf32>
    %507 = math.tanh %506 : vector<8x128xf32>
    %508 = arith.mulf %503, %507 : vector<8x128xf32>
    %c11_199 = arith.constant 11 : index
    %c0_200 = arith.constant 0 : index
    %c0_201 = arith.constant 0 : index
    %509 = vector.load %arg5[%c11_199, %c0_200, %c0_201] : memref<16x8x128xf32, #tpu.memory_space<vmem>>, vector<1x8x128xf32>
    %510 = vector.shape_cast %509 : vector<1x8x128xf32> to vector<8x128xf32>
    %511 = vector.shape_cast %508 : vector<8x128xf32> to vector<1x8x128xf32>
    tpu.vector_store %arg5[%c11_199, %c0_200, %c0_201], %511 {strides = array<i32>} : memref<16x8x128xf32, #tpu.memory_space<vmem>>, vector<1x8x128xf32>,
    %c12 = arith.constant 12 : index
    %c0_202 = arith.constant 0 : index
    %c0_203 = arith.constant 0 : index
    %512 = vector.load %arg1[%c12, %c0_202, %c0_203] : memref<16x8x64xbf16, #tpu.memory_space<vmem>>, vector<1x8x64xbf16>
    %513 = vector.shape_cast %512 : vector<1x8x64xbf16> to vector<8x64xbf16>
    %cst_204 = arith.constant dense<0.000000e+00> : vector<8x512xf32>
    %514 = tpu.matmul %513, %3, %cst_204 {dimension_numbers = #tpu.dot_dimension_numbers<[1], [0], [0], [1], [0, 0, 1, 1], [], []>} : vector<8x64xbf16>, vector<64x512xbf16>, vector<8x512xf32> -> vector<8x512xf32>
    %515 = arith.truncf %508 : vector<8x128xf32> to vector<8x128xbf16>
    %cst_205 = arith.constant dense<0.000000e+00> : vector<8x512xf32>
    %516 = tpu.matmul %515, %4, %cst_205 {dimension_numbers = #tpu.dot_dimension_numbers<[1], [0], [0], [1], [0, 0, 1, 1], [], []>} : vector<8x128xbf16>, vector<128x512xbf16>, vector<8x512xf32> -> vector<8x512xf32>
    %517 = arith.addf %514, %516 : vector<8x512xf32>
    %518 = vector.broadcast %5 : vector<1x512xf32> to vector<8x512xf32>
    %519 = arith.addf %517, %518 : vector<8x512xf32>
    %520 = vector.extract_strided_slice %519 {offsets = [0, 0], sizes = [8, 128], strides = [1, 1]} : vector<8x512xf32> to vector<8x128xf32>
    %cst_206 = arith.constant 5.000000e-01 : f32
    %521 = vector.broadcast %cst_206 : f32 to vector<8x128xf32>
    %522 = arith.mulf %521, %520 : vector<8x128xf32>
    %523 = math.tanh %522 : vector<8x128xf32>
    %cst_207 = arith.constant 5.000000e-01 : f32
    %524 = vector.broadcast %cst_207 : f32 to vector<8x128xf32>
    %525 = arith.mulf %524, %523 : vector<8x128xf32>
    %cst_208 = arith.constant 5.000000e-01 : f32
    %526 = vector.broadcast %cst_208 : f32 to vector<8x128xf32>
    %527 = arith.addf %525, %526 : vector<8x128xf32>
    %528 = vector.extract_strided_slice %519 {offsets = [0, 128], sizes = [8, 128], strides = [1, 1]} : vector<8x512xf32> to vector<8x128xf32>
    %cst_209 = arith.constant 5.000000e-01 : f32
    %529 = vector.broadcast %cst_209 : f32 to vector<8x128xf32>
    %530 = arith.mulf %529, %528 : vector<8x128xf32>
    %531 = math.tanh %530 : vector<8x128xf32>
    %cst_210 = arith.constant 5.000000e-01 : f32
    %532 = vector.broadcast %cst_210 : f32 to vector<8x128xf32>
    %533 = arith.mulf %532, %531 : vector<8x128xf32>
    %cst_211 = arith.constant 5.000000e-01 : f32
    %534 = vector.broadcast %cst_211 : f32 to vector<8x128xf32>
    %535 = arith.addf %533, %534 : vector<8x128xf32>
    %536 = vector.extract_strided_slice %519 {offsets = [0, 256], sizes = [8, 128], strides = [1, 1]} : vector<8x512xf32> to vector<8x128xf32>
    %537 = math.tanh %536 : vector<8x128xf32>
    %538 = vector.extract_strided_slice %519 {offsets = [0, 384], sizes = [8, 128], strides = [1, 1]} : vector<8x512xf32> to vector<8x128xf32>
    %cst_212 = arith.constant 5.000000e-01 : f32
    %539 = vector.broadcast %cst_212 : f32 to vector<8x128xf32>
    %540 = arith.mulf %539, %538 : vector<8x128xf32>
    %541 = math.tanh %540 : vector<8x128xf32>
    %cst_213 = arith.constant 5.000000e-01 : f32
    %542 = vector.broadcast %cst_213 : f32 to vector<8x128xf32>
    %543 = arith.mulf %542, %541 : vector<8x128xf32>
    %cst_214 = arith.constant 5.000000e-01 : f32
    %544 = vector.broadcast %cst_214 : f32 to vector<8x128xf32>
    %545 = arith.addf %543, %544 : vector<8x128xf32>
    %546 = arith.mulf %535, %506 : vector<8x128xf32>
    %547 = arith.mulf %527, %537 : vector<8x128xf32>
    %548 = arith.addf %546, %547 : vector<8x128xf32>
    %549 = math.tanh %548 : vector<8x128xf32>
    %550 = arith.mulf %545, %549 : vector<8x128xf32>
    %c12_215 = arith.constant 12 : index
    %c0_216 = arith.constant 0 : index
    %c0_217 = arith.constant 0 : index
    %551 = vector.load %arg5[%c12_215, %c0_216, %c0_217] : memref<16x8x128xf32, #tpu.memory_space<vmem>>, vector<1x8x128xf32>
    %552 = vector.shape_cast %551 : vector<1x8x128xf32> to vector<8x128xf32>
    %553 = vector.shape_cast %550 : vector<8x128xf32> to vector<1x8x128xf32>
    tpu.vector_store %arg5[%c12_215, %c0_216, %c0_217], %553 {strides = array<i32>} : memref<16x8x128xf32, #tpu.memory_space<vmem>>, vector<1x8x128xf32>,
    %c13 = arith.constant 13 : index
    %c0_218 = arith.constant 0 : index
    %c0_219 = arith.constant 0 : index
    %554 = vector.load %arg1[%c13, %c0_218, %c0_219] : memref<16x8x64xbf16, #tpu.memory_space<vmem>>, vector<1x8x64xbf16>
    %555 = vector.shape_cast %554 : vector<1x8x64xbf16> to vector<8x64xbf16>
    %cst_220 = arith.constant dense<0.000000e+00> : vector<8x512xf32>
    %556 = tpu.matmul %555, %3, %cst_220 {dimension_numbers = #tpu.dot_dimension_numbers<[1], [0], [0], [1], [0, 0, 1, 1], [], []>} : vector<8x64xbf16>, vector<64x512xbf16>, vector<8x512xf32> -> vector<8x512xf32>
    %557 = arith.truncf %550 : vector<8x128xf32> to vector<8x128xbf16>
    %cst_221 = arith.constant dense<0.000000e+00> : vector<8x512xf32>
    %558 = tpu.matmul %557, %4, %cst_221 {dimension_numbers = #tpu.dot_dimension_numbers<[1], [0], [0], [1], [0, 0, 1, 1], [], []>} : vector<8x128xbf16>, vector<128x512xbf16>, vector<8x512xf32> -> vector<8x512xf32>
    %559 = arith.addf %556, %558 : vector<8x512xf32>
    %560 = vector.broadcast %5 : vector<1x512xf32> to vector<8x512xf32>
    %561 = arith.addf %559, %560 : vector<8x512xf32>
    %562 = vector.extract_strided_slice %561 {offsets = [0, 0], sizes = [8, 128], strides = [1, 1]} : vector<8x512xf32> to vector<8x128xf32>
    %cst_222 = arith.constant 5.000000e-01 : f32
    %563 = vector.broadcast %cst_222 : f32 to vector<8x128xf32>
    %564 = arith.mulf %563, %562 : vector<8x128xf32>
    %565 = math.tanh %564 : vector<8x128xf32>
    %cst_223 = arith.constant 5.000000e-01 : f32
    %566 = vector.broadcast %cst_223 : f32 to vector<8x128xf32>
    %567 = arith.mulf %566, %565 : vector<8x128xf32>
    %cst_224 = arith.constant 5.000000e-01 : f32
    %568 = vector.broadcast %cst_224 : f32 to vector<8x128xf32>
    %569 = arith.addf %567, %568 : vector<8x128xf32>
    %570 = vector.extract_strided_slice %561 {offsets = [0, 128], sizes = [8, 128], strides = [1, 1]} : vector<8x512xf32> to vector<8x128xf32>
    %cst_225 = arith.constant 5.000000e-01 : f32
    %571 = vector.broadcast %cst_225 : f32 to vector<8x128xf32>
    %572 = arith.mulf %571, %570 : vector<8x128xf32>
    %573 = math.tanh %572 : vector<8x128xf32>
    %cst_226 = arith.constant 5.000000e-01 : f32
    %574 = vector.broadcast %cst_226 : f32 to vector<8x128xf32>
    %575 = arith.mulf %574, %573 : vector<8x128xf32>
    %cst_227 = arith.constant 5.000000e-01 : f32
    %576 = vector.broadcast %cst_227 : f32 to vector<8x128xf32>
    %577 = arith.addf %575, %576 : vector<8x128xf32>
    %578 = vector.extract_strided_slice %561 {offsets = [0, 256], sizes = [8, 128], strides = [1, 1]} : vector<8x512xf32> to vector<8x128xf32>
    %579 = math.tanh %578 : vector<8x128xf32>
    %580 = vector.extract_strided_slice %561 {offsets = [0, 384], sizes = [8, 128], strides = [1, 1]} : vector<8x512xf32> to vector<8x128xf32>
    %cst_228 = arith.constant 5.000000e-01 : f32
    %581 = vector.broadcast %cst_228 : f32 to vector<8x128xf32>
    %582 = arith.mulf %581, %580 : vector<8x128xf32>
    %583 = math.tanh %582 : vector<8x128xf32>
    %cst_229 = arith.constant 5.000000e-01 : f32
    %584 = vector.broadcast %cst_229 : f32 to vector<8x128xf32>
    %585 = arith.mulf %584, %583 : vector<8x128xf32>
    %cst_230 = arith.constant 5.000000e-01 : f32
    %586 = vector.broadcast %cst_230 : f32 to vector<8x128xf32>
    %587 = arith.addf %585, %586 : vector<8x128xf32>
    %588 = arith.mulf %577, %548 : vector<8x128xf32>
    %589 = arith.mulf %569, %579 : vector<8x128xf32>
    %590 = arith.addf %588, %589 : vector<8x128xf32>
    %591 = math.tanh %590 : vector<8x128xf32>
    %592 = arith.mulf %587, %591 : vector<8x128xf32>
    %c13_231 = arith.constant 13 : index
    %c0_232 = arith.constant 0 : index
    %c0_233 = arith.constant 0 : index
    %593 = vector.load %arg5[%c13_231, %c0_232, %c0_233] : memref<16x8x128xf32, #tpu.memory_space<vmem>>, vector<1x8x128xf32>
    %594 = vector.shape_cast %593 : vector<1x8x128xf32> to vector<8x128xf32>
    %595 = vector.shape_cast %592 : vector<8x128xf32> to vector<1x8x128xf32>
    tpu.vector_store %arg5[%c13_231, %c0_232, %c0_233], %595 {strides = array<i32>} : memref<16x8x128xf32, #tpu.memory_space<vmem>>, vector<1x8x128xf32>,
    %c14 = arith.constant 14 : index
    %c0_234 = arith.constant 0 : index
    %c0_235 = arith.constant 0 : index
    %596 = vector.load %arg1[%c14, %c0_234, %c0_235] : memref<16x8x64xbf16, #tpu.memory_space<vmem>>, vector<1x8x64xbf16>
    %597 = vector.shape_cast %596 : vector<1x8x64xbf16> to vector<8x64xbf16>
    %cst_236 = arith.constant dense<0.000000e+00> : vector<8x512xf32>
    %598 = tpu.matmul %597, %3, %cst_236 {dimension_numbers = #tpu.dot_dimension_numbers<[1], [0], [0], [1], [0, 0, 1, 1], [], []>} : vector<8x64xbf16>, vector<64x512xbf16>, vector<8x512xf32> -> vector<8x512xf32>
    %599 = arith.truncf %592 : vector<8x128xf32> to vector<8x128xbf16>
    %cst_237 = arith.constant dense<0.000000e+00> : vector<8x512xf32>
    %600 = tpu.matmul %599, %4, %cst_237 {dimension_numbers = #tpu.dot_dimension_numbers<[1], [0], [0], [1], [0, 0, 1, 1], [], []>} : vector<8x128xbf16>, vector<128x512xbf16>, vector<8x512xf32> -> vector<8x512xf32>
    %601 = arith.addf %598, %600 : vector<8x512xf32>
    %602 = vector.broadcast %5 : vector<1x512xf32> to vector<8x512xf32>
    %603 = arith.addf %601, %602 : vector<8x512xf32>
    %604 = vector.extract_strided_slice %603 {offsets = [0, 0], sizes = [8, 128], strides = [1, 1]} : vector<8x512xf32> to vector<8x128xf32>
    %cst_238 = arith.constant 5.000000e-01 : f32
    %605 = vector.broadcast %cst_238 : f32 to vector<8x128xf32>
    %606 = arith.mulf %605, %604 : vector<8x128xf32>
    %607 = math.tanh %606 : vector<8x128xf32>
    %cst_239 = arith.constant 5.000000e-01 : f32
    %608 = vector.broadcast %cst_239 : f32 to vector<8x128xf32>
    %609 = arith.mulf %608, %607 : vector<8x128xf32>
    %cst_240 = arith.constant 5.000000e-01 : f32
    %610 = vector.broadcast %cst_240 : f32 to vector<8x128xf32>
    %611 = arith.addf %609, %610 : vector<8x128xf32>
    %612 = vector.extract_strided_slice %603 {offsets = [0, 128], sizes = [8, 128], strides = [1, 1]} : vector<8x512xf32> to vector<8x128xf32>
    %cst_241 = arith.constant 5.000000e-01 : f32
    %613 = vector.broadcast %cst_241 : f32 to vector<8x128xf32>
    %614 = arith.mulf %613, %612 : vector<8x128xf32>
    %615 = math.tanh %614 : vector<8x128xf32>
    %cst_242 = arith.constant 5.000000e-01 : f32
    %616 = vector.broadcast %cst_242 : f32 to vector<8x128xf32>
    %617 = arith.mulf %616, %615 : vector<8x128xf32>
    %cst_243 = arith.constant 5.000000e-01 : f32
    %618 = vector.broadcast %cst_243 : f32 to vector<8x128xf32>
    %619 = arith.addf %617, %618 : vector<8x128xf32>
    %620 = vector.extract_strided_slice %603 {offsets = [0, 256], sizes = [8, 128], strides = [1, 1]} : vector<8x512xf32> to vector<8x128xf32>
    %621 = math.tanh %620 : vector<8x128xf32>
    %622 = vector.extract_strided_slice %603 {offsets = [0, 384], sizes = [8, 128], strides = [1, 1]} : vector<8x512xf32> to vector<8x128xf32>
    %cst_244 = arith.constant 5.000000e-01 : f32
    %623 = vector.broadcast %cst_244 : f32 to vector<8x128xf32>
    %624 = arith.mulf %623, %622 : vector<8x128xf32>
    %625 = math.tanh %624 : vector<8x128xf32>
    %cst_245 = arith.constant 5.000000e-01 : f32
    %626 = vector.broadcast %cst_245 : f32 to vector<8x128xf32>
    %627 = arith.mulf %626, %625 : vector<8x128xf32>
    %cst_246 = arith.constant 5.000000e-01 : f32
    %628 = vector.broadcast %cst_246 : f32 to vector<8x128xf32>
    %629 = arith.addf %627, %628 : vector<8x128xf32>
    %630 = arith.mulf %619, %590 : vector<8x128xf32>
    %631 = arith.mulf %611, %621 : vector<8x128xf32>
    %632 = arith.addf %630, %631 : vector<8x128xf32>
    %633 = math.tanh %632 : vector<8x128xf32>
    %634 = arith.mulf %629, %633 : vector<8x128xf32>
    %c14_247 = arith.constant 14 : index
    %c0_248 = arith.constant 0 : index
    %c0_249 = arith.constant 0 : index
    %635 = vector.load %arg5[%c14_247, %c0_248, %c0_249] : memref<16x8x128xf32, #tpu.memory_space<vmem>>, vector<1x8x128xf32>
    %636 = vector.shape_cast %635 : vector<1x8x128xf32> to vector<8x128xf32>
    %637 = vector.shape_cast %634 : vector<8x128xf32> to vector<1x8x128xf32>
    tpu.vector_store %arg5[%c14_247, %c0_248, %c0_249], %637 {strides = array<i32>} : memref<16x8x128xf32, #tpu.memory_space<vmem>>, vector<1x8x128xf32>,
    %c15 = arith.constant 15 : index
    %c0_250 = arith.constant 0 : index
    %c0_251 = arith.constant 0 : index
    %638 = vector.load %arg1[%c15, %c0_250, %c0_251] : memref<16x8x64xbf16, #tpu.memory_space<vmem>>, vector<1x8x64xbf16>
    %639 = vector.shape_cast %638 : vector<1x8x64xbf16> to vector<8x64xbf16>
    %cst_252 = arith.constant dense<0.000000e+00> : vector<8x512xf32>
    %640 = tpu.matmul %639, %3, %cst_252 {dimension_numbers = #tpu.dot_dimension_numbers<[1], [0], [0], [1], [0, 0, 1, 1], [], []>} : vector<8x64xbf16>, vector<64x512xbf16>, vector<8x512xf32> -> vector<8x512xf32>
    %641 = arith.truncf %634 : vector<8x128xf32> to vector<8x128xbf16>
    %cst_253 = arith.constant dense<0.000000e+00> : vector<8x512xf32>
    %642 = tpu.matmul %641, %4, %cst_253 {dimension_numbers = #tpu.dot_dimension_numbers<[1], [0], [0], [1], [0, 0, 1, 1], [], []>} : vector<8x128xbf16>, vector<128x512xbf16>, vector<8x512xf32> -> vector<8x512xf32>
    %643 = arith.addf %640, %642 : vector<8x512xf32>
    %644 = vector.broadcast %5 : vector<1x512xf32> to vector<8x512xf32>
    %645 = arith.addf %643, %644 : vector<8x512xf32>
    %646 = vector.extract_strided_slice %645 {offsets = [0, 0], sizes = [8, 128], strides = [1, 1]} : vector<8x512xf32> to vector<8x128xf32>
    %cst_254 = arith.constant 5.000000e-01 : f32
    %647 = vector.broadcast %cst_254 : f32 to vector<8x128xf32>
    %648 = arith.mulf %647, %646 : vector<8x128xf32>
    %649 = math.tanh %648 : vector<8x128xf32>
    %cst_255 = arith.constant 5.000000e-01 : f32
    %650 = vector.broadcast %cst_255 : f32 to vector<8x128xf32>
    %651 = arith.mulf %650, %649 : vector<8x128xf32>
    %cst_256 = arith.constant 5.000000e-01 : f32
    %652 = vector.broadcast %cst_256 : f32 to vector<8x128xf32>
    %653 = arith.addf %651, %652 : vector<8x128xf32>
    %654 = vector.extract_strided_slice %645 {offsets = [0, 128], sizes = [8, 128], strides = [1, 1]} : vector<8x512xf32> to vector<8x128xf32>
    %cst_257 = arith.constant 5.000000e-01 : f32
    %655 = vector.broadcast %cst_257 : f32 to vector<8x128xf32>
    %656 = arith.mulf %655, %654 : vector<8x128xf32>
    %657 = math.tanh %656 : vector<8x128xf32>
    %cst_258 = arith.constant 5.000000e-01 : f32
    %658 = vector.broadcast %cst_258 : f32 to vector<8x128xf32>
    %659 = arith.mulf %658, %657 : vector<8x128xf32>
    %cst_259 = arith.constant 5.000000e-01 : f32
    %660 = vector.broadcast %cst_259 : f32 to vector<8x128xf32>
    %661 = arith.addf %659, %660 : vector<8x128xf32>
    %662 = vector.extract_strided_slice %645 {offsets = [0, 256], sizes = [8, 128], strides = [1, 1]} : vector<8x512xf32> to vector<8x128xf32>
    %663 = math.tanh %662 : vector<8x128xf32>
    %664 = vector.extract_strided_slice %645 {offsets = [0, 384], sizes = [8, 128], strides = [1, 1]} : vector<8x512xf32> to vector<8x128xf32>
    %cst_260 = arith.constant 5.000000e-01 : f32
    %665 = vector.broadcast %cst_260 : f32 to vector<8x128xf32>
    %666 = arith.mulf %665, %664 : vector<8x128xf32>
    %667 = math.tanh %666 : vector<8x128xf32>
    %cst_261 = arith.constant 5.000000e-01 : f32
    %668 = vector.broadcast %cst_261 : f32 to vector<8x128xf32>
    %669 = arith.mulf %668, %667 : vector<8x128xf32>
    %cst_262 = arith.constant 5.000000e-01 : f32
    %670 = vector.broadcast %cst_262 : f32 to vector<8x128xf32>
    %671 = arith.addf %669, %670 : vector<8x128xf32>
    %672 = arith.mulf %661, %632 : vector<8x128xf32>
    %673 = arith.mulf %653, %663 : vector<8x128xf32>
    %674 = arith.addf %672, %673 : vector<8x128xf32>
    %675 = math.tanh %674 : vector<8x128xf32>
    %676 = arith.mulf %671, %675 : vector<8x128xf32>
    %c15_263 = arith.constant 15 : index
    %c0_264 = arith.constant 0 : index
    %c0_265 = arith.constant 0 : index
    %677 = vector.load %arg5[%c15_263, %c0_264, %c0_265] : memref<16x8x128xf32, #tpu.memory_space<vmem>>, vector<1x8x128xf32>
    %678 = vector.shape_cast %677 : vector<1x8x128xf32> to vector<8x128xf32>
    %679 = vector.shape_cast %676 : vector<8x128xf32> to vector<1x8x128xf32>
    tpu.vector_store %arg5[%c15_263, %c0_264, %c0_265], %679 {strides = array<i32>} : memref<16x8x128xf32, #tpu.memory_space<vmem>>, vector<1x8x128xf32>,
    %c0_266 = arith.constant 0 : index
    %c0_267 = arith.constant 0 : index
    %680 = vector.load %arg6[%c0_266, %c0_267] : memref<8x128xf32, #tpu.memory_space<vmem>>, vector<8x128xf32>
    tpu.vector_store %arg6[%c0_266, %c0_267], %676 {strides = array<i32>} : memref<8x128xf32, #tpu.memory_space<vmem>>, vector<8x128xf32>,
    %c0_268 = arith.constant 0 : index
    %c0_269 = arith.constant 0 : index
    %681 = vector.load %arg7[%c0_268, %c0_269] : memref<8x128xf32, #tpu.memory_space<vmem>>, vector<8x128xf32>
    tpu.vector_store %arg7[%c0_268, %c0_269], %674 {strides = array<i32>} : memref<8x128xf32, #tpu.memory_space<vmem>>, vector<8x128xf32>,
    return
  }
  func.func @transform_0(%arg0: i32) -> (i32, i32, i32) {
    %c0_i32 = arith.constant 0 : i32
    %c0_i32_0 = arith.constant 0 : i32
    %c0_i32_1 = arith.constant 0 : i32
    return %arg0, %c0_i32, %c0_i32_0 : i32, i32, i32
  }
  func.func @transform_1(%arg0: i32) -> (i32, i32) {
    %c0_i32 = arith.constant 0 : i32
    %c0_i32_0 = arith.constant 0 : i32
    %c0_i32_1 = arith.constant 0 : i32
    return %c0_i32, %c0_i32_0 : i32, i32
  }
  func.func @transform_2(%arg0: i32) -> (i32, i32) {
    %c0_i32 = arith.constant 0 : i32
    %c0_i32_0 = arith.constant 0 : i32
    %c0_i32_1 = arith.constant 0 : i32
    return %c0_i32, %c0_i32_0 : i32, i32
  }
  func.func @transform_3(%arg0: i32) -> (i32, i32) {
    %c0_i32 = arith.constant 0 : i32
    %c0_i32_0 = arith.constant 0 : i32
    %c0_i32_1 = arith.constant 0 : i32
    return %c0_i32, %c0_i32_0 : i32, i32
  }
  func.func @transform_4(%arg0: i32) -> (i32, i32, i32) {
    %c0_i32 = arith.constant 0 : i32
    %c0_i32_0 = arith.constant 0 : i32
    %c0_i32_1 = arith.constant 0 : i32
    return %arg0, %c0_i32, %c0_i32_0 : i32, i32, i32
  }
  func.func @transform_5(%arg0: i32) -> (i32, i32) {
    %c0_i32 = arith.constant 0 : i32
    %c0_i32_0 = arith.constant 0 : i32
    %c0_i32_1 = arith.constant 0 : i32
    return %c0_i32, %c0_i32_0 : i32, i32
  }
  func.func @transform_6(%arg0: i32) -> (i32, i32) {
    %c0_i32 = arith.constant 0 : i32
    %c0_i32_0 = arith.constant 0 : i32
    %c0_i32_1 = arith.constant 0 : i32
    return %c0_i32, %c0_i32_0 : i32, i32
  }
}

</mosaic_0001>

<llo_original>
// kernel: rnn_forward.1
$region0: #{rnn_forward.1}
  #allocation0 [shape = 'u32[]', space=smem, size = 0x4, offset = 0x4, fixed_abs, tag = 'smem constant byte address 0x4 - core index']
  #allocation1 [shape = 'u32[144,128]{1,0:T(1,128)}', space=vmem, size = 0x12000, scoped, tag = 'internal scratch']
  %s0 = inlined_call_operand.vmem [shape: bf16[16,8,64], index: 0, kind: input, shape index: {}]
  %s1 = inlined_call_operand.vmem [shape: bf16[64,512], index: 1, kind: input, shape index: {}]
  %s2 = inlined_call_operand.vmem [shape: bf16[128,512], index: 2, kind: input, shape index: {}]
  %s3 = inlined_call_operand.vmem [shape: f32[1,512], index: 3, kind: input, shape index: {}]
  %s4 = inlined_call_operand.vmem [shape: f32[16,8,128], index: 4, kind: output, shape index: {0}]
  %s5 = inlined_call_operand.hbm [shape: f32[8,128], index: 5, kind: output, shape index: {1}]
  %s6 = inlined_call_operand.hbm [shape: f32[8,128], index: 6, kind: output, shape index: {2}]
  %7 = xla_tuple %s4, %s5, %s6
  %s8 = sld [smem:[#allocation0]]
  $region46: #{rnn_forward.1} parent=0
    _
  %s10 = ssub.s32 1, %s8
  %s11 = scalar_select 0, %s10, %s8
  $region1: #{rnn_forward.1} parent=0
    #allocation2 [shape = 'u8[4096]{0}', space=vmem, size = 0x1000, scoped, tag = 'output window, operand 1, single buffered']
    #allocation3 [shape = 's32[1]{0}', space=sflag, size = 0x4, scoped, tag = 'scoped memory for rnn_forward.1']
    #allocation4 [shape = 'u8[4096]{0}', space=vmem, size = 0x1000, scoped, tag = 'output window, operand 2, single buffered']
    #allocation5 [shape = 's32[1]{0}', space=sflag, size = 0x4, scoped, tag = 'scoped memory for rnn_forward.1']
    %12 = vsyncpa [#allocation3], 0
    %13 = vsyncpa [#allocation5], 0
    // Predicated region
    $region2: #{rnn_forward.1} parent=1 // pred_check
      _
    $region3: #{rnn_forward.1} parent=1 // pred_check_branch
      %15 = sbr.rel (0) target = $region5
    $region4: #{rnn_forward.1} parent=1 // pred_region
      _
    $region5: #{rnn_forward.1} parent=1 // pred_fallthru
      _
    // Predicated region
    $region6: #{rnn_forward.1} parent=1 // pred_check
      _
    $region7: #{rnn_forward.1} parent=1 // pred_check_branch
      %17 = sbr.rel (0) target = $region9
    $region8: #{rnn_forward.1} parent=1 // pred_region
      _
    $region9: #{rnn_forward.1} parent=1 // pred_fallthru
      _
    // Predicated region
    $region10: #{rnn_forward.1} parent=1 // pred_check
      _
    $region11: #{rnn_forward.1} parent=1 // pred_check_branch
      %19 = sbr.rel (0) target = $region13
    $region12: #{rnn_forward.1} parent=1 // pred_region
      _
    $region13: #{rnn_forward.1} parent=1 // pred_fallthru
      _
    // Predicated region
    $region14: #{rnn_forward.1} parent=1 // pred_check
      _
    $region15: #{rnn_forward.1} parent=1 // pred_check_branch
      %21 = sbr.rel (0) target = $region17
    $region16: #{rnn_forward.1} parent=1 // pred_region
      _
    $region17: #{rnn_forward.1} parent=1 // pred_fallthru
      _
    %p23 = scmp.eq.s32.totalorder 0, 0
    // Predicated region
    $region18: #{rnn_forward.1} parent=1 // pred_check
      %p24 = pneg %p23
    $region19: #{rnn_forward.1} parent=1 // pred_check_branch
      %26 = sbr.rel (%p24) target = $region21
    $region20: #{rnn_forward.1} parent=1 // pred_region
      %27 = vst [vmem:[#allocation2] sm:$0xff] 0.0
      %28 = vst [vmem:[#allocation4] sm:$0xff] 0.0
    $region21: #{rnn_forward.1} parent=1 // pred_fallthru
      _
    %v29 = vld [vmem:[%s1] sm:$0xff]
    %v30 = vld [vmem:[%s1 + $0x8] sm:$0xff]
    %v31 = vld [vmem:[%s1 + $0x10] sm:$0xff]
    %v32 = vld [vmem:[%s1 + $0x18] sm:$0xff]
    %v33 = vld [vmem:[%s1 + $0x20] sm:$0xff]
    %v34 = vld [vmem:[%s1 + $0x28] sm:$0xff]
    %v35 = vld [vmem:[%s1 + $0x30] sm:$0xff]
    %v36 = vld [vmem:[%s1 + $0x38] sm:$0xff]
    %v37 = vld [vmem:[%s1 + $0x40] sm:$0xff]
    %v38 = vld [vmem:[%s1 + $0x48] sm:$0xff]
    %v39 = vld [vmem:[%s1 + $0x50] sm:$0xff]
    %v40 = vld [vmem:[%s1 + $0x58] sm:$0xff]
    %v41 = vld [vmem:[%s1 + $0x60] sm:$0xff]
    %v42 = vld [vmem:[%s1 + $0x68] sm:$0xff]
    %v43 = vld [vmem:[%s1 + $0x70] sm:$0xff]
    %v44 = vld [vmem:[%s1 + $0x78] sm:$0xff]
    %v45 = vld [vmem:[%s2] sm:$0xff]
    %v46 = vld [vmem:[%s2 + $0x8] sm:$0xff]
    %v47 = vld [vmem:[%s2 + $0x10] sm:$0xff]
    %v48 = vld [vmem:[%s2 + $0x18] sm:$0xff]
    %v49 = vld [vmem:[%s2 + $0x20] sm:$0xff]
    %v50 = vld [vmem:[%s2 + $0x28] sm:$0xff]
    %v51 = vld [vmem:[%s2 + $0x30] sm:$0xff]
    %v52 = vld [vmem:[%s2 + $0x38] sm:$0xff]
    %v53 = vld [vmem:[%s2 + $0x40] sm:$0xff]
    %v54 = vld [vmem:[%s2 + $0x48] sm:$0xff]
    %v55 = vld [vmem:[%s2 + $0x50] sm:$0xff]
    %v56 = vld [vmem:[%s2 + $0x58] sm:$0xff]
    %v57 = vld [vmem:[%s2 + $0x60] sm:$0xff]
    %v58 = vld [vmem:[%s2 + $0x68] sm:$0xff]
    %v59 = vld [vmem:[%s2 + $0x70] sm:$0xff]
    %v60 = vld [vmem:[%s2 + $0x78] sm:$0xff]
    %v61 = vld [vmem:[%s2 + $0x80] sm:$0xff]
    %v62 = vld [vmem:[%s2 + $0x88] sm:$0xff]
    %v63 = vld [vmem:[%s2 + $0x90] sm:$0xff]
    %v64 = vld [vmem:[%s2 + $0x98] sm:$0xff]
    %v65 = vld [vmem:[%s2 + $0xa0] sm:$0xff]
    %v66 = vld [vmem:[%s2 + $0xa8] sm:$0xff]
    %v67 = vld [vmem:[%s2 + $0xb0] sm:$0xff]
    %v68 = vld [vmem:[%s2 + $0xb8] sm:$0xff]
    %v69 = vld [vmem:[%s2 + $0xc0] sm:$0xff]
    %v70 = vld [vmem:[%s2 + $0xc8] sm:$0xff]
    %v71 = vld [vmem:[%s2 + $0xd0] sm:$0xff]
    %v72 = vld [vmem:[%s2 + $0xd8] sm:$0xff]
    %v73 = vld [vmem:[%s2 + $0xe0] sm:$0xff]
    %v74 = vld [vmem:[%s2 + $0xe8] sm:$0xff]
    %v75 = vld [vmem:[%s2 + $0xf0] sm:$0xff]
    %v76 = vld [vmem:[%s2 + $0xf8] sm:$0xff]
    %v77 = vld [vmem:[%s3] sm:$0xf]
    %v78 = vld [vmem:[#allocation2] sm:$0xff]
    %v79 = vld [vmem:[#allocation4] sm:$0xff]
    %v80 = vld [vmem:[%s0] sm:$0xf]
    %v81 = vpack.c.bf16 %v78, %v78
    %v114 = vunpack.c.l.b16 %v45
    %v115 = vunpack.c.h.b16 %v45
    %v116 = vunpack.c.l.b16 %v46
    %v117 = vunpack.c.h.b16 %v46
    %v118 = vunpack.c.l.b16 %v47
    %v119 = vunpack.c.h.b16 %v47
    %v120 = vunpack.c.l.b16 %v48
    %v121 = vunpack.c.h.b16 %v48
    %v122 = vunpack.c.l.b16 %v49
    %v123 = vunpack.c.h.b16 %v49
    %v124 = vunpack.c.l.b16 %v50
    %v125 = vunpack.c.h.b16 %v50
    %v126 = vunpack.c.l.b16 %v51
    %v127 = vunpack.c.h.b16 %v51
    %v128 = vunpack.c.l.b16 %v52
    %v129 = vunpack.c.h.b16 %v52
    %v130 = vunpack.c.l.b16 %v53
    %v131 = vunpack.c.h.b16 %v53
    %v132 = vunpack.c.l.b16 %v54
    %v133 = vunpack.c.h.b16 %v54
    %v134 = vunpack.c.l.b16 %v55
    %v135 = vunpack.c.h.b16 %v55
    %v136 = vunpack.c.l.b16 %v56
    %v137 = vunpack.c.h.b16 %v56
    %v138 = vunpack.c.l.b16 %v57
    %v139 = vunpack.c.h.b16 %v57
    %v140 = vunpack.c.l.b16 %v58
    %v141 = vunpack.c.h.b16 %v58
    %v142 = vunpack.c.l.b16 %v59
    %v143 = vunpack.c.h.b16 %v59
    %v144 = vunpack.c.l.b16 %v60
    %v145 = vunpack.c.h.b16 %v60
    %v146 = vunpack.c.l.b16 %v61
    %v147 = vunpack.c.h.b16 %v61
    %v148 = vunpack.c.l.b16 %v62
    %v149 = vunpack.c.h.b16 %v62
    %v150 = vunpack.c.l.b16 %v63
    %v151 = vunpack.c.h.b16 %v63
    %v152 = vunpack.c.l.b16 %v64
    %v153 = vunpack.c.h.b16 %v64
    %v154 = vunpack.c.l.b16 %v65
    %v155 = vunpack.c.h.b16 %v65
    %v156 = vunpack.c.l.b16 %v66
    %v157 = vunpack.c.h.b16 %v66
    %v158 = vunpack.c.l.b16 %v67
    %v159 = vunpack.c.h.b16 %v67
    %v160 = vunpack.c.l.b16 %v68
    %v161 = vunpack.c.h.b16 %v68
    %v162 = vunpack.c.l.b16 %v69
    %v163 = vunpack.c.h.b16 %v69
    %v164 = vunpack.c.l.b16 %v70
    %v165 = vunpack.c.h.b16 %v70
    %v166 = vunpack.c.l.b16 %v71
    %v167 = vunpack.c.h.b16 %v71
    %v168 = vunpack.c.l.b16 %v72
    %v169 = vunpack.c.h.b16 %v72
    %v170 = vunpack.c.l.b16 %v73
    %v171 = vunpack.c.h.b16 %v73
    %v172 = vunpack.c.l.b16 %v74
    %v173 = vunpack.c.h.b16 %v74
    %v174 = vunpack.c.l.b16 %v75
    %v175 = vunpack.c.h.b16 %v75
    %v176 = vunpack.c.l.b16 %v76
    %v177 = vunpack.c.h.b16 %v76
    %v178 = vpack.c.b16 %v118, %v114
    %v179 = vpack.c.b16 %v119, %v115
    %v180 = vpack.c.b16 %v120, %v116
    %v181 = vpack.c.b16 %v121, %v117
    %v182 = vpack.c.b16 %v126, %v122
    %v183 = vpack.c.b16 %v127, %v123
    %v184 = vpack.c.b16 %v128, %v124
    %v185 = vpack.c.b16 %v129, %v125
    %v186 = vpack.c.b16 %v134, %v130
    %v187 = vpack.c.b16 %v135, %v131
    %v188 = vpack.c.b16 %v136, %v132
    %v189 = vpack.c.b16 %v137, %v133
    %v190 = vpack.c.b16 %v142, %v138
    %v191 = vpack.c.b16 %v143, %v139
    %v192 = vpack.c.b16 %v144, %v140
    %v193 = vpack.c.b16 %v145, %v141
    %v194 = vpack.c.b16 %v150, %v146
    %v195 = vpack.c.b16 %v151, %v147
    %v196 = vpack.c.b16 %v152, %v148
    %v197 = vpack.c.b16 %v153, %v149
    %v198 = vpack.c.b16 %v158, %v154
    %v199 = vpack.c.b16 %v159, %v155
    %v200 = vpack.c.b16 %v160, %v156
    %v201 = vpack.c.b16 %v161, %v157
    %v202 = vpack.c.b16 %v166, %v162
    %v203 = vpack.c.b16 %v167, %v163
    %v204 = vpack.c.b16 %v168, %v164
    %v205 = vpack.c.b16 %v169, %v165
    %v206 = vpack.c.b16 %v174, %v170
    %v207 = vpack.c.b16 %v175, %v171
    %v208 = vpack.c.b16 %v176, %v172
    %v209 = vpack.c.b16 %v177, %v173
    %242 = vmatprep.subr.bf16.mxu0 %v179
    %243 = vmatpush1.bf16.msra.mxu0 %v178
    %244 = vmatprep.subr.bf16.mxu0 %v183
    %245 = vmatpush1.bf16.msra.mxu0 %v182
    %246 = vmatprep.subr.bf16.mxu0 %v187
    %247 = vmatpush1.bf16.msra.mxu0 %v186
    %248 = vmatprep.subr.bf16.mxu0 %v191
    %249 = vmatpush1.bf16.msra.mxu0 %v190
    %250 = vmatprep.subr.bf16.mxu0 %v195
    %251 = vmatpush1.bf16.msra.mxu0 %v194
    %252 = vmatprep.subr.bf16.mxu0 %v199
    %253 = vmatpush1.bf16.msra.mxu0 %v198
    %254 = vmatprep.subr.bf16.mxu0 %v203
    %255 = vmatpush1.bf16.msra.mxu0 %v202
    %256 = vmatprep.subr.bf16.mxu0 %v207
    %257 = vmatpush1.bf16.msra.mxu0 %v206
    %258 = vmatprep.subr.bf16.mxu0 0
    %259 = vmatpush1.bf16.msra.mxu0 0
    %260 = vmatprep.subr.bf16.mxu0 0
    %261 = vmatpush1.bf16.msra.mxu0 0
    %262 = vmatprep.subr.bf16.mxu0 0
    %263 = vmatpush1.bf16.msra.mxu0 0
    %264 = vmatprep.subr.bf16.mxu0 0
    %265 = vmatpush1.bf16.msra.mxu0 0
    %266 = vmatprep.subr.bf16.mxu0 0
    %267 = vmatpush1.bf16.msra.mxu0 0
    %268 = vmatprep.subr.bf16.mxu0 0
    %269 = vmatpush1.bf16.msra.mxu0 0
    %270 = vmatprep.subr.bf16.mxu0 0
    %271 = vmatpush1.bf16.msra.mxu0 0
    %272 = vmatprep.subr.bf16.mxu0 0
    %273 = vmatpush1.bf16.msra.mxu0 0
    %274 = vmatprep.mubr.bf16.mxu0 0
    %275 = vmatmul.mubr.bf16.gmra.mrb[0].mxu0 %v81
    %v276 = vpop.f32.mrb[0].mxu0
    %v277 = vadd.f32 0.0, %v276
    %v278 = vpop.f32.mrb[0].mxu0
    %v279 = vadd.f32 0.0, %v278
    %v280 = vpop.f32.mrb[0].mxu0
    %v281 = vpop.f32.mrb[0].mxu0
    %282 = vdwg.mxu0
    %283 = vmatprep.subr.bf16.mxu0 %v181
    %284 = vmatpush1.bf16.msra.mxu0 %v180
    %285 = vmatprep.subr.bf16.mxu0 %v185
    %286 = vmatpush1.bf16.msra.mxu0 %v184
    %287 = vmatprep.subr.bf16.mxu0 %v189
    %288 = vmatpush1.bf16.msra.mxu0 %v188
    %289 = vmatprep.subr.bf16.mxu0 %v193
    %290 = vmatpush1.bf16.msra.mxu0 %v192
    %291 = vmatprep.subr.bf16.mxu0 %v197
    %292 = vmatpush1.bf16.msra.mxu0 %v196
    %293 = vmatprep.subr.bf16.mxu0 %v201
    %294 = vmatpush1.bf16.msra.mxu0 %v200
    %295 = vmatprep.subr.bf16.mxu0 %v205
    %296 = vmatpush1.bf16.msra.mxu0 %v204
    %297 = vmatprep.subr.bf16.mxu0 %v209
    %298 = vmatpush1.bf16.msra.mxu0 %v208
    %299 = vmatprep.subr.bf16.mxu0 0
    %300 = vmatpush1.bf16.msra.mxu0 0
    %301 = vmatprep.subr.bf16.mxu0 0
    %302 = vmatpush1.bf16.msra.mxu0 0
    %303 = vmatprep.subr.bf16.mxu0 0
    %304 = vmatpush1.bf16.msra.mxu0 0
    %305 = vmatprep.subr.bf16.mxu0 0
    %306 = vmatpush1.bf16.msra.mxu0 0
    %307 = vmatprep.subr.bf16.mxu0 0
    %308 = vmatpush1.bf16.msra.mxu0 0
    %309 = vmatprep.subr.bf16.mxu0 0
    %310 = vmatpush1.bf16.msra.mxu0 0
    %311 = vmatprep.subr.bf16.mxu0 0
    %312 = vmatpush1.bf16.msra.mxu0 0
    %313 = vmatprep.subr.bf16.mxu0 0
    %314 = vmatpush1.bf16.msra.mxu0 0
    %315 = vmatprep.mubr.bf16.mxu0 0
    %316 = vmatmul.mubr.bf16.gmra.mrb[0].mxu0 %v81
    %v317 = vpop.f32.mrb[0].mxu0
    %v318 = vadd.f32 0.0, %v317
    %v319 = vpop.f32.mrb[0].mxu0
    %v320 = vadd.f32 0.0, %v319
    %v321 = vpop.f32.mrb[0].mxu0
    %v322 = vpop.f32.mrb[0].mxu0
    %323 = vdwg.mxu0
    %v340 = vunpack.c.l.b16 %v29
    %v341 = vunpack.c.h.b16 %v29
    %v342 = vunpack.c.l.b16 %v30
    %v343 = vunpack.c.h.b16 %v30
    %v344 = vunpack.c.l.b16 %v31
    %v345 = vunpack.c.h.b16 %v31
    %v346 = vunpack.c.l.b16 %v32
    %v347 = vunpack.c.h.b16 %v32
    %v348 = vunpack.c.l.b16 %v33
    %v349 = vunpack.c.h.b16 %v33
    %v350 = vunpack.c.l.b16 %v34
    %v351 = vunpack.c.h.b16 %v34
    %v352 = vunpack.c.l.b16 %v35
    %v353 = vunpack.c.h.b16 %v35
    %v354 = vunpack.c.l.b16 %v36
    %v355 = vunpack.c.h.b16 %v36
    %v356 = vunpack.c.l.b16 %v37
    %v357 = vunpack.c.h.b16 %v37
    %v358 = vunpack.c.l.b16 %v38
    %v359 = vunpack.c.h.b16 %v38
    %v360 = vunpack.c.l.b16 %v39
    %v361 = vunpack.c.h.b16 %v39
    %v362 = vunpack.c.l.b16 %v40
    %v363 = vunpack.c.h.b16 %v40
    %v364 = vunpack.c.l.b16 %v41
    %v365 = vunpack.c.h.b16 %v41
    %v366 = vunpack.c.l.b16 %v42
    %v367 = vunpack.c.h.b16 %v42
    %v368 = vunpack.c.l.b16 %v43
    %v369 = vunpack.c.h.b16 %v43
    %v370 = vunpack.c.l.b16 %v44
    %v371 = vunpack.c.h.b16 %v44
    %v372 = vpack.c.b16 %v344, %v340
    %v373 = vpack.c.b16 %v345, %v341
    %v374 = vpack.c.b16 %v346, %v342
    %v375 = vpack.c.b16 %v347, %v343
    %v376 = vpack.c.b16 %v352, %v348
    %v377 = vpack.c.b16 %v353, %v349
    %v378 = vpack.c.b16 %v354, %v350
    %v379 = vpack.c.b16 %v355, %v351
    %v380 = vpack.c.b16 %v360, %v356
    %v381 = vpack.c.b16 %v361, %v357
    %v382 = vpack.c.b16 %v362, %v358
    %v383 = vpack.c.b16 %v363, %v359
    %v384 = vpack.c.b16 %v368, %v364
    %v385 = vpack.c.b16 %v369, %v365
    %v386 = vpack.c.b16 %v370, %v366
    %v387 = vpack.c.b16 %v371, %v367
    %vm404 = vcmask 523264
    %v406 = vsel %vm404, %v80, 0
    %408 = vmatprep.subr.bf16.mxu0 %v373
    %409 = vmatpush1.bf16.msra.mxu0 %v372
    %410 = vmatprep.subr.bf16.mxu0 %v377
    %411 = vmatpush1.bf16.msra.mxu0 %v376
    %412 = vmatprep.subr.bf16.mxu0 %v381
    %413 = vmatpush1.bf16.msra.mxu0 %v380
    %414 = vmatprep.subr.bf16.mxu0 %v385
    %415 = vmatpush1.bf16.msra.mxu0 %v384
    %416 = vmatprep.subr.bf16.mxu0 0
    %417 = vmatpush1.bf16.msra.mxu0 0
    %418 = vmatprep.subr.bf16.mxu0 0
    %419 = vmatpush1.bf16.msra.mxu0 0
    %420 = vmatprep.subr.bf16.mxu0 0
    %421 = vmatpush1.bf16.msra.mxu0 0
    %422 = vmatprep.subr.bf16.mxu0 0
    %423 = vmatpush1.bf16.msra.mxu0 0
    %424 = vmatprep.subr.bf16.mxu0 0
    %425 = vmatpush1.bf16.msra.mxu0 0
    %426 = vmatprep.subr.bf16.mxu0 0
    %427 = vmatpush1.bf16.msra.mxu0 0
    %428 = vmatprep.subr.bf16.mxu0 0
    %429 = vmatpush1.bf16.msra.mxu0 0
    %430 = vmatprep.subr.bf16.mxu0 0
    %431 = vmatpush1.bf16.msra.mxu0 0
    %432 = vmatprep.subr.bf16.mxu0 0
    %433 = vmatpush1.bf16.msra.mxu0 0
    %434 = vmatprep.subr.bf16.mxu0 0
    %435 = vmatpush1.bf16.msra.mxu0 0
    %436 = vmatprep.subr.bf16.mxu0 0
    %437 = vmatpush1.bf16.msra.mxu0 0
    %438 = vmatprep.subr.bf16.mxu0 0
    %439 = vmatpush1.bf16.msra.mxu0 0
    %440 = vmatprep.mubr.bf16.mxu0 0
    %441 = vmatmul.mubr.bf16.gmra.mrb[0].mxu0 %v406
    %v442 = vpop.f32.mrb[0].mxu0
    %v443 = vadd.f32 %v277, %v442
    %v444 = vpop.f32.mrb[0].mxu0
    %v445 = vadd.f32 %v279, %v444
    %v446 = vpop.f32.mrb[0].mxu0
    %v447 = vpop.f32.mrb[0].mxu0
    %448 = vdwg.mxu0
    %449 = vmatprep.subr.bf16.mxu0 %v375
    %450 = vmatpush1.bf16.msra.mxu0 %v374
    %451 = vmatprep.subr.bf16.mxu0 %v379
    %452 = vmatpush1.bf16.msra.mxu0 %v378
    %453 = vmatprep.subr.bf16.mxu0 %v383
    %454 = vmatpush1.bf16.msra.mxu0 %v382
    %455 = vmatprep.subr.bf16.mxu0 %v387
    %456 = vmatpush1.bf16.msra.mxu0 %v386
    %457 = vmatprep.subr.bf16.mxu0 0
    %458 = vmatpush1.bf16.msra.mxu0 0
    %459 = vmatprep.subr.bf16.mxu0 0
    %460 = vmatpush1.bf16.msra.mxu0 0
    %461 = vmatprep.subr.bf16.mxu0 0
    %462 = vmatpush1.bf16.msra.mxu0 0
    %463 = vmatprep.subr.bf16.mxu0 0
    %464 = vmatpush1.bf16.msra.mxu0 0
    %465 = vmatprep.subr.bf16.mxu0 0
    %466 = vmatpush1.bf16.msra.mxu0 0
    %467 = vmatprep.subr.bf16.mxu0 0
    %468 = vmatpush1.bf16.msra.mxu0 0
    %469 = vmatprep.subr.bf16.mxu0 0
    %470 = vmatpush1.bf16.msra.mxu0 0
    %471 = vmatprep.subr.bf16.mxu0 0
    %472 = vmatpush1.bf16.msra.mxu0 0
    %473 = vmatprep.subr.bf16.mxu0 0
    %474 = vmatpush1.bf16.msra.mxu0 0
    %475 = vmatprep.subr.bf16.mxu0 0
    %476 = vmatpush1.bf16.msra.mxu0 0
    %477 = vmatprep.subr.bf16.mxu0 0
    %478 = vmatpush1.bf16.msra.mxu0 0
    %479 = vmatprep.subr.bf16.mxu0 0
    %480 = vmatpush1.bf16.msra.mxu0 0
    %481 = vmatprep.mubr.bf16.mxu0 0
    %482 = vmatmul.mubr.bf16.gmra.mrb[0].mxu0 %v406
    %v483 = vpop.f32.mrb[0].mxu0
    %v484 = vadd.f32 %v318, %v483
    %v485 = vpop.f32.mrb[0].mxu0
    %v486 = vadd.f32 %v320, %v485
    %v487 = vpop.f32.mrb[0].mxu0
    %v488 = vpop.f32.mrb[0].mxu0
    %489 = vdwg.mxu0
    %v491 = vlaneseq
    %v492 = vshrl.u32 %v491, 7
    %v493 = vsub.s32 0, %v492
    %v494 = vrot.slane %v77, %v493
    %v495 = vlaneseq
    %v496 = vshrl.u32 %v495, 7
    %v497 = vsub.s32 1, %v496
    %v498 = vrot.slane %v77, %v497
    %v499 = vlaneseq
    %v500 = vshrl.u32 %v499, 7
    %v501 = vsub.s32 2, %v500
    %v502 = vrot.slane %v77, %v501
    %v503 = vlaneseq
    %v504 = vshrl.u32 %v503, 7
    %v505 = vsub.s32 3, %v504
    %v506 = vrot.slane %v77, %v505
    %v511 = vadd.f32 %v443, %v494
    %v512 = vadd.f32 %v445, %v498
    %v513 = vadd.f32 %v484, %v502
    %v514 = vadd.f32 %v486, %v506
    %v515 = vmul.f32 %v511, 0.5
    %v516 = vtanh.pop %v515
    %v517 = vmul.f32 %v516, 0.5
    %v518 = vadd.f32 %v517, 0.5
    %v519 = vmul.f32 %v512, 0.5
    %v520 = vtanh.pop %v519
    %v521 = vmul.f32 %v520, 0.5
    %v522 = vadd.f32 %v521, 0.5
    %v523 = vtanh.pop %v513
    %v524 = vmul.f32 %v514, 0.5
    %v525 = vtanh.pop %v524
    %v526 = vmul.f32 %v525, 0.5
    %v527 = vadd.f32 %v526, 0.5
    %v528 = vmul.f32 %v522, %v79
    %v529 = vmul.f32 %v518, %v523
    %v530 = vadd.f32 %v528, %v529
    %v531 = vtanh.pop %v530
    %v532 = vmul.f32 %v527, %v531
    %533 = vst [vmem:[%s4] sm:$0xff] %v532
    %s534 = scalar_lea.vmem %s0, 4
    %v535 = vld [vmem:[%s534] sm:$0xf]
    %v536 = vpack.c.bf16 %v532, %v532
    %537 = vmatprep.subr.bf16.mxu0 %v179
    %538 = vmatpush1.bf16.msra.mxu0 %v178
    %539 = vmatprep.subr.bf16.mxu0 %v183
    %540 = vmatpush1.bf16.msra.mxu0 %v182
    %541 = vmatprep.subr.bf16.mxu0 %v187
    %542 = vmatpush1.bf16.msra.mxu0 %v186
    %543 = vmatprep.subr.bf16.mxu0 %v191
    %544 = vmatpush1.bf16.msra.mxu0 %v190
    %545 = vmatprep.subr.bf16.mxu0 %v195
    %546 = vmatpush1.bf16.msra.mxu0 %v194
    %547 = vmatprep.subr.bf16.mxu0 %v199
    %548 = vmatpush1.bf16.msra.mxu0 %v198
    %549 = vmatprep.subr.bf16.mxu0 %v203
    %550 = vmatpush1.bf16.msra.mxu0 %v202
    %551 = vmatprep.subr.bf16.mxu0 %v207
    %552 = vmatpush1.bf16.msra.mxu0 %v206
    %553 = vmatprep.subr.bf16.mxu0 0
    %554 = vmatpush1.bf16.msra.mxu0 0
    %555 = vmatprep.subr.bf16.mxu0 0
    %556 = vmatpush1.bf16.msra.mxu0 0
    %557 = vmatprep.subr.bf16.mxu0 0
    %558 = vmatpush1.bf16.msra.mxu0 0
    %559 = vmatprep.subr.bf16.mxu0 0
    %560 = vmatpush1.bf16.msra.mxu0 0
    %561 = vmatprep.subr.bf16.mxu0 0
    %562 = vmatpush1.bf16.msra.mxu0 0
    %563 = vmatprep.subr.bf16.mxu0 0
    %564 = vmatpush1.bf16.msra.mxu0 0
    %565 = vmatprep.subr.bf16.mxu0 0
    %566 = vmatpush1.bf16.msra.mxu0 0
    %567 = vmatprep.subr.bf16.mxu0 0
    %568 = vmatpush1.bf16.msra.mxu0 0
    %569 = vmatprep.mubr.bf16.mxu0 0
    %570 = vmatmul.mubr.bf16.gmra.mrb[0].mxu0 %v536
    %v571 = vpop.f32.mrb[0].mxu0
    %v572 = vadd.f32 0.0, %v571
    %v573 = vpop.f32.mrb[0].mxu0
    %v574 = vadd.f32 0.0, %v573
    %v575 = vpop.f32.mrb[0].mxu0
    %v576 = vpop.f32.mrb[0].mxu0
    %577 = vdwg.mxu0
    %578 = vmatprep.subr.bf16.mxu0 %v181
    %579 = vmatpush1.bf16.msra.mxu0 %v180
    %580 = vmatprep.subr.bf16.mxu0 %v185
    %581 = vmatpush1.bf16.msra.mxu0 %v184
    %582 = vmatprep.subr.bf16.mxu0 %v189
    %583 = vmatpush1.bf16.msra.mxu0 %v188
    %584 = vmatprep.subr.bf16.mxu0 %v193
    %585 = vmatpush1.bf16.msra.mxu0 %v192
    %586 = vmatprep.subr.bf16.mxu0 %v197
    %587 = vmatpush1.bf16.msra.mxu0 %v196
    %588 = vmatprep.subr.bf16.mxu0 %v201
    %589 = vmatpush1.bf16.msra.mxu0 %v200
    %590 = vmatprep.subr.bf16.mxu0 %v205
    %591 = vmatpush1.bf16.msra.mxu0 %v204
    %592 = vmatprep.subr.bf16.mxu0 %v209
    %593 = vmatpush1.bf16.msra.mxu0 %v208
    %594 = vmatprep.subr.bf16.mxu0 0
    %595 = vmatpush1.bf16.msra.mxu0 0
    %596 = vmatprep.subr.bf16.mxu0 0
    %597 = vmatpush1.bf16.msra.mxu0 0
    %598 = vmatprep.subr.bf16.mxu0 0
    %599 = vmatpush1.bf16.msra.mxu0 0
    %600 = vmatprep.subr.bf16.mxu0 0
    %601 = vmatpush1.bf16.msra.mxu0 0
    %602 = vmatprep.subr.bf16.mxu0 0
    %603 = vmatpush1.bf16.msra.mxu0 0
    %604 = vmatprep.subr.bf16.mxu0 0
    %605 = vmatpush1.bf16.msra.mxu0 0
    %606 = vmatprep.subr.bf16.mxu0 0
    %607 = vmatpush1.bf16.msra.mxu0 0
    %608 = vmatprep.subr.bf16.mxu0 0
    %609 = vmatpush1.bf16.msra.mxu0 0
    %610 = vmatprep.mubr.bf16.mxu0 0
    %611 = vmatmul.mubr.bf16.gmra.mrb[0].mxu0 %v536
    %v612 = vpop.f32.mrb[0].mxu0
    %v613 = vadd.f32 0.0, %v612
    %v614 = vpop.f32.mrb[0].mxu0
    %v615 = vadd.f32 0.0, %v614
    %v616 = vpop.f32.mrb[0].mxu0
    %v617 = vpop.f32.mrb[0].mxu0
    %618 = vdwg.mxu0
    %v620 = vsel %vm404, %v535, 0
    %622 = vmatprep.subr.bf16.mxu0 %v373
    %623 = vmatpush1.bf16.msra.mxu0 %v372
    %624 = vmatprep.subr.bf16.mxu0 %v377
    %625 = vmatpush1.bf16.msra.mxu0 %v376
    %626 = vmatprep.subr.bf16.mxu0 %v381
    %627 = vmatpush1.bf16.msra.mxu0 %v380
    %628 = vmatprep.subr.bf16.mxu0 %v385
    %629 = vmatpush1.bf16.msra.mxu0 %v384
    %630 = vmatprep.subr.bf16.mxu0 0
    %631 = vmatpush1.bf16.msra.mxu0 0
    %632 = vmatprep.subr.bf16.mxu0 0
    %633 = vmatpush1.bf16.msra.mxu0 0
    %634 = vmatprep.subr.bf16.mxu0 0
    %635 = vmatpush1.bf16.msra.mxu0 0
    %636 = vmatprep.subr.bf16.mxu0 0
    %637 = vmatpush1.bf16.msra.mxu0 0
    %638 = vmatprep.subr.bf16.mxu0 0
    %639 = vmatpush1.bf16.msra.mxu0 0
    %640 = vmatprep.subr.bf16.mxu0 0
    %641 = vmatpush1.bf16.msra.mxu0 0
    %642 = vmatprep.subr.bf16.mxu0 0
    %643 = vmatpush1.bf16.msra.mxu0 0
    %644 = vmatprep.subr.bf16.mxu0 0
    %645 = vmatpush1.bf16.msra.mxu0 0
    %646 = vmatprep.subr.bf16.mxu0 0
    %647 = vmatpush1.bf16.msra.mxu0 0
    %648 = vmatprep.subr.bf16.mxu0 0
    %649 = vmatpush1.bf16.msra.mxu0 0
    %650 = vmatprep.subr.bf16.mxu0 0
    %651 = vmatpush1.bf16.msra.mxu0 0
    %652 = vmatprep.subr.bf16.mxu0 0
    %653 = vmatpush1.bf16.msra.mxu0 0
    %654 = vmatprep.mubr.bf16.mxu0 0
    %655 = vmatmul.mubr.bf16.gmra.mrb[0].mxu0 %v620
    %v656 = vpop.f32.mrb[0].mxu0
    %v657 = vadd.f32 %v572, %v656
    %v658 = vpop.f32.mrb[0].mxu0
    %v659 = vadd.f32 %v574, %v658
    %v660 = vpop.f32.mrb[0].mxu0
    %v661 = vpop.f32.mrb[0].mxu0
    %662 = vdwg.mxu0
    %663 = vmatprep.subr.bf16.mxu0 %v375
    %664 = vmatpush1.bf16.msra.mxu0 %v374
    %665 = vmatprep.subr.bf16.mxu0 %v379
    %666 = vmatpush1.bf16.msra.mxu0 %v378
    %667 = vmatprep.subr.bf16.mxu0 %v383
    %668 = vmatpush1.bf16.msra.mxu0 %v382
    %669 = vmatprep.subr.bf16.mxu0 %v387
    %670 = vmatpush1.bf16.msra.mxu0 %v386
    %671 = vmatprep.subr.bf16.mxu0 0
    %672 = vmatpush1.bf16.msra.mxu0 0
    %673 = vmatprep.subr.bf16.mxu0 0
    %674 = vmatpush1.bf16.msra.mxu0 0
    %675 = vmatprep.subr.bf16.mxu0 0
    %676 = vmatpush1.bf16.msra.mxu0 0
    %677 = vmatprep.subr.bf16.mxu0 0
    %678 = vmatpush1.bf16.msra.mxu0 0
    %679 = vmatprep.subr.bf16.mxu0 0
    %680 = vmatpush1.bf16.msra.mxu0 0
    %681 = vmatprep.subr.bf16.mxu0 0
    %682 = vmatpush1.bf16.msra.mxu0 0
    %683 = vmatprep.subr.bf16.mxu0 0
    %684 = vmatpush1.bf16.msra.mxu0 0
    %685 = vmatprep.subr.bf16.mxu0 0
    %686 = vmatpush1.bf16.msra.mxu0 0
    %687 = vmatprep.subr.bf16.mxu0 0
    %688 = vmatpush1.bf16.msra.mxu0 0
    %689 = vmatprep.subr.bf16.mxu0 0
    %690 = vmatpush1.bf16.msra.mxu0 0
    %691 = vmatprep.subr.bf16.mxu0 0
    %692 = vmatpush1.bf16.msra.mxu0 0
    %693 = vmatprep.subr.bf16.mxu0 0
    %694 = vmatpush1.bf16.msra.mxu0 0
    %695 = vmatprep.mubr.bf16.mxu0 0
    %696 = vmatmul.mubr.bf16.gmra.mrb[0].mxu0 %v620
    %v697 = vpop.f32.mrb[0].mxu0
    %v698 = vadd.f32 %v613, %v697
    %v699 = vpop.f32.mrb[0].mxu0
    %v700 = vadd.f32 %v615, %v699
    %v701 = vpop.f32.mrb[0].mxu0
    %v702 = vpop.f32.mrb[0].mxu0
    %703 = vdwg.mxu0
    %v704 = vadd.f32 %v657, %v494
    %v705 = vadd.f32 %v659, %v498
    %v706 = vadd.f32 %v698, %v502
    %v707 = vadd.f32 %v700, %v506
    %v708 = vmul.f32 %v704, 0.5
    %v709 = vtanh.pop %v708
    %v710 = vmul.f32 %v709, 0.5
    %v711 = vadd.f32 %v710, 0.5
    %v712 = vmul.f32 %v705, 0.5
    %v713 = vtanh.pop %v712
    %v714 = vmul.f32 %v713, 0.5
    %v715 = vadd.f32 %v714, 0.5
    %v716 = vtanh.pop %v706
    %v717 = vmul.f32 %v707, 0.5
    %v718 = vtanh.pop %v717
    %v719 = vmul.f32 %v718, 0.5
    %v720 = vadd.f32 %v719, 0.5
    %v721 = vmul.f32 %v715, %v530
    %v722 = vmul.f32 %v711, %v716
    %v723 = vadd.f32 %v721, %v722
    %v724 = vtanh.pop %v723
    %v725 = vmul.f32 %v720, %v724
    %s726 = scalar_lea.vmem %s4, 8
    %727 = vst [vmem:[%s726] sm:$0xff] %v725
    %s728 = scalar_lea.vmem %s0, 8
    %v729 = vld [vmem:[%s728] sm:$0xf]
    %v730 = vpack.c.bf16 %v725, %v725
    %731 = vmatprep.subr.bf16.mxu0 %v179
    %732 = vmatpush1.bf16.msra.mxu0 %v178
    %733 = vmatprep.subr.bf16.mxu0 %v183
    %734 = vmatpush1.bf16.msra.mxu0 %v182
    %735 = vmatprep.subr.bf16.mxu0 %v187
    %736 = vmatpush1.bf16.msra.mxu0 %v186
    %737 = vmatprep.subr.bf16.mxu0 %v191
    %738 = vmatpush1.bf16.msra.mxu0 %v190
    %739 = vmatprep.subr.bf16.mxu0 %v195
    %740 = vmatpush1.bf16.msra.mxu0 %v194
    %741 = vmatprep.subr.bf16.mxu0 %v199
    %742 = vmatpush1.bf16.msra.mxu0 %v198
    %743 = vmatprep.subr.bf16.mxu0 %v203
    %744 = vmatpush1.bf16.msra.mxu0 %v202
    %745 = vmatprep.subr.bf16.mxu0 %v207
    %746 = vmatpush1.bf16.msra.mxu0 %v206
    %747 = vmatprep.subr.bf16.mxu0 0
    %748 = vmatpush1.bf16.msra.mxu0 0
    %749 = vmatprep.subr.bf16.mxu0 0
    %750 = vmatpush1.bf16.msra.mxu0 0
    %751 = vmatprep.subr.bf16.mxu0 0
    %752 = vmatpush1.bf16.msra.mxu0 0
    %753 = vmatprep.subr.bf16.mxu0 0
    %754 = vmatpush1.bf16.msra.mxu0 0
    %755 = vmatprep.subr.bf16.mxu0 0
    %756 = vmatpush1.bf16.msra.mxu0 0
    %757 = vmatprep.subr.bf16.mxu0 0
    %758 = vmatpush1.bf16.msra.mxu0 0
    %759 = vmatprep.subr.bf16.mxu0 0
    %760 = vmatpush1.bf16.msra.mxu0 0
    %761 = vmatprep.subr.bf16.mxu0 0
    %762 = vmatpush1.bf16.msra.mxu0 0
    %763 = vmatprep.mubr.bf16.mxu0 0
    %764 = vmatmul.mubr.bf16.gmra.mrb[0].mxu0 %v730
    %v765 = vpop.f32.mrb[0].mxu0
    %v766 = vadd.f32 0.0, %v765
    %v767 = vpop.f32.mrb[0].mxu0
    %v768 = vadd.f32 0.0, %v767
    %v769 = vpop.f32.mrb[0].mxu0
    %v770 = vpop.f32.mrb[0].mxu0
    %771 = vdwg.mxu0
    %772 = vmatprep.subr.bf16.mxu0 %v181
    %773 = vmatpush1.bf16.msra.mxu0 %v180
    %774 = vmatprep.subr.bf16.mxu0 %v185
    %775 = vmatpush1.bf16.msra.mxu0 %v184
    %776 = vmatprep.subr.bf16.mxu0 %v189
    %777 = vmatpush1.bf16.msra.mxu0 %v188
    %778 = vmatprep.subr.bf16.mxu0 %v193
    %779 = vmatpush1.bf16.msra.mxu0 %v192
    %780 = vmatprep.subr.bf16.mxu0 %v197
    %781 = vmatpush1.bf16.msra.mxu0 %v196
    %782 = vmatprep.subr.bf16.mxu0 %v201
    %783 = vmatpush1.bf16.msra.mxu0 %v200
    %784 = vmatprep.subr.bf16.mxu0 %v205
    %785 = vmatpush1.bf16.msra.mxu0 %v204
    %786 = vmatprep.subr.bf16.mxu0 %v209
    %787 = vmatpush1.bf16.msra.mxu0 %v208
    %788 = vmatprep.subr.bf16.mxu0 0
    %789 = vmatpush1.bf16.msra.mxu0 0
    %790 = vmatprep.subr.bf16.mxu0 0
    %791 = vmatpush1.bf16.msra.mxu0 0
    %792 = vmatprep.subr.bf16.mxu0 0
    %793 = vmatpush1.bf16.msra.mxu0 0
    %794 = vmatprep.subr.bf16.mxu0 0
    %795 = vmatpush1.bf16.msra.mxu0 0
    %796 = vmatprep.subr.bf16.mxu0 0
    %797 = vmatpush1.bf16.msra.mxu0 0
    %798 = vmatprep.subr.bf16.mxu0 0
    %799 = vmatpush1.bf16.msra.mxu0 0
    %800 = vmatprep.subr.bf16.mxu0 0
    %801 = vmatpush1.bf16.msra.mxu0 0
    %802 = vmatprep.subr.bf16.mxu0 0
    %803 = vmatpush1.bf16.msra.mxu0 0
    %804 = vmatprep.mubr.bf16.mxu0 0
    %805 = vmatmul.mubr.bf16.gmra.mrb[0].mxu0 %v730
    %v806 = vpop.f32.mrb[0].mxu0
    %v807 = vadd.f32 0.0, %v806
    %v808 = vpop.f32.mrb[0].mxu0
    %v809 = vadd.f32 0.0, %v808
    %v810 = vpop.f32.mrb[0].mxu0
    %v811 = vpop.f32.mrb[0].mxu0
    %812 = vdwg.mxu0
    %v814 = vsel %vm404, %v729, 0
    %816 = vmatprep.subr.bf16.mxu0 %v373
    %817 = vmatpush1.bf16.msra.mxu0 %v372
    %818 = vmatprep.subr.bf16.mxu0 %v377
    %819 = vmatpush1.bf16.msra.mxu0 %v376
    %820 = vmatprep.subr.bf16.mxu0 %v381
    %821 = vmatpush1.bf16.msra.mxu0 %v380
    %822 = vmatprep.subr.bf16.mxu0 %v385
    %823 = vmatpush1.bf16.msra.mxu0 %v384
    %824 = vmatprep.subr.bf16.mxu0 0
    %825 = vmatpush1.bf16.msra.mxu0 0
    %826 = vmatprep.subr.bf16.mxu0 0
    %827 = vmatpush1.bf16.msra.mxu0 0
    %828 = vmatprep.subr.bf16.mxu0 0
    %829 = vmatpush1.bf16.msra.mxu0 0
    %830 = vmatprep.subr.bf16.mxu0 0
    %831 = vmatpush1.bf16.msra.mxu0 0
    %832 = vmatprep.subr.bf16.mxu0 0
    %833 = vmatpush1.bf16.msra.mxu0 0
    %834 = vmatprep.subr.bf16.mxu0 0
    %835 = vmatpush1.bf16.msra.mxu0 0
    %836 = vmatprep.subr.bf16.mxu0 0
    %837 = vmatpush1.bf16.msra.mxu0 0
    %838 = vmatprep.subr.bf16.mxu0 0
    %839 = vmatpush1.bf16.msra.mxu0 0
    %840 = vmatprep.subr.bf16.mxu0 0
    %841 = vmatpush1.bf16.msra.mxu0 0
    %842 = vmatprep.subr.bf16.mxu0 0
    %843 = vmatpush1.bf16.msra.mxu0 0
    %844 = vmatprep.subr.bf16.mxu0 0
    %845 = vmatpush1.bf16.msra.mxu0 0
    %846 = vmatprep.subr.bf16.mxu0 0
    %847 = vmatpush1.bf16.msra.mxu0 0
    %848 = vmatprep.mubr.bf16.mxu0 0
    %849 = vmatmul.mubr.bf16.gmra.mrb[0].mxu0 %v814
    %v850 = vpop.f32.mrb[0].mxu0
    %v851 = vadd.f32 %v766, %v850
    %v852 = vpop.f32.mrb[0].mxu0
    %v853 = vadd.f32 %v768, %v852
    %v854 = vpop.f32.mrb[0].mxu0
    %v855 = vpop.f32.mrb[0].mxu0
    %856 = vdwg.mxu0
    %857 = vmatprep.subr.bf16.mxu0 %v375
    %858 = vmatpush1.bf16.msra.mxu0 %v374
    %859 = vmatprep.subr.bf16.mxu0 %v379
    %860 = vmatpush1.bf16.msra.mxu0 %v378
    %861 = vmatprep.subr.bf16.mxu0 %v383
    %862 = vmatpush1.bf16.msra.mxu0 %v382
    %863 = vmatprep.subr.bf16.mxu0 %v387
    %864 = vmatpush1.bf16.msra.mxu0 %v386
    %865 = vmatprep.subr.bf16.mxu0 0
    %866 = vmatpush1.bf16.msra.mxu0 0
    %867 = vmatprep.subr.bf16.mxu0 0
    %868 = vmatpush1.bf16.msra.mxu0 0
    %869 = vmatprep.subr.bf16.mxu0 0
    %870 = vmatpush1.bf16.msra.mxu0 0
    %871 = vmatprep.subr.bf16.mxu0 0
    %872 = vmatpush1.bf16.msra.mxu0 0
    %873 = vmatprep.subr.bf16.mxu0 0
    %874 = vmatpush1.bf16.msra.mxu0 0
    %875 = vmatprep.subr.bf16.mxu0 0
    %876 = vmatpush1.bf16.msra.mxu0 0
    %877 = vmatprep.subr.bf16.mxu0 0
    %878 = vmatpush1.bf16.msra.mxu0 0
    %879 = vmatprep.subr.bf16.mxu0 0
    %880 = vmatpush1.bf16.msra.mxu0 0
    %881 = vmatprep.subr.bf16.mxu0 0
    %882 = vmatpush1.bf16.msra.mxu0 0
    %883 = vmatprep.subr.bf16.mxu0 0
    %884 = vmatpush1.bf16.msra.mxu0 0
    %885 = vmatprep.subr.bf16.mxu0 0
    %886 = vmatpush1.bf16.msra.mxu0 0
    %887 = vmatprep.subr.bf16.mxu0 0
    %888 = vmatpush1.bf16.msra.mxu0 0
    %889 = vmatprep.mubr.bf16.mxu0 0
    %890 = vmatmul.mubr.bf16.gmra.mrb[0].mxu0 %v814
    %v891 = vpop.f32.mrb[0].mxu0
    %v892 = vadd.f32 %v807, %v891
    %v893 = vpop.f32.mrb[0].mxu0
    %v894 = vadd.f32 %v809, %v893
    %v895 = vpop.f32.mrb[0].mxu0
    %v896 = vpop.f32.mrb[0].mxu0
    %897 = vdwg.mxu0
    %v898 = vadd.f32 %v851, %v494
    %v899 = vadd.f32 %v853, %v498
    %v900 = vadd.f32 %v892, %v502
    %v901 = vadd.f32 %v894, %v506
    %v902 = vmul.f32 %v898, 0.5
    %v903 = vtanh.pop %v902
    %v904 = vmul.f32 %v903, 0.5
    %v905 = vadd.f32 %v904, 0.5
    %v906 = vmul.f32 %v899, 0.5
    %v907 = vtanh.pop %v906
    %v908 = vmul.f32 %v907, 0.5
    %v909 = vadd.f32 %v908, 0.5
    %v910 = vtanh.pop %v900
    %v911 = vmul.f32 %v901, 0.5
    %v912 = vtanh.pop %v911
    %v913 = vmul.f32 %v912, 0.5
    %v914 = vadd.f32 %v913, 0.5
    %v915 = vmul.f32 %v909, %v723
    %v916 = vmul.f32 %v905, %v910
    %v917 = vadd.f32 %v915, %v916
    %v918 = vtanh.pop %v917
    %v919 = vmul.f32 %v914, %v918
    %s920 = scalar_lea.vmem %s4, 16
    %921 = vst [vmem:[%s920] sm:$0xff] %v919
    %s922 = scalar_lea.vmem %s0, 12
    %v923 = vld [vmem:[%s922] sm:$0xf]
    %v924 = vpack.c.bf16 %v919, %v919
    %925 = vmatprep.subr.bf16.mxu0 %v179
    %926 = vmatpush1.bf16.msra.mxu0 %v178
    %927 = vmatprep.subr.bf16.mxu0 %v183
    %928 = vmatpush1.bf16.msra.mxu0 %v182
    %929 = vmatprep.subr.bf16.mxu0 %v187
    %930 = vmatpush1.bf16.msra.mxu0 %v186
    %931 = vmatprep.subr.bf16.mxu0 %v191
    %932 = vmatpush1.bf16.msra.mxu0 %v190
    %933 = vmatprep.subr.bf16.mxu0 %v195
    %934 = vmatpush1.bf16.msra.mxu0 %v194
    %935 = vmatprep.subr.bf16.mxu0 %v199
    %936 = vmatpush1.bf16.msra.mxu0 %v198
    %937 = vmatprep.subr.bf16.mxu0 %v203
    %938 = vmatpush1.bf16.msra.mxu0 %v202
    %939 = vmatprep.subr.bf16.mxu0 %v207
    %940 = vmatpush1.bf16.msra.mxu0 %v206
    %941 = vmatprep.subr.bf16.mxu0 0
    %942 = vmatpush1.bf16.msra.mxu0 0
    %943 = vmatprep.subr.bf16.mxu0 0
    %944 = vmatpush1.bf16.msra.mxu0 0
    %945 = vmatprep.subr.bf16.mxu0 0
    %946 = vmatpush1.bf16.msra.mxu0 0
    %947 = vmatprep.subr.bf16.mxu0 0
    %948 = vmatpush1.bf16.msra.mxu0 0
    %949 = vmatprep.subr.bf16.mxu0 0
    %950 = vmatpush1.bf16.msra.mxu0 0
    %951 = vmatprep.subr.bf16.mxu0 0
    %952 = vmatpush1.bf16.msra.mxu0 0
    %953 = vmatprep.subr.bf16.mxu0 0
    %954 = vmatpush1.bf16.msra.mxu0 0
    %955 = vmatprep.subr.bf16.mxu0 0
    %956 = vmatpush1.bf16.msra.mxu0 0
    %957 = vmatprep.mubr.bf16.mxu0 0
    %958 = vmatmul.mubr.bf16.gmra.mrb[0].mxu0 %v924
    %v959 = vpop.f32.mrb[0].mxu0
    %v960 = vadd.f32 0.0, %v959
    %v961 = vpop.f32.mrb[0].mxu0
    %v962 = vadd.f32 0.0, %v961
    %v963 = vpop.f32.mrb[0].mxu0
    %v964 = vpop.f32.mrb[0].mxu0
    %965 = vdwg.mxu0
    %966 = vmatprep.subr.bf16.mxu0 %v181
    %967 = vmatpush1.bf16.msra.mxu0 %v180
    %968 = vmatprep.subr.bf16.mxu0 %v185
    %969 = vmatpush1.bf16.msra.mxu0 %v184
    %970 = vmatprep.subr.bf16.mxu0 %v189
    %971 = vmatpush1.bf16.msra.mxu0 %v188
    %972 = vmatprep.subr.bf16.mxu0 %v193
    %973 = vmatpush1.bf16.msra.mxu0 %v192
    %974 = vmatprep.subr.bf16.mxu0 %v197
    %975 = vmatpush1.bf16.msra.mxu0 %v196
    %976 = vmatprep.subr.bf16.mxu0 %v201
    %977 = vmatpush1.bf16.msra.mxu0 %v200
    %978 = vmatprep.subr.bf16.mxu0 %v205
    %979 = vmatpush1.bf16.msra.mxu0 %v204
    %980 = vmatprep.subr.bf16.mxu0 %v209
    %981 = vmatpush1.bf16.msra.mxu0 %v208
    %982 = vmatprep.subr.bf16.mxu0 0
    %983 = vmatpush1.bf16.msra.mxu0 0
    %984 = vmatprep.subr.bf16.mxu0 0
    %985 = vmatpush1.bf16.msra.mxu0 0
    %986 = vmatprep.subr.bf16.mxu0 0
    %987 = vmatpush1.bf16.msra.mxu0 0
    %988 = vmatprep.subr.bf16.mxu0 0
    %989 = vmatpush1.bf16.msra.mxu0 0
    %990 = vmatprep.subr.bf16.mxu0 0
    %991 = vmatpush1.bf16.msra.mxu0 0
    %992 = vmatprep.subr.bf16.mxu0 0
    %993 = vmatpush1.bf16.msra.mxu0 0
    %994 = vmatprep.subr.bf16.mxu0 0
    %995 = vmatpush1.bf16.msra.mxu0 0
    %996 = vmatprep.subr.bf16.mxu0 0
    %997 = vmatpush1.bf16.msra.mxu0 0
    %998 = vmatprep.mubr.bf16.mxu0 0
    %999 = vmatmul.mubr.bf16.gmra.mrb[0].mxu0 %v924
    %v1000 = vpop.f32.mrb[0].mxu0
    %v1001 = vadd.f32 0.0, %v1000
    %v1002 = vpop.f32.mrb[0].mxu0
    %v1003 = vadd.f32 0.0, %v1002
    %v1004 = vpop.f32.mrb[0].mxu0
    %v1005 = vpop.f32.mrb[0].mxu0
    %1006 = vdwg.mxu0
    %v1008 = vsel %vm404, %v923, 0
    %1010 = vmatprep.subr.bf16.mxu0 %v373
    %1011 = vmatpush1.bf16.msra.mxu0 %v372
    %1012 = vmatprep.subr.bf16.mxu0 %v377
    %1013 = vmatpush1.bf16.msra.mxu0 %v376
    %1014 = vmatprep.subr.bf16.mxu0 %v381
    %1015 = vmatpush1.bf16.msra.mxu0 %v380
    %1016 = vmatprep.subr.bf16.mxu0 %v385
    %1017 = vmatpush1.bf16.msra.mxu0 %v384
    %1018 = vmatprep.subr.bf16.mxu0 0
    %1019 = vmatpush1.bf16.msra.mxu0 0
    %1020 = vmatprep.subr.bf16.mxu0 0
    %1021 = vmatpush1.bf16.msra.mxu0 0
    %1022 = vmatprep.subr.bf16.mxu0 0
    %1023 = vmatpush1.bf16.msra.mxu0 0
    %1024 = vmatprep.subr.bf16.mxu0 0
    %1025 = vmatpush1.bf16.msra.mxu0 0
    %1026 = vmatprep.subr.bf16.mxu0 0
    %1027 = vmatpush1.bf16.msra.mxu0 0
    %1028 = vmatprep.subr.bf16.mxu0 0
    %1029 = vmatpush1.bf16.msra.mxu0 0
    %1030 = vmatprep.subr.bf16.mxu0 0
    %1031 = vmatpush1.bf16.msra.mxu0 0
    %1032 = vmatprep.subr.bf16.mxu0 0
    %1033 = vmatpush1.bf16.msra.mxu0 0
    %1034 = vmatprep.subr.bf16.mxu0 0
    %1035 = vmatpush1.bf16.msra.mxu0 0
    %1036 = vmatprep.subr.bf16.mxu0 0
    %1037 = vmatpush1.bf16.msra.mxu0 0
    %1038 = vmatprep.subr.bf16.mxu0 0
    %1039 = vmatpush1.bf16.msra.mxu0 0
    %1040 = vmatprep.subr.bf16.mxu0 0
    %1041 = vmatpush1.bf16.msra.mxu0 0
    %1042 = vmatprep.mubr.bf16.mxu0 0
    %1043 = vmatmul.mubr.bf16.gmra.mrb[0].mxu0 %v1008
    %v1044 = vpop.f32.mrb[0].mxu0
    %v1045 = vadd.f32 %v960, %v1044
    %v1046 = vpop.f32.mrb[0].mxu0
    %v1047 = vadd.f32 %v962, %v1046
    %v1048 = vpop.f32.mrb[0].mxu0
    %v1049 = vpop.f32.mrb[0].mxu0
    %1050 = vdwg.mxu0
    %1051 = vmatprep.subr.bf16.mxu0 %v375
    %1052 = vmatpush1.bf16.msra.mxu0 %v374
    %1053 = vmatprep.subr.bf16.mxu0 %v379
    %1054 = vmatpush1.bf16.msra.mxu0 %v378
    %1055 = vmatprep.subr.bf16.mxu0 %v383
    %1056 = vmatpush1.bf16.msra.mxu0 %v382
    %1057 = vmatprep.subr.bf16.mxu0 %v387
    %1058 = vmatpush1.bf16.msra.mxu0 %v386
    %1059 = vmatprep.subr.bf16.mxu0 0
    %1060 = vmatpush1.bf16.msra.mxu0 0
    %1061 = vmatprep.subr.bf16.mxu0 0
    %1062 = vmatpush1.bf16.msra.mxu0 0
    %1063 = vmatprep.subr.bf16.mxu0 0
    %1064 = vmatpush1.bf16.msra.mxu0 0
    %1065 = vmatprep.subr.bf16.mxu0 0
    %1066 = vmatpush1.bf16.msra.mxu0 0
    %1067 = vmatprep.subr.bf16.mxu0 0
    %1068 = vmatpush1.bf16.msra.mxu0 0
    %1069 = vmatprep.subr.bf16.mxu0 0
    %1070 = vmatpush1.bf16.msra.mxu0 0
    %1071 = vmatprep.subr.bf16.mxu0 0
    %1072 = vmatpush1.bf16.msra.mxu0 0
    %1073 = vmatprep.subr.bf16.mxu0 0
    %1074 = vmatpush1.bf16.msra.mxu0 0
    %1075 = vmatprep.subr.bf16.mxu0 0
    %1076 = vmatpush1.bf16.msra.mxu0 0
    %1077 = vmatprep.subr.bf16.mxu0 0
    %1078 = vmatpush1.bf16.msra.mxu0 0
    %1079 = vmatprep.subr.bf16.mxu0 0
    %1080 = vmatpush1.bf16.msra.mxu0 0
    %1081 = vmatprep.subr.bf16.mxu0 0
    %1082 = vmatpush1.bf16.msra.mxu0 0
    %1083 = vmatprep.mubr.bf16.mxu0 0
    %1084 = vmatmul.mubr.bf16.gmra.mrb[0].mxu0 %v1008
    %v1085 = vpop.f32.mrb[0].mxu0
    %v1086 = vadd.f32 %v1001, %v1085
    %v1087 = vpop.f32.mrb[0].mxu0
    %v1088 = vadd.f32 %v1003, %v1087
    %v1089 = vpop.f32.mrb[0].mxu0
    %v1090 = vpop.f32.mrb[0].mxu0
    %1091 = vdwg.mxu0
    %v1092 = vadd.f32 %v1045, %v494
    %v1093 = vadd.f32 %v1047, %v498
    %v1094 = vadd.f32 %v1086, %v502
    %v1095 = vadd.f32 %v1088, %v506
    %v1096 = vmul.f32 %v1092, 0.5
    %v1097 = vtanh.pop %v1096
    %v1098 = vmul.f32 %v1097, 0.5
    %v1099 = vadd.f32 %v1098, 0.5
    %v1100 = vmul.f32 %v1093, 0.5
    %v1101 = vtanh.pop %v1100
    %v1102 = vmul.f32 %v1101, 0.5
    %v1103 = vadd.f32 %v1102, 0.5
    %v1104 = vtanh.pop %v1094
    %v1105 = vmul.f32 %v1095, 0.5
    %v1106 = vtanh.pop %v1105
    %v1107 = vmul.f32 %v1106, 0.5
    %v1108 = vadd.f32 %v1107, 0.5
    %v1109 = vmul.f32 %v1103, %v917
    %v1110 = vmul.f32 %v1099, %v1104
    %v1111 = vadd.f32 %v1109, %v1110
    %v1112 = vtanh.pop %v1111
    %v1113 = vmul.f32 %v1108, %v1112
    %s1114 = scalar_lea.vmem %s4, 24
    %1115 = vst [vmem:[%s1114] sm:$0xff] %v1113
    %s1116 = scalar_lea.vmem %s0, 16
    %v1117 = vld [vmem:[%s1116] sm:$0xf]
    %v1118 = vpack.c.bf16 %v1113, %v1113
    %1119 = vmatprep.subr.bf16.mxu0 %v179
    %1120 = vmatpush1.bf16.msra.mxu0 %v178
    %1121 = vmatprep.subr.bf16.mxu0 %v183
    %1122 = vmatpush1.bf16.msra.mxu0 %v182
    %1123 = vmatprep.subr.bf16.mxu0 %v187
    %1124 = vmatpush1.bf16.msra.mxu0 %v186
    %1125 = vmatprep.subr.bf16.mxu0 %v191
    %1126 = vmatpush1.bf16.msra.mxu0 %v190
    %1127 = vmatprep.subr.bf16.mxu0 %v195
    %1128 = vmatpush1.bf16.msra.mxu0 %v194
    %1129 = vmatprep.subr.bf16.mxu0 %v199
    %1130 = vmatpush1.bf16.msra.mxu0 %v198
    %1131 = vmatprep.subr.bf16.mxu0 %v203
    %1132 = vmatpush1.bf16.msra.mxu0 %v202
    %1133 = vmatprep.subr.bf16.mxu0 %v207
    %1134 = vmatpush1.bf16.msra.mxu0 %v206
    %1135 = vmatprep.subr.bf16.mxu0 0
    %1136 = vmatpush1.bf16.msra.mxu0 0
    %1137 = vmatprep.subr.bf16.mxu0 0
    %1138 = vmatpush1.bf16.msra.mxu0 0
    %1139 = vmatprep.subr.bf16.mxu0 0
    %1140 = vmatpush1.bf16.msra.mxu0 0
    %1141 = vmatprep.subr.bf16.mxu0 0
    %1142 = vmatpush1.bf16.msra.mxu0 0
    %1143 = vmatprep.subr.bf16.mxu0 0
    %1144 = vmatpush1.bf16.msra.mxu0 0
    %1145 = vmatprep.subr.bf16.mxu0 0
    %1146 = vmatpush1.bf16.msra.mxu0 0
    %1147 = vmatprep.subr.bf16.mxu0 0
    %1148 = vmatpush1.bf16.msra.mxu0 0
    %1149 = vmatprep.subr.bf16.mxu0 0
    %1150 = vmatpush1.bf16.msra.mxu0 0
    %1151 = vmatprep.mubr.bf16.mxu0 0
    %1152 = vmatmul.mubr.bf16.gmra.mrb[0].mxu0 %v1118
    %v1153 = vpop.f32.mrb[0].mxu0
    %v1154 = vadd.f32 0.0, %v1153
    %v1155 = vpop.f32.mrb[0].mxu0
    %v1156 = vadd.f32 0.0, %v1155
    %v1157 = vpop.f32.mrb[0].mxu0
    %v1158 = vpop.f32.mrb[0].mxu0
    %1159 = vdwg.mxu0
    %1160 = vmatprep.subr.bf16.mxu0 %v181
    %1161 = vmatpush1.bf16.msra.mxu0 %v180
    %1162 = vmatprep.subr.bf16.mxu0 %v185
    %1163 = vmatpush1.bf16.msra.mxu0 %v184
    %1164 = vmatprep.subr.bf16.mxu0 %v189
    %1165 = vmatpush1.bf16.msra.mxu0 %v188
    %1166 = vmatprep.subr.bf16.mxu0 %v193
    %1167 = vmatpush1.bf16.msra.mxu0 %v192
    %1168 = vmatprep.subr.bf16.mxu0 %v197
    %1169 = vmatpush1.bf16.msra.mxu0 %v196
    %1170 = vmatprep.subr.bf16.mxu0 %v201
    %1171 = vmatpush1.bf16.msra.mxu0 %v200
    %1172 = vmatprep.subr.bf16.mxu0 %v205
    %1173 = vmatpush1.bf16.msra.mxu0 %v204
    %1174 = vmatprep.subr.bf16.mxu0 %v209
    %1175 = vmatpush1.bf16.msra.mxu0 %v208
    %1176 = vmatprep.subr.bf16.mxu0 0
    %1177 = vmatpush1.bf16.msra.mxu0 0
    %1178 = vmatprep.subr.bf16.mxu0 0
    %1179 = vmatpush1.bf16.msra.mxu0 0
    %1180 = vmatprep.subr.bf16.mxu0 0
    %1181 = vmatpush1.bf16.msra.mxu0 0
    %1182 = vmatprep.subr.bf16.mxu0 0
    %1183 = vmatpush1.bf16.msra.mxu0 0
    %1184 = vmatprep.subr.bf16.mxu0 0
    %1185 = vmatpush1.bf16.msra.mxu0 0
    %1186 = vmatprep.subr.bf16.mxu0 0
    %1187 = vmatpush1.bf16.msra.mxu0 0
    %1188 = vmatprep.subr.bf16.mxu0 0
    %1189 = vmatpush1.bf16.msra.mxu0 0
    %1190 = vmatprep.subr.bf16.mxu0 0
    %1191 = vmatpush1.bf16.msra.mxu0 0
    %1192 = vmatprep.mubr.bf16.mxu0 0
    %1193 = vmatmul.mubr.bf16.gmra.mrb[0].mxu0 %v1118
    %v1194 = vpop.f32.mrb[0].mxu0
    %v1195 = vadd.f32 0.0, %v1194
    %v1196 = vpop.f32.mrb[0].mxu0
    %v1197 = vadd.f32 0.0, %v1196
    %v1198 = vpop.f32.mrb[0].mxu0
    %v1199 = vpop.f32.mrb[0].mxu0
    %1200 = vdwg.mxu0
    %v1202 = vsel %vm404, %v1117, 0
    %1204 = vmatprep.subr.bf16.mxu0 %v373
    %1205 = vmatpush1.bf16.msra.mxu0 %v372
    %1206 = vmatprep.subr.bf16.mxu0 %v377
    %1207 = vmatpush1.bf16.msra.mxu0 %v376
    %1208 = vmatprep.subr.bf16.mxu0 %v381
    %1209 = vmatpush1.bf16.msra.mxu0 %v380
    %1210 = vmatprep.subr.bf16.mxu0 %v385
    %1211 = vmatpush1.bf16.msra.mxu0 %v384
    %1212 = vmatprep.subr.bf16.mxu0 0
    %1213 = vmatpush1.bf16.msra.mxu0 0
    %1214 = vmatprep.subr.bf16.mxu0 0
    %1215 = vmatpush1.bf16.msra.mxu0 0
    %1216 = vmatprep.subr.bf16.mxu0 0
    %1217 = vmatpush1.bf16.msra.mxu0 0
    %1218 = vmatprep.subr.bf16.mxu0 0
    %1219 = vmatpush1.bf16.msra.mxu0 0
    %1220 = vmatprep.subr.bf16.mxu0 0
    %1221 = vmatpush1.bf16.msra.mxu0 0
    %1222 = vmatprep.subr.bf16.mxu0 0
    %1223 = vmatpush1.bf16.msra.mxu0 0
    %1224 = vmatprep.subr.bf16.mxu0 0
    %1225 = vmatpush1.bf16.msra.mxu0 0
    %1226 = vmatprep.subr.bf16.mxu0 0
    %1227 = vmatpush1.bf16.msra.mxu0 0
    %1228 = vmatprep.subr.bf16.mxu0 0
    %1229 = vmatpush1.bf16.msra.mxu0 0
    %1230 = vmatprep.subr.bf16.mxu0 0
    %1231 = vmatpush1.bf16.msra.mxu0 0
    %1232 = vmatprep.subr.bf16.mxu0 0
    %1233 = vmatpush1.bf16.msra.mxu0 0
    %1234 = vmatprep.subr.bf16.mxu0 0
    %1235 = vmatpush1.bf16.msra.mxu0 0
    %1236 = vmatprep.mubr.bf16.mxu0 0
    %1237 = vmatmul.mubr.bf16.gmra.mrb[0].mxu0 %v1202
    %v1238 = vpop.f32.mrb[0].mxu0
    %v1239 = vadd.f32 %v1154, %v1238
    %v1240 = vpop.f32.mrb[0].mxu0
    %v1241 = vadd.f32 %v1156, %v1240
    %v1242 = vpop.f32.mrb[0].mxu0
    %v1243 = vpop.f32.mrb[0].mxu0
    %1244 = vdwg.mxu0
    %1245 = vmatprep.subr.bf16.mxu0 %v375
    %1246 = vmatpush1.bf16.msra.mxu0 %v374
    %1247 = vmatprep.subr.bf16.mxu0 %v379
    %1248 = vmatpush1.bf16.msra.mxu0 %v378
    %1249 = vmatprep.subr.bf16.mxu0 %v383
    %1250 = vmatpush1.bf16.msra.mxu0 %v382
    %1251 = vmatprep.subr.bf16.mxu0 %v387
    %1252 = vmatpush1.bf16.msra.mxu0 %v386
    %1253 = vmatprep.subr.bf16.mxu0 0
    %1254 = vmatpush1.bf16.msra.mxu0 0
    %1255 = vmatprep.subr.bf16.mxu0 0
    %1256 = vmatpush1.bf16.msra.mxu0 0
    %1257 = vmatprep.subr.bf16.mxu0 0
    %1258 = vmatpush1.bf16.msra.mxu0 0
    %1259 = vmatprep.subr.bf16.mxu0 0
    %1260 = vmatpush1.bf16.msra.mxu0 0
    %1261 = vmatprep.subr.bf16.mxu0 0
    %1262 = vmatpush1.bf16.msra.mxu0 0
    %1263 = vmatprep.subr.bf16.mxu0 0
    %1264 = vmatpush1.bf16.msra.mxu0 0
    %1265 = vmatprep.subr.bf16.mxu0 0
    %1266 = vmatpush1.bf16.msra.mxu0 0
    %1267 = vmatprep.subr.bf16.mxu0 0
    %1268 = vmatpush1.bf16.msra.mxu0 0
    %1269 = vmatprep.subr.bf16.mxu0 0
    %1270 = vmatpush1.bf16.msra.mxu0 0
    %1271 = vmatprep.subr.bf16.mxu0 0
    %1272 = vmatpush1.bf16.msra.mxu0 0
    %1273 = vmatprep.subr.bf16.mxu0 0
    %1274 = vmatpush1.bf16.msra.mxu0 0
    %1275 = vmatprep.subr.bf16.mxu0 0
    %1276 = vmatpush1.bf16.msra.mxu0 0
    %1277 = vmatprep.mubr.bf16.mxu0 0
    %1278 = vmatmul.mubr.bf16.gmra.mrb[0].mxu0 %v1202
    %v1279 = vpop.f32.mrb[0].mxu0
    %v1280 = vadd.f32 %v1195, %v1279
    %v1281 = vpop.f32.mrb[0].mxu0
    %v1282 = vadd.f32 %v1197, %v1281
    %v1283 = vpop.f32.mrb[0].mxu0
    %v1284 = vpop.f32.mrb[0].mxu0
    %1285 = vdwg.mxu0
    %v1286 = vadd.f32 %v1239, %v494
    %v1287 = vadd.f32 %v1241, %v498
    %v1288 = vadd.f32 %v1280, %v502
    %v1289 = vadd.f32 %v1282, %v506
    %v1290 = vmul.f32 %v1286, 0.5
    %v1291 = vtanh.pop %v1290
    %v1292 = vmul.f32 %v1291, 0.5
    %v1293 = vadd.f32 %v1292, 0.5
    %v1294 = vmul.f32 %v1287, 0.5
    %v1295 = vtanh.pop %v1294
    %v1296 = vmul.f32 %v1295, 0.5
    %v1297 = vadd.f32 %v1296, 0.5
    %v1298 = vtanh.pop %v1288
    %v1299 = vmul.f32 %v1289, 0.5
    %v1300 = vtanh.pop %v1299
    %v1301 = vmul.f32 %v1300, 0.5
    %v1302 = vadd.f32 %v1301, 0.5
    %v1303 = vmul.f32 %v1297, %v1111
    %v1304 = vmul.f32 %v1293, %v1298
    %v1305 = vadd.f32 %v1303, %v1304
    %v1306 = vtanh.pop %v1305
    %v1307 = vmul.f32 %v1302, %v1306
    %s1308 = scalar_lea.vmem %s4, 32
    %1309 = vst [vmem:[%s1308] sm:$0xff] %v1307
    %s1310 = scalar_lea.vmem %s0, 20
    %v1311 = vld [vmem:[%s1310] sm:$0xf]
    %v1312 = vpack.c.bf16 %v1307, %v1307
    %1313 = vmatprep.subr.bf16.mxu0 %v179
    %1314 = vmatpush1.bf16.msra.mxu0 %v178
    %1315 = vmatprep.subr.bf16.mxu0 %v183
    %1316 = vmatpush1.bf16.msra.mxu0 %v182
    %1317 = vmatprep.subr.bf16.mxu0 %v187
    %1318 = vmatpush1.bf16.msra.mxu0 %v186
    %1319 = vmatprep.subr.bf16.mxu0 %v191
    %1320 = vmatpush1.bf16.msra.mxu0 %v190
    %1321 = vmatprep.subr.bf16.mxu0 %v195
    %1322 = vmatpush1.bf16.msra.mxu0 %v194
    %1323 = vmatprep.subr.bf16.mxu0 %v199
    %1324 = vmatpush1.bf16.msra.mxu0 %v198
    %1325 = vmatprep.subr.bf16.mxu0 %v203
    %1326 = vmatpush1.bf16.msra.mxu0 %v202
    %1327 = vmatprep.subr.bf16.mxu0 %v207
    %1328 = vmatpush1.bf16.msra.mxu0 %v206
    %1329 = vmatprep.subr.bf16.mxu0 0
    %1330 = vmatpush1.bf16.msra.mxu0 0
    %1331 = vmatprep.subr.bf16.mxu0 0
    %1332 = vmatpush1.bf16.msra.mxu0 0
    %1333 = vmatprep.subr.bf16.mxu0 0
    %1334 = vmatpush1.bf16.msra.mxu0 0
    %1335 = vmatprep.subr.bf16.mxu0 0
    %1336 = vmatpush1.bf16.msra.mxu0 0
    %1337 = vmatprep.subr.bf16.mxu0 0
    %1338 = vmatpush1.bf16.msra.mxu0 0
    %1339 = vmatprep.subr.bf16.mxu0 0
    %1340 = vmatpush1.bf16.msra.mxu0 0
    %1341 = vmatprep.subr.bf16.mxu0 0
    %1342 = vmatpush1.bf16.msra.mxu0 0
    %1343 = vmatprep.subr.bf16.mxu0 0
    %1344 = vmatpush1.bf16.msra.mxu0 0
    %1345 = vmatprep.mubr.bf16.mxu0 0
    %1346 = vmatmul.mubr.bf16.gmra.mrb[0].mxu0 %v1312
    %v1347 = vpop.f32.mrb[0].mxu0
    %v1348 = vadd.f32 0.0, %v1347
    %v1349 = vpop.f32.mrb[0].mxu0
    %v1350 = vadd.f32 0.0, %v1349
    %v1351 = vpop.f32.mrb[0].mxu0
    %v1352 = vpop.f32.mrb[0].mxu0
    %1353 = vdwg.mxu0
    %1354 = vmatprep.subr.bf16.mxu0 %v181
    %1355 = vmatpush1.bf16.msra.mxu0 %v180
    %1356 = vmatprep.subr.bf16.mxu0 %v185
    %1357 = vmatpush1.bf16.msra.mxu0 %v184
    %1358 = vmatprep.subr.bf16.mxu0 %v189
    %1359 = vmatpush1.bf16.msra.mxu0 %v188
    %1360 = vmatprep.subr.bf16.mxu0 %v193
    %1361 = vmatpush1.bf16.msra.mxu0 %v192
    %1362 = vmatprep.subr.bf16.mxu0 %v197
    %1363 = vmatpush1.bf16.msra.mxu0 %v196
    %1364 = vmatprep.subr.bf16.mxu0 %v201
    %1365 = vmatpush1.bf16.msra.mxu0 %v200
    %1366 = vmatprep.subr.bf16.mxu0 %v205
    %1367 = vmatpush1.bf16.msra.mxu0 %v204
    %1368 = vmatprep.subr.bf16.mxu0 %v209
    %1369 = vmatpush1.bf16.msra.mxu0 %v208
    %1370 = vmatprep.subr.bf16.mxu0 0
    %1371 = vmatpush1.bf16.msra.mxu0 0
    %1372 = vmatprep.subr.bf16.mxu0 0
    %1373 = vmatpush1.bf16.msra.mxu0 0
    %1374 = vmatprep.subr.bf16.mxu0 0
    %1375 = vmatpush1.bf16.msra.mxu0 0
    %1376 = vmatprep.subr.bf16.mxu0 0
    %1377 = vmatpush1.bf16.msra.mxu0 0
    %1378 = vmatprep.subr.bf16.mxu0 0
    %1379 = vmatpush1.bf16.msra.mxu0 0
    %1380 = vmatprep.subr.bf16.mxu0 0
    %1381 = vmatpush1.bf16.msra.mxu0 0
    %1382 = vmatprep.subr.bf16.mxu0 0
    %1383 = vmatpush1.bf16.msra.mxu0 0
    %1384 = vmatprep.subr.bf16.mxu0 0
    %1385 = vmatpush1.bf16.msra.mxu0 0
    %1386 = vmatprep.mubr.bf16.mxu0 0
    %1387 = vmatmul.mubr.bf16.gmra.mrb[0].mxu0 %v1312
    %v1388 = vpop.f32.mrb[0].mxu0
    %v1389 = vadd.f32 0.0, %v1388
    %v1390 = vpop.f32.mrb[0].mxu0
    %v1391 = vadd.f32 0.0, %v1390
    %v1392 = vpop.f32.mrb[0].mxu0
    %v1393 = vpop.f32.mrb[0].mxu0
    %1394 = vdwg.mxu0
    %v1396 = vsel %vm404, %v1311, 0
    %1398 = vmatprep.subr.bf16.mxu0 %v373
    %1399 = vmatpush1.bf16.msra.mxu0 %v372
    %1400 = vmatprep.subr.bf16.mxu0 %v377
    %1401 = vmatpush1.bf16.msra.mxu0 %v376
    %1402 = vmatprep.subr.bf16.mxu0 %v381
    %1403 = vmatpush1.bf16.msra.mxu0 %v380
    %1404 = vmatprep.subr.bf16.mxu0 %v385
    %1405 = vmatpush1.bf16.msra.mxu0 %v384
    %1406 = vmatprep.subr.bf16.mxu0 0
    %1407 = vmatpush1.bf16.msra.mxu0 0
    %1408 = vmatprep.subr.bf16.mxu0 0
    %1409 = vmatpush1.bf16.msra.mxu0 0
    %1410 = vmatprep.subr.bf16.mxu0 0
    %1411 = vmatpush1.bf16.msra.mxu0 0
    %1412 = vmatprep.subr.bf16.mxu0 0
    %1413 = vmatpush1.bf16.msra.mxu0 0
    %1414 = vmatprep.subr.bf16.mxu0 0
    %1415 = vmatpush1.bf16.msra.mxu0 0
    %1416 = vmatprep.subr.bf16.mxu0 0
    %1417 = vmatpush1.bf16.msra.mxu0 0
    %1418 = vmatprep.subr.bf16.mxu0 0
    %1419 = vmatpush1.bf16.msra.mxu0 0
    %1420 = vmatprep.subr.bf16.mxu0 0
    %1421 = vmatpush1.bf16.msra.mxu0 0
    %1422 = vmatprep.subr.bf16.mxu0 0
    %1423 = vmatpush1.bf16.msra.mxu0 0
    %1424 = vmatprep.subr.bf16.mxu0 0
    %1425 = vmatpush1.bf16.msra.mxu0 0
    %1426 = vmatprep.subr.bf16.mxu0 0
    %1427 = vmatpush1.bf16.msra.mxu0 0
    %1428 = vmatprep.subr.bf16.mxu0 0
    %1429 = vmatpush1.bf16.msra.mxu0 0
    %1430 = vmatprep.mubr.bf16.mxu0 0
    %1431 = vmatmul.mubr.bf16.gmra.mrb[0].mxu0 %v1396
    %v1432 = vpop.f32.mrb[0].mxu0
    %v1433 = vadd.f32 %v1348, %v1432
    %v1434 = vpop.f32.mrb[0].mxu0
    %v1435 = vadd.f32 %v1350, %v1434
    %v1436 = vpop.f32.mrb[0].mxu0
    %v1437 = vpop.f32.mrb[0].mxu0
    %1438 = vdwg.mxu0
    %1439 = vmatprep.subr.bf16.mxu0 %v375
    %1440 = vmatpush1.bf16.msra.mxu0 %v374
    %1441 = vmatprep.subr.bf16.mxu0 %v379
    %1442 = vmatpush1.bf16.msra.mxu0 %v378
    %1443 = vmatprep.subr.bf16.mxu0 %v383
    %1444 = vmatpush1.bf16.msra.mxu0 %v382
    %1445 = vmatprep.subr.bf16.mxu0 %v387
    %1446 = vmatpush1.bf16.msra.mxu0 %v386
    %1447 = vmatprep.subr.bf16.mxu0 0
    %1448 = vmatpush1.bf16.msra.mxu0 0
    %1449 = vmatprep.subr.bf16.mxu0 0
    %1450 = vmatpush1.bf16.msra.mxu0 0
    %1451 = vmatprep.subr.bf16.mxu0 0
    %1452 = vmatpush1.bf16.msra.mxu0 0
    %1453 = vmatprep.subr.bf16.mxu0 0
    %1454 = vmatpush1.bf16.msra.mxu0 0
    %1455 = vmatprep.subr.bf16.mxu0 0
    %1456 = vmatpush1.bf16.msra.mxu0 0
    %1457 = vmatprep.subr.bf16.mxu0 0
    %1458 = vmatpush1.bf16.msra.mxu0 0
    %1459 = vmatprep.subr.bf16.mxu0 0
    %1460 = vmatpush1.bf16.msra.mxu0 0
    %1461 = vmatprep.subr.bf16.mxu0 0
    %1462 = vmatpush1.bf16.msra.mxu0 0
    %1463 = vmatprep.subr.bf16.mxu0 0
    %1464 = vmatpush1.bf16.msra.mxu0 0
    %1465 = vmatprep.subr.bf16.mxu0 0
    %1466 = vmatpush1.bf16.msra.mxu0 0
    %1467 = vmatprep.subr.bf16.mxu0 0
    %1468 = vmatpush1.bf16.msra.mxu0 0
    %1469 = vmatprep.subr.bf16.mxu0 0
    %1470 = vmatpush1.bf16.msra.mxu0 0
    %1471 = vmatprep.mubr.bf16.mxu0 0
    %1472 = vmatmul.mubr.bf16.gmra.mrb[0].mxu0 %v1396
    %v1473 = vpop.f32.mrb[0].mxu0
    %v1474 = vadd.f32 %v1389, %v1473
    %v1475 = vpop.f32.mrb[0].mxu0
    %v1476 = vadd.f32 %v1391, %v1475
    %v1477 = vpop.f32.mrb[0].mxu0
    %v1478 = vpop.f32.mrb[0].mxu0
    %1479 = vdwg.mxu0
    %v1480 = vadd.f32 %v1433, %v494
    %v1481 = vadd.f32 %v1435, %v498
    %v1482 = vadd.f32 %v1474, %v502
    %v1483 = vadd.f32 %v1476, %v506
    %v1484 = vmul.f32 %v1480, 0.5
    %v1485 = vtanh.pop %v1484
    %v1486 = vmul.f32 %v1485, 0.5
    %v1487 = vadd.f32 %v1486, 0.5
    %v1488 = vmul.f32 %v1481, 0.5
    %v1489 = vtanh.pop %v1488
    %v1490 = vmul.f32 %v1489, 0.5
    %v1491 = vadd.f32 %v1490, 0.5
    %v1492 = vtanh.pop %v1482
    %v1493 = vmul.f32 %v1483, 0.5
    %v1494 = vtanh.pop %v1493
    %v1495 = vmul.f32 %v1494, 0.5
    %v1496 = vadd.f32 %v1495, 0.5
    %v1497 = vmul.f32 %v1491, %v1305
    %v1498 = vmul.f32 %v1487, %v1492
    %v1499 = vadd.f32 %v1497, %v1498
    %v1500 = vtanh.pop %v1499
    %v1501 = vmul.f32 %v1496, %v1500
    %s1502 = scalar_lea.vmem %s4, 40
    %1503 = vst [vmem:[%s1502] sm:$0xff] %v1501
    %s1504 = scalar_lea.vmem %s0, 24
    %v1505 = vld [vmem:[%s1504] sm:$0xf]
    %v1506 = vpack.c.bf16 %v1501, %v1501
    %1507 = vmatprep.subr.bf16.mxu0 %v179
    %1508 = vmatpush1.bf16.msra.mxu0 %v178
    %1509 = vmatprep.subr.bf16.mxu0 %v183
    %1510 = vmatpush1.bf16.msra.mxu0 %v182
    %1511 = vmatprep.subr.bf16.mxu0 %v187
    %1512 = vmatpush1.bf16.msra.mxu0 %v186
    %1513 = vmatprep.subr.bf16.mxu0 %v191
    %1514 = vmatpush1.bf16.msra.mxu0 %v190
    %1515 = vmatprep.subr.bf16.mxu0 %v195
    %1516 = vmatpush1.bf16.msra.mxu0 %v194
    %1517 = vmatprep.subr.bf16.mxu0 %v199
    %1518 = vmatpush1.bf16.msra.mxu0 %v198
    %1519 = vmatprep.subr.bf16.mxu0 %v203
    %1520 = vmatpush1.bf16.msra.mxu0 %v202
    %1521 = vmatprep.subr.bf16.mxu0 %v207
    %1522 = vmatpush1.bf16.msra.mxu0 %v206
    %1523 = vmatprep.subr.bf16.mxu0 0
    %1524 = vmatpush1.bf16.msra.mxu0 0
    %1525 = vmatprep.subr.bf16.mxu0 0
    %1526 = vmatpush1.bf16.msra.mxu0 0
    %1527 = vmatprep.subr.bf16.mxu0 0
    %1528 = vmatpush1.bf16.msra.mxu0 0
    %1529 = vmatprep.subr.bf16.mxu0 0
    %1530 = vmatpush1.bf16.msra.mxu0 0
    %1531 = vmatprep.subr.bf16.mxu0 0
    %1532 = vmatpush1.bf16.msra.mxu0 0
    %1533 = vmatprep.subr.bf16.mxu0 0
    %1534 = vmatpush1.bf16.msra.mxu0 0
    %1535 = vmatprep.subr.bf16.mxu0 0
    %1536 = vmatpush1.bf16.msra.mxu0 0
    %1537 = vmatprep.subr.bf16.mxu0 0
    %1538 = vmatpush1.bf16.msra.mxu0 0
    %1539 = vmatprep.mubr.bf16.mxu0 0
    %1540 = vmatmul.mubr.bf16.gmra.mrb[0].mxu0 %v1506
    %v1541 = vpop.f32.mrb[0].mxu0
    %v1542 = vadd.f32 0.0, %v1541
    %v1543 = vpop.f32.mrb[0].mxu0
    %v1544 = vadd.f32 0.0, %v1543
    %v1545 = vpop.f32.mrb[0].mxu0
    %v1546 = vpop.f32.mrb[0].mxu0
    %1547 = vdwg.mxu0
    %1548 = vmatprep.subr.bf16.mxu0 %v181
    %1549 = vmatpush1.bf16.msra.mxu0 %v180
    %1550 = vmatprep.subr.bf16.mxu0 %v185
    %1551 = vmatpush1.bf16.msra.mxu0 %v184
    %1552 = vmatprep.subr.bf16.mxu0 %v189
    %1553 = vmatpush1.bf16.msra.mxu0 %v188
    %1554 = vmatprep.subr.bf16.mxu0 %v193
    %1555 = vmatpush1.bf16.msra.mxu0 %v192
    %1556 = vmatprep.subr.bf16.mxu0 %v197
    %1557 = vmatpush1.bf16.msra.mxu0 %v196
    %1558 = vmatprep.subr.bf16.mxu0 %v201
    %1559 = vmatpush1.bf16.msra.mxu0 %v200
    %1560 = vmatprep.subr.bf16.mxu0 %v205
    %1561 = vmatpush1.bf16.msra.mxu0 %v204
    %1562 = vmatprep.subr.bf16.mxu0 %v209
    %1563 = vmatpush1.bf16.msra.mxu0 %v208
    %1564 = vmatprep.subr.bf16.mxu0 0
    %1565 = vmatpush1.bf16.msra.mxu0 0
    %1566 = vmatprep.subr.bf16.mxu0 0
    %1567 = vmatpush1.bf16.msra.mxu0 0
    %1568 = vmatprep.subr.bf16.mxu0 0
    %1569 = vmatpush1.bf16.msra.mxu0 0
    %1570 = vmatprep.subr.bf16.mxu0 0
    %1571 = vmatpush1.bf16.msra.mxu0 0
    %1572 = vmatprep.subr.bf16.mxu0 0
    %1573 = vmatpush1.bf16.msra.mxu0 0
    %1574 = vmatprep.subr.bf16.mxu0 0
    %1575 = vmatpush1.bf16.msra.mxu0 0
    %1576 = vmatprep.subr.bf16.mxu0 0
    %1577 = vmatpush1.bf16.msra.mxu0 0
    %1578 = vmatprep.subr.bf16.mxu0 0
    %1579 = vmatpush1.bf16.msra.mxu0 0
    %1580 = vmatprep.mubr.bf16.mxu0 0
    %1581 = vmatmul.mubr.bf16.gmra.mrb[0].mxu0 %v1506
    %v1582 = vpop.f32.mrb[0].mxu0
    %v1583 = vadd.f32 0.0, %v1582
    %v1584 = vpop.f32.mrb[0].mxu0
    %v1585 = vadd.f32 0.0, %v1584
    %v1586 = vpop.f32.mrb[0].mxu0
    %v1587 = vpop.f32.mrb[0].mxu0
    %1588 = vdwg.mxu0
    %v1590 = vsel %vm404, %v1505, 0
    %1592 = vmatprep.subr.bf16.mxu0 %v373
    %1593 = vmatpush1.bf16.msra.mxu0 %v372
    %1594 = vmatprep.subr.bf16.mxu0 %v377
    %1595 = vmatpush1.bf16.msra.mxu0 %v376
    %1596 = vmatprep.subr.bf16.mxu0 %v381
    %1597 = vmatpush1.bf16.msra.mxu0 %v380
    %1598 = vmatprep.subr.bf16.mxu0 %v385
    %1599 = vmatpush1.bf16.msra.mxu0 %v384
    %1600 = vmatprep.subr.bf16.mxu0 0
    %1601 = vmatpush1.bf16.msra.mxu0 0
    %1602 = vmatprep.subr.bf16.mxu0 0
    %1603 = vmatpush1.bf16.msra.mxu0 0
    %1604 = vmatprep.subr.bf16.mxu0 0
    %1605 = vmatpush1.bf16.msra.mxu0 0
    %1606 = vmatprep.subr.bf16.mxu0 0
    %1607 = vmatpush1.bf16.msra.mxu0 0
    %1608 = vmatprep.subr.bf16.mxu0 0
    %1609 = vmatpush1.bf16.msra.mxu0 0
    %1610 = vmatprep.subr.bf16.mxu0 0
    %1611 = vmatpush1.bf16.msra.mxu0 0
    %1612 = vmatprep.subr.bf16.mxu0 0
    %1613 = vmatpush1.bf16.msra.mxu0 0
    %1614 = vmatprep.subr.bf16.mxu0 0
    %1615 = vmatpush1.bf16.msra.mxu0 0
    %1616 = vmatprep.subr.bf16.mxu0 0
    %1617 = vmatpush1.bf16.msra.mxu0 0
    %1618 = vmatprep.subr.bf16.mxu0 0
    %1619 = vmatpush1.bf16.msra.mxu0 0
    %1620 = vmatprep.subr.bf16.mxu0 0
    %1621 = vmatpush1.bf16.msra.mxu0 0
    %1622 = vmatprep.subr.bf16.mxu0 0
    %1623 = vmatpush1.bf16.msra.mxu0 0
    %1624 = vmatprep.mubr.bf16.mxu0 0
    %1625 = vmatmul.mubr.bf16.gmra.mrb[0].mxu0 %v1590
    %v1626 = vpop.f32.mrb[0].mxu0
    %v1627 = vadd.f32 %v1542, %v1626
    %v1628 = vpop.f32.mrb[0].mxu0
    %v1629 = vadd.f32 %v1544, %v1628
    %v1630 = vpop.f32.mrb[0].mxu0
    %v1631 = vpop.f32.mrb[0].mxu0
    %1632 = vdwg.mxu0
    %1633 = vmatprep.subr.bf16.mxu0 %v375
    %1634 = vmatpush1.bf16.msra.mxu0 %v374
    %1635 = vmatprep.subr.bf16.mxu0 %v379
    %1636 = vmatpush1.bf16.msra.mxu0 %v378
    %1637 = vmatprep.subr.bf16.mxu0 %v383
    %1638 = vmatpush1.bf16.msra.mxu0 %v382
    %1639 = vmatprep.subr.bf16.mxu0 %v387
    %1640 = vmatpush1.bf16.msra.mxu0 %v386
    %1641 = vmatprep.subr.bf16.mxu0 0
    %1642 = vmatpush1.bf16.msra.mxu0 0
    %1643 = vmatprep.subr.bf16.mxu0 0
    %1644 = vmatpush1.bf16.msra.mxu0 0
    %1645 = vmatprep.subr.bf16.mxu0 0
    %1646 = vmatpush1.bf16.msra.mxu0 0
    %1647 = vmatprep.subr.bf16.mxu0 0
    %1648 = vmatpush1.bf16.msra.mxu0 0
    %1649 = vmatprep.subr.bf16.mxu0 0
    %1650 = vmatpush1.bf16.msra.mxu0 0
    %1651 = vmatprep.subr.bf16.mxu0 0
    %1652 = vmatpush1.bf16.msra.mxu0 0
    %1653 = vmatprep.subr.bf16.mxu0 0
    %1654 = vmatpush1.bf16.msra.mxu0 0
    %1655 = vmatprep.subr.bf16.mxu0 0
    %1656 = vmatpush1.bf16.msra.mxu0 0
    %1657 = vmatprep.subr.bf16.mxu0 0
    %1658 = vmatpush1.bf16.msra.mxu0 0
    %1659 = vmatprep.subr.bf16.mxu0 0
    %1660 = vmatpush1.bf16.msra.mxu0 0
    %1661 = vmatprep.subr.bf16.mxu0 0
    %1662 = vmatpush1.bf16.msra.mxu0 0
    %1663 = vmatprep.subr.bf16.mxu0 0
    %1664 = vmatpush1.bf16.msra.mxu0 0
    %1665 = vmatprep.mubr.bf16.mxu0 0
    %1666 = vmatmul.mubr.bf16.gmra.mrb[0].mxu0 %v1590
    %v1667 = vpop.f32.mrb[0].mxu0
    %v1668 = vadd.f32 %v1583, %v1667
    %v1669 = vpop.f32.mrb[0].mxu0
    %v1670 = vadd.f32 %v1585, %v1669
    %v1671 = vpop.f32.mrb[0].mxu0
    %v1672 = vpop.f32.mrb[0].mxu0
    %1673 = vdwg.mxu0
    %v1674 = vadd.f32 %v1627, %v494
    %v1675 = vadd.f32 %v1629, %v498
    %v1676 = vadd.f32 %v1668, %v502
    %v1677 = vadd.f32 %v1670, %v506
    %v1678 = vmul.f32 %v1674, 0.5
    %v1679 = vtanh.pop %v1678
    %v1680 = vmul.f32 %v1679, 0.5
    %v1681 = vadd.f32 %v1680, 0.5
    %v1682 = vmul.f32 %v1675, 0.5
    %v1683 = vtanh.pop %v1682
    %v1684 = vmul.f32 %v1683, 0.5
    %v1685 = vadd.f32 %v1684, 0.5
    %v1686 = vtanh.pop %v1676
    %v1687 = vmul.f32 %v1677, 0.5
    %v1688 = vtanh.pop %v1687
    %v1689 = vmul.f32 %v1688, 0.5
    %v1690 = vadd.f32 %v1689, 0.5
    %v1691 = vmul.f32 %v1685, %v1499
    %v1692 = vmul.f32 %v1681, %v1686
    %v1693 = vadd.f32 %v1691, %v1692
    %v1694 = vtanh.pop %v1693
    %v1695 = vmul.f32 %v1690, %v1694
    %s1696 = scalar_lea.vmem %s4, 48
    %1697 = vst [vmem:[%s1696] sm:$0xff] %v1695
    %s1698 = scalar_lea.vmem %s0, 28
    %v1699 = vld [vmem:[%s1698] sm:$0xf]
    %v1700 = vpack.c.bf16 %v1695, %v1695
    %1701 = vmatprep.subr.bf16.mxu0 %v179
    %1702 = vmatpush1.bf16.msra.mxu0 %v178
    %1703 = vmatprep.subr.bf16.mxu0 %v183
    %1704 = vmatpush1.bf16.msra.mxu0 %v182
    %1705 = vmatprep.subr.bf16.mxu0 %v187
    %1706 = vmatpush1.bf16.msra.mxu0 %v186
    %1707 = vmatprep.subr.bf16.mxu0 %v191
    %1708 = vmatpush1.bf16.msra.mxu0 %v190
    %1709 = vmatprep.subr.bf16.mxu0 %v195
    %1710 = vmatpush1.bf16.msra.mxu0 %v194
    %1711 = vmatprep.subr.bf16.mxu0 %v199
    %1712 = vmatpush1.bf16.msra.mxu0 %v198
    %1713 = vmatprep.subr.bf16.mxu0 %v203
    %1714 = vmatpush1.bf16.msra.mxu0 %v202
    %1715 = vmatprep.subr.bf16.mxu0 %v207
    %1716 = vmatpush1.bf16.msra.mxu0 %v206
    %1717 = vmatprep.subr.bf16.mxu0 0
    %1718 = vmatpush1.bf16.msra.mxu0 0
    %1719 = vmatprep.subr.bf16.mxu0 0
    %1720 = vmatpush1.bf16.msra.mxu0 0
    %1721 = vmatprep.subr.bf16.mxu0 0
    %1722 = vmatpush1.bf16.msra.mxu0 0
    %1723 = vmatprep.subr.bf16.mxu0 0
    %1724 = vmatpush1.bf16.msra.mxu0 0
    %1725 = vmatprep.subr.bf16.mxu0 0
    %1726 = vmatpush1.bf16.msra.mxu0 0
    %1727 = vmatprep.subr.bf16.mxu0 0
    %1728 = vmatpush1.bf16.msra.mxu0 0
    %1729 = vmatprep.subr.bf16.mxu0 0
    %1730 = vmatpush1.bf16.msra.mxu0 0
    %1731 = vmatprep.subr.bf16.mxu0 0
    %1732 = vmatpush1.bf16.msra.mxu0 0
    %1733 = vmatprep.mubr.bf16.mxu0 0
    %1734 = vmatmul.mubr.bf16.gmra.mrb[0].mxu0 %v1700
    %v1735 = vpop.f32.mrb[0].mxu0
    %v1736 = vadd.f32 0.0, %v1735
    %v1737 = vpop.f32.mrb[0].mxu0
    %v1738 = vadd.f32 0.0, %v1737
    %v1739 = vpop.f32.mrb[0].mxu0
    %v1740 = vpop.f32.mrb[0].mxu0
    %1741 = vdwg.mxu0
    %1742 = vmatprep.subr.bf16.mxu0 %v181
    %1743 = vmatpush1.bf16.msra.mxu0 %v180
    %1744 = vmatprep.subr.bf16.mxu0 %v185
    %1745 = vmatpush1.bf16.msra.mxu0 %v184
    %1746 = vmatprep.subr.bf16.mxu0 %v189
    %1747 = vmatpush1.bf16.msra.mxu0 %v188
    %1748 = vmatprep.subr.bf16.mxu0 %v193
    %1749 = vmatpush1.bf16.msra.mxu0 %v192
    %1750 = vmatprep.subr.bf16.mxu0 %v197
    %1751 = vmatpush1.bf16.msra.mxu0 %v196
    %1752 = vmatprep.subr.bf16.mxu0 %v201
    %1753 = vmatpush1.bf16.msra.mxu0 %v200
    %1754 = vmatprep.subr.bf16.mxu0 %v205
    %1755 = vmatpush1.bf16.msra.mxu0 %v204
    %1756 = vmatprep.subr.bf16.mxu0 %v209
    %1757 = vmatpush1.bf16.msra.mxu0 %v208
    %1758 = vmatprep.subr.bf16.mxu0 0
    %1759 = vmatpush1.bf16.msra.mxu0 0
    %1760 = vmatprep.subr.bf16.mxu0 0
    %1761 = vmatpush1.bf16.msra.mxu0 0
    %1762 = vmatprep.subr.bf16.mxu0 0
    %1763 = vmatpush1.bf16.msra.mxu0 0
    %1764 = vmatprep.subr.bf16.mxu0 0
    %1765 = vmatpush1.bf16.msra.mxu0 0
    %1766 = vmatprep.subr.bf16.mxu0 0
    %1767 = vmatpush1.bf16.msra.mxu0 0
    %1768 = vmatprep.subr.bf16.mxu0 0
    %1769 = vmatpush1.bf16.msra.mxu0 0
    %1770 = vmatprep.subr.bf16.mxu0 0
    %1771 = vmatpush1.bf16.msra.mxu0 0
    %1772 = vmatprep.subr.bf16.mxu0 0
    %1773 = vmatpush1.bf16.msra.mxu0 0
    %1774 = vmatprep.mubr.bf16.mxu0 0
    %1775 = vmatmul.mubr.bf16.gmra.mrb[0].mxu0 %v1700
    %v1776 = vpop.f32.mrb[0].mxu0
    %v1777 = vadd.f32 0.0, %v1776
    %v1778 = vpop.f32.mrb[0].mxu0
    %v1779 = vadd.f32 0.0, %v1778
    %v1780 = vpop.f32.mrb[0].mxu0
    %v1781 = vpop.f32.mrb[0].mxu0
    %1782 = vdwg.mxu0
    %v1784 = vsel %vm404, %v1699, 0
    %1786 = vmatprep.subr.bf16.mxu0 %v373
    %1787 = vmatpush1.bf16.msra.mxu0 %v372
    %1788 = vmatprep.subr.bf16.mxu0 %v377
    %1789 = vmatpush1.bf16.msra.mxu0 %v376
    %1790 = vmatprep.subr.bf16.mxu0 %v381
    %1791 = vmatpush1.bf16.msra.mxu0 %v380
    %1792 = vmatprep.subr.bf16.mxu0 %v385
    %1793 = vmatpush1.bf16.msra.mxu0 %v384
    %1794 = vmatprep.subr.bf16.mxu0 0
    %1795 = vmatpush1.bf16.msra.mxu0 0
    %1796 = vmatprep.subr.bf16.mxu0 0
    %1797 = vmatpush1.bf16.msra.mxu0 0
    %1798 = vmatprep.subr.bf16.mxu0 0
    %1799 = vmatpush1.bf16.msra.mxu0 0
    %1800 = vmatprep.subr.bf16.mxu0 0
    %1801 = vmatpush1.bf16.msra.mxu0 0
    %1802 = vmatprep.subr.bf16.mxu0 0
    %1803 = vmatpush1.bf16.msra.mxu0 0
    %1804 = vmatprep.subr.bf16.mxu0 0
    %1805 = vmatpush1.bf16.msra.mxu0 0
    %1806 = vmatprep.subr.bf16.mxu0 0
    %1807 = vmatpush1.bf16.msra.mxu0 0
    %1808 = vmatprep.subr.bf16.mxu0 0
    %1809 = vmatpush1.bf16.msra.mxu0 0
    %1810 = vmatprep.subr.bf16.mxu0 0
    %1811 = vmatpush1.bf16.msra.mxu0 0
    %1812 = vmatprep.subr.bf16.mxu0 0
    %1813 = vmatpush1.bf16.msra.mxu0 0
    %1814 = vmatprep.subr.bf16.mxu0 0
    %1815 = vmatpush1.bf16.msra.mxu0 0
    %1816 = vmatprep.subr.bf16.mxu0 0
    %1817 = vmatpush1.bf16.msra.mxu0 0
    %1818 = vmatprep.mubr.bf16.mxu0 0
    %1819 = vmatmul.mubr.bf16.gmra.mrb[0].mxu0 %v1784
    %v1820 = vpop.f32.mrb[0].mxu0
    %v1821 = vadd.f32 %v1736, %v1820
    %v1822 = vpop.f32.mrb[0].mxu0
    %v1823 = vadd.f32 %v1738, %v1822
    %v1824 = vpop.f32.mrb[0].mxu0
    %v1825 = vpop.f32.mrb[0].mxu0
    %1826 = vdwg.mxu0
    %1827 = vmatprep.subr.bf16.mxu0 %v375
    %1828 = vmatpush1.bf16.msra.mxu0 %v374
    %1829 = vmatprep.subr.bf16.mxu0 %v379
    %1830 = vmatpush1.bf16.msra.mxu0 %v378
    %1831 = vmatprep.subr.bf16.mxu0 %v383
    %1832 = vmatpush1.bf16.msra.mxu0 %v382
    %1833 = vmatprep.subr.bf16.mxu0 %v387
    %1834 = vmatpush1.bf16.msra.mxu0 %v386
    %1835 = vmatprep.subr.bf16.mxu0 0
    %1836 = vmatpush1.bf16.msra.mxu0 0
    %1837 = vmatprep.subr.bf16.mxu0 0
    %1838 = vmatpush1.bf16.msra.mxu0 0
    %1839 = vmatprep.subr.bf16.mxu0 0
    %1840 = vmatpush1.bf16.msra.mxu0 0
    %1841 = vmatprep.subr.bf16.mxu0 0
    %1842 = vmatpush1.bf16.msra.mxu0 0
    %1843 = vmatprep.subr.bf16.mxu0 0
    %1844 = vmatpush1.bf16.msra.mxu0 0
    %1845 = vmatprep.subr.bf16.mxu0 0
    %1846 = vmatpush1.bf16.msra.mxu0 0
    %1847 = vmatprep.subr.bf16.mxu0 0
    %1848 = vmatpush1.bf16.msra.mxu0 0
    %1849 = vmatprep.subr.bf16.mxu0 0
    %1850 = vmatpush1.bf16.msra.mxu0 0
    %1851 = vmatprep.subr.bf16.mxu0 0
    %1852 = vmatpush1.bf16.msra.mxu0 0
    %1853 = vmatprep.subr.bf16.mxu0 0
    %1854 = vmatpush1.bf16.msra.mxu0 0
    %1855 = vmatprep.subr.bf16.mxu0 0
    %1856 = vmatpush1.bf16.msra.mxu0 0
    %1857 = vmatprep.subr.bf16.mxu0 0
    %1858 = vmatpush1.bf16.msra.mxu0 0
    %1859 = vmatprep.mubr.bf16.mxu0 0
    %1860 = vmatmul.mubr.bf16.gmra.mrb[0].mxu0 %v1784
    %v1861 = vpop.f32.mrb[0].mxu0
    %v1862 = vadd.f32 %v1777, %v1861
    %v1863 = vpop.f32.mrb[0].mxu0
    %v1864 = vadd.f32 %v1779, %v1863
    %v1865 = vpop.f32.mrb[0].mxu0
    %v1866 = vpop.f32.mrb[0].mxu0
    %1867 = vdwg.mxu0
    %v1868 = vadd.f32 %v1821, %v494
    %v1869 = vadd.f32 %v1823, %v498
    %v1870 = vadd.f32 %v1862, %v502
    %v1871 = vadd.f32 %v1864, %v506
    %v1872 = vmul.f32 %v1868, 0.5
    %v1873 = vtanh.pop %v1872
    %v1874 = vmul.f32 %v1873, 0.5
    %v1875 = vadd.f32 %v1874, 0.5
    %v1876 = vmul.f32 %v1869, 0.5
    %v1877 = vtanh.pop %v1876
    %v1878 = vmul.f32 %v1877, 0.5
    %v1879 = vadd.f32 %v1878, 0.5
    %v1880 = vtanh.pop %v1870
    %v1881 = vmul.f32 %v1871, 0.5
    %v1882 = vtanh.pop %v1881
    %v1883 = vmul.f32 %v1882, 0.5
    %v1884 = vadd.f32 %v1883, 0.5
    %v1885 = vmul.f32 %v1879, %v1693
    %v1886 = vmul.f32 %v1875, %v1880
    %v1887 = vadd.f32 %v1885, %v1886
    %v1888 = vtanh.pop %v1887
    %v1889 = vmul.f32 %v1884, %v1888
    %s1890 = scalar_lea.vmem %s4, 56
    %1891 = vst [vmem:[%s1890] sm:$0xff] %v1889
    %s1892 = scalar_lea.vmem %s0, 32
    %v1893 = vld [vmem:[%s1892] sm:$0xf]
    %v1894 = vpack.c.bf16 %v1889, %v1889
    %1895 = vmatprep.subr.bf16.mxu0 %v179
    %1896 = vmatpush1.bf16.msra.mxu0 %v178
    %1897 = vmatprep.subr.bf16.mxu0 %v183
    %1898 = vmatpush1.bf16.msra.mxu0 %v182
    %1899 = vmatprep.subr.bf16.mxu0 %v187
    %1900 = vmatpush1.bf16.msra.mxu0 %v186
    %1901 = vmatprep.subr.bf16.mxu0 %v191
    %1902 = vmatpush1.bf16.msra.mxu0 %v190
    %1903 = vmatprep.subr.bf16.mxu0 %v195
    %1904 = vmatpush1.bf16.msra.mxu0 %v194
    %1905 = vmatprep.subr.bf16.mxu0 %v199
    %1906 = vmatpush1.bf16.msra.mxu0 %v198
    %1907 = vmatprep.subr.bf16.mxu0 %v203
    %1908 = vmatpush1.bf16.msra.mxu0 %v202
    %1909 = vmatprep.subr.bf16.mxu0 %v207
    %1910 = vmatpush1.bf16.msra.mxu0 %v206
    %1911 = vmatprep.subr.bf16.mxu0 0
    %1912 = vmatpush1.bf16.msra.mxu0 0
    %1913 = vmatprep.subr.bf16.mxu0 0
    %1914 = vmatpush1.bf16.msra.mxu0 0
    %1915 = vmatprep.subr.bf16.mxu0 0
    %1916 = vmatpush1.bf16.msra.mxu0 0
    %1917 = vmatprep.subr.bf16.mxu0 0
    %1918 = vmatpush1.bf16.msra.mxu0 0
    %1919 = vmatprep.subr.bf16.mxu0 0
    %1920 = vmatpush1.bf16.msra.mxu0 0
    %1921 = vmatprep.subr.bf16.mxu0 0
    %1922 = vmatpush1.bf16.msra.mxu0 0
    %1923 = vmatprep.subr.bf16.mxu0 0
    %1924 = vmatpush1.bf16.msra.mxu0 0
    %1925 = vmatprep.subr.bf16.mxu0 0
    %1926 = vmatpush1.bf16.msra.mxu0 0
    %1927 = vmatprep.mubr.bf16.mxu0 0
    %1928 = vmatmul.mubr.bf16.gmra.mrb[0].mxu0 %v1894
    %v1929 = vpop.f32.mrb[0].mxu0
    %v1930 = vadd.f32 0.0, %v1929
    %v1931 = vpop.f32.mrb[0].mxu0
    %v1932 = vadd.f32 0.0, %v1931
    %v1933 = vpop.f32.mrb[0].mxu0
    %v1934 = vpop.f32.mrb[0].mxu0
    %1935 = vdwg.mxu0
    %1936 = vmatprep.subr.bf16.mxu0 %v181
    %1937 = vmatpush1.bf16.msra.mxu0 %v180
    %1938 = vmatprep.subr.bf16.mxu0 %v185
    %1939 = vmatpush1.bf16.msra.mxu0 %v184
    %1940 = vmatprep.subr.bf16.mxu0 %v189
    %1941 = vmatpush1.bf16.msra.mxu0 %v188
    %1942 = vmatprep.subr.bf16.mxu0 %v193
    %1943 = vmatpush1.bf16.msra.mxu0 %v192
    %1944 = vmatprep.subr.bf16.mxu0 %v197
    %1945 = vmatpush1.bf16.msra.mxu0 %v196
    %1946 = vmatprep.subr.bf16.mxu0 %v201
    %1947 = vmatpush1.bf16.msra.mxu0 %v200
    %1948 = vmatprep.subr.bf16.mxu0 %v205
    %1949 = vmatpush1.bf16.msra.mxu0 %v204
    %1950 = vmatprep.subr.bf16.mxu0 %v209
    %1951 = vmatpush1.bf16.msra.mxu0 %v208
    %1952 = vmatprep.subr.bf16.mxu0 0
    %1953 = vmatpush1.bf16.msra.mxu0 0
    %1954 = vmatprep.subr.bf16.mxu0 0
    %1955 = vmatpush1.bf16.msra.mxu0 0
    %1956 = vmatprep.subr.bf16.mxu0 0
    %1957 = vmatpush1.bf16.msra.mxu0 0
    %1958 = vmatprep.subr.bf16.mxu0 0
    %1959 = vmatpush1.bf16.msra.mxu0 0
    %1960 = vmatprep.subr.bf16.mxu0 0
    %1961 = vmatpush1.bf16.msra.mxu0 0
    %1962 = vmatprep.subr.bf16.mxu0 0
    %1963 = vmatpush1.bf16.msra.mxu0 0
    %1964 = vmatprep.subr.bf16.mxu0 0
    %1965 = vmatpush1.bf16.msra.mxu0 0
    %1966 = vmatprep.subr.bf16.mxu0 0
    %1967 = vmatpush1.bf16.msra.mxu0 0
    %1968 = vmatprep.mubr.bf16.mxu0 0
    %1969 = vmatmul.mubr.bf16.gmra.mrb[0].mxu0 %v1894
    %v1970 = vpop.f32.mrb[0].mxu0
    %v1971 = vadd.f32 0.0, %v1970
    %v1972 = vpop.f32.mrb[0].mxu0
    %v1973 = vadd.f32 0.0, %v1972
    %v1974 = vpop.f32.mrb[0].mxu0
    %v1975 = vpop.f32.mrb[0].mxu0
    %1976 = vdwg.mxu0
    %v1978 = vsel %vm404, %v1893, 0
    %1980 = vmatprep.subr.bf16.mxu0 %v373
    %1981 = vmatpush1.bf16.msra.mxu0 %v372
    %1982 = vmatprep.subr.bf16.mxu0 %v377
    %1983 = vmatpush1.bf16.msra.mxu0 %v376
    %1984 = vmatprep.subr.bf16.mxu0 %v381
    %1985 = vmatpush1.bf16.msra.mxu0 %v380
    %1986 = vmatprep.subr.bf16.mxu0 %v385
    %1987 = vmatpush1.bf16.msra.mxu0 %v384
    %1988 = vmatprep.subr.bf16.mxu0 0
    %1989 = vmatpush1.bf16.msra.mxu0 0
    %1990 = vmatprep.subr.bf16.mxu0 0
    %1991 = vmatpush1.bf16.msra.mxu0 0
    %1992 = vmatprep.subr.bf16.mxu0 0
    %1993 = vmatpush1.bf16.msra.mxu0 0
    %1994 = vmatprep.subr.bf16.mxu0 0
    %1995 = vmatpush1.bf16.msra.mxu0 0
    %1996 = vmatprep.subr.bf16.mxu0 0
    %1997 = vmatpush1.bf16.msra.mxu0 0
    %1998 = vmatprep.subr.bf16.mxu0 0
    %1999 = vmatpush1.bf16.msra.mxu0 0
    %2000 = vmatprep.subr.bf16.mxu0 0
    %2001 = vmatpush1.bf16.msra.mxu0 0
    %2002 = vmatprep.subr.bf16.mxu0 0
    %2003 = vmatpush1.bf16.msra.mxu0 0
    %2004 = vmatprep.subr.bf16.mxu0 0
    %2005 = vmatpush1.bf16.msra.mxu0 0
    %2006 = vmatprep.subr.bf16.mxu0 0
    %2007 = vmatpush1.bf16.msra.mxu0 0
    %2008 = vmatprep.subr.bf16.mxu0 0
    %2009 = vmatpush1.bf16.msra.mxu0 0
    %2010 = vmatprep.subr.bf16.mxu0 0
    %2011 = vmatpush1.bf16.msra.mxu0 0
    %2012 = vmatprep.mubr.bf16.mxu0 0
    %2013 = vmatmul.mubr.bf16.gmra.mrb[0].mxu0 %v1978
    %v2014 = vpop.f32.mrb[0].mxu0
    %v2015 = vadd.f32 %v1930, %v2014
    %v2016 = vpop.f32.mrb[0].mxu0
    %v2017 = vadd.f32 %v1932, %v2016
    %v2018 = vpop.f32.mrb[0].mxu0
    %v2019 = vpop.f32.mrb[0].mxu0
    %2020 = vdwg.mxu0
    %2021 = vmatprep.subr.bf16.mxu0 %v375
    %2022 = vmatpush1.bf16.msra.mxu0 %v374
    %2023 = vmatprep.subr.bf16.mxu0 %v379
    %2024 = vmatpush1.bf16.msra.mxu0 %v378
    %2025 = vmatprep.subr.bf16.mxu0 %v383
    %2026 = vmatpush1.bf16.msra.mxu0 %v382
    %2027 = vmatprep.subr.bf16.mxu0 %v387
    %2028 = vmatpush1.bf16.msra.mxu0 %v386
    %2029 = vmatprep.subr.bf16.mxu0 0
    %2030 = vmatpush1.bf16.msra.mxu0 0
    %2031 = vmatprep.subr.bf16.mxu0 0
    %2032 = vmatpush1.bf16.msra.mxu0 0
    %2033 = vmatprep.subr.bf16.mxu0 0
    %2034 = vmatpush1.bf16.msra.mxu0 0
    %2035 = vmatprep.subr.bf16.mxu0 0
    %2036 = vmatpush1.bf16.msra.mxu0 0
    %2037 = vmatprep.subr.bf16.mxu0 0
    %2038 = vmatpush1.bf16.msra.mxu0 0
    %2039 = vmatprep.subr.bf16.mxu0 0
    %2040 = vmatpush1.bf16.msra.mxu0 0
    %2041 = vmatprep.subr.bf16.mxu0 0
    %2042 = vmatpush1.bf16.msra.mxu0 0
    %2043 = vmatprep.subr.bf16.mxu0 0
    %2044 = vmatpush1.bf16.msra.mxu0 0
    %2045 = vmatprep.subr.bf16.mxu0 0
    %2046 = vmatpush1.bf16.msra.mxu0 0
    %2047 = vmatprep.subr.bf16.mxu0 0
    %2048 = vmatpush1.bf16.msra.mxu0 0
    %2049 = vmatprep.subr.bf16.mxu0 0
    %2050 = vmatpush1.bf16.msra.mxu0 0
    %2051 = vmatprep.subr.bf16.mxu0 0
    %2052 = vmatpush1.bf16.msra.mxu0 0
    %2053 = vmatprep.mubr.bf16.mxu0 0
    %2054 = vmatmul.mubr.bf16.gmra.mrb[0].mxu0 %v1978
    %v2055 = vpop.f32.mrb[0].mxu0
    %v2056 = vadd.f32 %v1971, %v2055
    %v2057 = vpop.f32.mrb[0].mxu0
    %v2058 = vadd.f32 %v1973, %v2057
    %v2059 = vpop.f32.mrb[0].mxu0
    %v2060 = vpop.f32.mrb[0].mxu0
    %2061 = vdwg.mxu0
    %v2062 = vadd.f32 %v2015, %v494
    %v2063 = vadd.f32 %v2017, %v498
    %v2064 = vadd.f32 %v2056, %v502
    %v2065 = vadd.f32 %v2058, %v506
    %v2066 = vmul.f32 %v2062, 0.5
    %v2067 = vtanh.pop %v2066
    %v2068 = vmul.f32 %v2067, 0.5
    %v2069 = vadd.f32 %v2068, 0.5
    %v2070 = vmul.f32 %v2063, 0.5
    %v2071 = vtanh.pop %v2070
    %v2072 = vmul.f32 %v2071, 0.5
    %v2073 = vadd.f32 %v2072, 0.5
    %v2074 = vtanh.pop %v2064
    %v2075 = vmul.f32 %v2065, 0.5
    %v2076 = vtanh.pop %v2075
    %v2077 = vmul.f32 %v2076, 0.5
    %v2078 = vadd.f32 %v2077, 0.5
    %v2079 = vmul.f32 %v2073, %v1887
    %v2080 = vmul.f32 %v2069, %v2074
    %v2081 = vadd.f32 %v2079, %v2080
    %v2082 = vtanh.pop %v2081
    %v2083 = vmul.f32 %v2078, %v2082
    %s2084 = scalar_lea.vmem %s4, 64
    %2085 = vst [vmem:[%s2084] sm:$0xff] %v2083
    %s2086 = scalar_lea.vmem %s0, 36
    %v2087 = vld [vmem:[%s2086] sm:$0xf]
    %v2088 = vpack.c.bf16 %v2083, %v2083
    %2089 = vmatprep.subr.bf16.mxu0 %v179
    %2090 = vmatpush1.bf16.msra.mxu0 %v178
    %2091 = vmatprep.subr.bf16.mxu0 %v183
    %2092 = vmatpush1.bf16.msra.mxu0 %v182
    %2093 = vmatprep.subr.bf16.mxu0 %v187
    %2094 = vmatpush1.bf16.msra.mxu0 %v186
    %2095 = vmatprep.subr.bf16.mxu0 %v191
    %2096 = vmatpush1.bf16.msra.mxu0 %v190
    %2097 = vmatprep.subr.bf16.mxu0 %v195
    %2098 = vmatpush1.bf16.msra.mxu0 %v194
    %2099 = vmatprep.subr.bf16.mxu0 %v199
    %2100 = vmatpush1.bf16.msra.mxu0 %v198
    %2101 = vmatprep.subr.bf16.mxu0 %v203
    %2102 = vmatpush1.bf16.msra.mxu0 %v202
    %2103 = vmatprep.subr.bf16.mxu0 %v207
    %2104 = vmatpush1.bf16.msra.mxu0 %v206
    %2105 = vmatprep.subr.bf16.mxu0 0
    %2106 = vmatpush1.bf16.msra.mxu0 0
    %2107 = vmatprep.subr.bf16.mxu0 0
    %2108 = vmatpush1.bf16.msra.mxu0 0
    %2109 = vmatprep.subr.bf16.mxu0 0
    %2110 = vmatpush1.bf16.msra.mxu0 0
    %2111 = vmatprep.subr.bf16.mxu0 0
    %2112 = vmatpush1.bf16.msra.mxu0 0
    %2113 = vmatprep.subr.bf16.mxu0 0
    %2114 = vmatpush1.bf16.msra.mxu0 0
    %2115 = vmatprep.subr.bf16.mxu0 0
    %2116 = vmatpush1.bf16.msra.mxu0 0
    %2117 = vmatprep.subr.bf16.mxu0 0
    %2118 = vmatpush1.bf16.msra.mxu0 0
    %2119 = vmatprep.subr.bf16.mxu0 0
    %2120 = vmatpush1.bf16.msra.mxu0 0
    %2121 = vmatprep.mubr.bf16.mxu0 0
    %2122 = vmatmul.mubr.bf16.gmra.mrb[0].mxu0 %v2088
    %v2123 = vpop.f32.mrb[0].mxu0
    %v2124 = vadd.f32 0.0, %v2123
    %v2125 = vpop.f32.mrb[0].mxu0
    %v2126 = vadd.f32 0.0, %v2125
    %v2127 = vpop.f32.mrb[0].mxu0
    %v2128 = vpop.f32.mrb[0].mxu0
    %2129 = vdwg.mxu0
    %2130 = vmatprep.subr.bf16.mxu0 %v181
    %2131 = vmatpush1.bf16.msra.mxu0 %v180
    %2132 = vmatprep.subr.bf16.mxu0 %v185
    %2133 = vmatpush1.bf16.msra.mxu0 %v184
    %2134 = vmatprep.subr.bf16.mxu0 %v189
    %2135 = vmatpush1.bf16.msra.mxu0 %v188
    %2136 = vmatprep.subr.bf16.mxu0 %v193
    %2137 = vmatpush1.bf16.msra.mxu0 %v192
    %2138 = vmatprep.subr.bf16.mxu0 %v197
    %2139 = vmatpush1.bf16.msra.mxu0 %v196
    %2140 = vmatprep.subr.bf16.mxu0 %v201
    %2141 = vmatpush1.bf16.msra.mxu0 %v200
    %2142 = vmatprep.subr.bf16.mxu0 %v205
    %2143 = vmatpush1.bf16.msra.mxu0 %v204
    %2144 = vmatprep.subr.bf16.mxu0 %v209
    %2145 = vmatpush1.bf16.msra.mxu0 %v208
    %2146 = vmatprep.subr.bf16.mxu0 0
    %2147 = vmatpush1.bf16.msra.mxu0 0
    %2148 = vmatprep.subr.bf16.mxu0 0
    %2149 = vmatpush1.bf16.msra.mxu0 0
    %2150 = vmatprep.subr.bf16.mxu0 0
    %2151 = vmatpush1.bf16.msra.mxu0 0
    %2152 = vmatprep.subr.bf16.mxu0 0
    %2153 = vmatpush1.bf16.msra.mxu0 0
    %2154 = vmatprep.subr.bf16.mxu0 0
    %2155 = vmatpush1.bf16.msra.mxu0 0
    %2156 = vmatprep.subr.bf16.mxu0 0
    %2157 = vmatpush1.bf16.msra.mxu0 0
    %2158 = vmatprep.subr.bf16.mxu0 0
    %2159 = vmatpush1.bf16.msra.mxu0 0
    %2160 = vmatprep.subr.bf16.mxu0 0
    %2161 = vmatpush1.bf16.msra.mxu0 0
    %2162 = vmatprep.mubr.bf16.mxu0 0
    %2163 = vmatmul.mubr.bf16.gmra.mrb[0].mxu0 %v2088
    %v2164 = vpop.f32.mrb[0].mxu0
    %v2165 = vadd.f32 0.0, %v2164
    %v2166 = vpop.f32.mrb[0].mxu0
    %v2167 = vadd.f32 0.0, %v2166
    %v2168 = vpop.f32.mrb[0].mxu0
    %v2169 = vpop.f32.mrb[0].mxu0
    %2170 = vdwg.mxu0
    %v2172 = vsel %vm404, %v2087, 0
    %2174 = vmatprep.subr.bf16.mxu0 %v373
    %2175 = vmatpush1.bf16.msra.mxu0 %v372
    %2176 = vmatprep.subr.bf16.mxu0 %v377
    %2177 = vmatpush1.bf16.msra.mxu0 %v376
    %2178 = vmatprep.subr.bf16.mxu0 %v381
    %2179 = vmatpush1.bf16.msra.mxu0 %v380
    %2180 = vmatprep.subr.bf16.mxu0 %v385
    %2181 = vmatpush1.bf16.msra.mxu0 %v384
    %2182 = vmatprep.subr.bf16.mxu0 0
    %2183 = vmatpush1.bf16.msra.mxu0 0
    %2184 = vmatprep.subr.bf16.mxu0 0
    %2185 = vmatpush1.bf16.msra.mxu0 0
    %2186 = vmatprep.subr.bf16.mxu0 0
    %2187 = vmatpush1.bf16.msra.mxu0 0
    %2188 = vmatprep.subr.bf16.mxu0 0
    %2189 = vmatpush1.bf16.msra.mxu0 0
    %2190 = vmatprep.subr.bf16.mxu0 0
    %2191 = vmatpush1.bf16.msra.mxu0 0
    %2192 = vmatprep.subr.bf16.mxu0 0
    %2193 = vmatpush1.bf16.msra.mxu0 0
    %2194 = vmatprep.subr.bf16.mxu0 0
    %2195 = vmatpush1.bf16.msra.mxu0 0
    %2196 = vmatprep.subr.bf16.mxu0 0
    %2197 = vmatpush1.bf16.msra.mxu0 0
    %2198 = vmatprep.subr.bf16.mxu0 0
    %2199 = vmatpush1.bf16.msra.mxu0 0
    %2200 = vmatprep.subr.bf16.mxu0 0
    %2201 = vmatpush1.bf16.msra.mxu0 0
    %2202 = vmatprep.subr.bf16.mxu0 0
    %2203 = vmatpush1.bf16.msra.mxu0 0
    %2204 = vmatprep.subr.bf16.mxu0 0
    %2205 = vmatpush1.bf16.msra.mxu0 0
    %2206 = vmatprep.mubr.bf16.mxu0 0
    %2207 = vmatmul.mubr.bf16.gmra.mrb[0].mxu0 %v2172
    %v2208 = vpop.f32.mrb[0].mxu0
    %v2209 = vadd.f32 %v2124, %v2208
    %v2210 = vpop.f32.mrb[0].mxu0
    %v2211 = vadd.f32 %v2126, %v2210
    %v2212 = vpop.f32.mrb[0].mxu0
    %v2213 = vpop.f32.mrb[0].mxu0
    %2214 = vdwg.mxu0
    %2215 = vmatprep.subr.bf16.mxu0 %v375
    %2216 = vmatpush1.bf16.msra.mxu0 %v374
    %2217 = vmatprep.subr.bf16.mxu0 %v379
    %2218 = vmatpush1.bf16.msra.mxu0 %v378
    %2219 = vmatprep.subr.bf16.mxu0 %v383
    %2220 = vmatpush1.bf16.msra.mxu0 %v382
    %2221 = vmatprep.subr.bf16.mxu0 %v387
    %2222 = vmatpush1.bf16.msra.mxu0 %v386
    %2223 = vmatprep.subr.bf16.mxu0 0
    %2224 = vmatpush1.bf16.msra.mxu0 0
    %2225 = vmatprep.subr.bf16.mxu0 0
    %2226 = vmatpush1.bf16.msra.mxu0 0
    %2227 = vmatprep.subr.bf16.mxu0 0
    %2228 = vmatpush1.bf16.msra.mxu0 0
    %2229 = vmatprep.subr.bf16.mxu0 0
    %2230 = vmatpush1.bf16.msra.mxu0 0
    %2231 = vmatprep.subr.bf16.mxu0 0
    %2232 = vmatpush1.bf16.msra.mxu0 0
    %2233 = vmatprep.subr.bf16.mxu0 0
    %2234 = vmatpush1.bf16.msra.mxu0 0
    %2235 = vmatprep.subr.bf16.mxu0 0
    %2236 = vmatpush1.bf16.msra.mxu0 0
    %2237 = vmatprep.subr.bf16.mxu0 0
    %2238 = vmatpush1.bf16.msra.mxu0 0
    %2239 = vmatprep.subr.bf16.mxu0 0
    %2240 = vmatpush1.bf16.msra.mxu0 0
    %2241 = vmatprep.subr.bf16.mxu0 0
    %2242 = vmatpush1.bf16.msra.mxu0 0
    %2243 = vmatprep.subr.bf16.mxu0 0
    %2244 = vmatpush1.bf16.msra.mxu0 0
    %2245 = vmatprep.subr.bf16.mxu0 0
    %2246 = vmatpush1.bf16.msra.mxu0 0
    %2247 = vmatprep.mubr.bf16.mxu0 0
    %2248 = vmatmul.mubr.bf16.gmra.mrb[0].mxu0 %v2172
    %v2249 = vpop.f32.mrb[0].mxu0
    %v2250 = vadd.f32 %v2165, %v2249
    %v2251 = vpop.f32.mrb[0].mxu0
    %v2252 = vadd.f32 %v2167, %v2251
    %v2253 = vpop.f32.mrb[0].mxu0
    %v2254 = vpop.f32.mrb[0].mxu0
    %2255 = vdwg.mxu0
    %v2256 = vadd.f32 %v2209, %v494
    %v2257 = vadd.f32 %v2211, %v498
    %v2258 = vadd.f32 %v2250, %v502
    %v2259 = vadd.f32 %v2252, %v506
    %v2260 = vmul.f32 %v2256, 0.5
    %v2261 = vtanh.pop %v2260
    %v2262 = vmul.f32 %v2261, 0.5
    %v2263 = vadd.f32 %v2262, 0.5
    %v2264 = vmul.f32 %v2257, 0.5
    %v2265 = vtanh.pop %v2264
    %v2266 = vmul.f32 %v2265, 0.5
    %v2267 = vadd.f32 %v2266, 0.5
    %v2268 = vtanh.pop %v2258
    %v2269 = vmul.f32 %v2259, 0.5
    %v2270 = vtanh.pop %v2269
    %v2271 = vmul.f32 %v2270, 0.5
    %v2272 = vadd.f32 %v2271, 0.5
    %v2273 = vmul.f32 %v2267, %v2081
    %v2274 = vmul.f32 %v2263, %v2268
    %v2275 = vadd.f32 %v2273, %v2274
    %v2276 = vtanh.pop %v2275
    %v2277 = vmul.f32 %v2272, %v2276
    %s2278 = scalar_lea.vmem %s4, 72
    %2279 = vst [vmem:[%s2278] sm:$0xff] %v2277
    %s2280 = scalar_lea.vmem %s0, 40
    %v2281 = vld [vmem:[%s2280] sm:$0xf]
    %v2282 = vpack.c.bf16 %v2277, %v2277
    %2283 = vmatprep.subr.bf16.mxu0 %v179
    %2284 = vmatpush1.bf16.msra.mxu0 %v178
    %2285 = vmatprep.subr.bf16.mxu0 %v183
    %2286 = vmatpush1.bf16.msra.mxu0 %v182
    %2287 = vmatprep.subr.bf16.mxu0 %v187
    %2288 = vmatpush1.bf16.msra.mxu0 %v186
    %2289 = vmatprep.subr.bf16.mxu0 %v191
    %2290 = vmatpush1.bf16.msra.mxu0 %v190
    %2291 = vmatprep.subr.bf16.mxu0 %v195
    %2292 = vmatpush1.bf16.msra.mxu0 %v194
    %2293 = vmatprep.subr.bf16.mxu0 %v199
    %2294 = vmatpush1.bf16.msra.mxu0 %v198
    %2295 = vmatprep.subr.bf16.mxu0 %v203
    %2296 = vmatpush1.bf16.msra.mxu0 %v202
    %2297 = vmatprep.subr.bf16.mxu0 %v207
    %2298 = vmatpush1.bf16.msra.mxu0 %v206
    %2299 = vmatprep.subr.bf16.mxu0 0
    %2300 = vmatpush1.bf16.msra.mxu0 0
    %2301 = vmatprep.subr.bf16.mxu0 0
    %2302 = vmatpush1.bf16.msra.mxu0 0
    %2303 = vmatprep.subr.bf16.mxu0 0
    %2304 = vmatpush1.bf16.msra.mxu0 0
    %2305 = vmatprep.subr.bf16.mxu0 0
    %2306 = vmatpush1.bf16.msra.mxu0 0
    %2307 = vmatprep.subr.bf16.mxu0 0
    %2308 = vmatpush1.bf16.msra.mxu0 0
    %2309 = vmatprep.subr.bf16.mxu0 0
    %2310 = vmatpush1.bf16.msra.mxu0 0
    %2311 = vmatprep.subr.bf16.mxu0 0
    %2312 = vmatpush1.bf16.msra.mxu0 0
    %2313 = vmatprep.subr.bf16.mxu0 0
    %2314 = vmatpush1.bf16.msra.mxu0 0
    %2315 = vmatprep.mubr.bf16.mxu0 0
    %2316 = vmatmul.mubr.bf16.gmra.mrb[0].mxu0 %v2282
    %v2317 = vpop.f32.mrb[0].mxu0
    %v2318 = vadd.f32 0.0, %v2317
    %v2319 = vpop.f32.mrb[0].mxu0
    %v2320 = vadd.f32 0.0, %v2319
    %v2321 = vpop.f32.mrb[0].mxu0
    %v2322 = vpop.f32.mrb[0].mxu0
    %2323 = vdwg.mxu0
    %2324 = vmatprep.subr.bf16.mxu0 %v181
    %2325 = vmatpush1.bf16.msra.mxu0 %v180
    %2326 = vmatprep.subr.bf16.mxu0 %v185
    %2327 = vmatpush1.bf16.msra.mxu0 %v184
    %2328 = vmatprep.subr.bf16.mxu0 %v189
    %2329 = vmatpush1.bf16.msra.mxu0 %v188
    %2330 = vmatprep.subr.bf16.mxu0 %v193
    %2331 = vmatpush1.bf16.msra.mxu0 %v192
    %2332 = vmatprep.subr.bf16.mxu0 %v197
    %2333 = vmatpush1.bf16.msra.mxu0 %v196
    %2334 = vmatprep.subr.bf16.mxu0 %v201
    %2335 = vmatpush1.bf16.msra.mxu0 %v200
    %2336 = vmatprep.subr.bf16.mxu0 %v205
    %2337 = vmatpush1.bf16.msra.mxu0 %v204
    %2338 = vmatprep.subr.bf16.mxu0 %v209
    %2339 = vmatpush1.bf16.msra.mxu0 %v208
    %2340 = vmatprep.subr.bf16.mxu0 0
    %2341 = vmatpush1.bf16.msra.mxu0 0
    %2342 = vmatprep.subr.bf16.mxu0 0
    %2343 = vmatpush1.bf16.msra.mxu0 0
    %2344 = vmatprep.subr.bf16.mxu0 0
    %2345 = vmatpush1.bf16.msra.mxu0 0
    %2346 = vmatprep.subr.bf16.mxu0 0
    %2347 = vmatpush1.bf16.msra.mxu0 0
    %2348 = vmatprep.subr.bf16.mxu0 0
    %2349 = vmatpush1.bf16.msra.mxu0 0
    %2350 = vmatprep.subr.bf16.mxu0 0
    %2351 = vmatpush1.bf16.msra.mxu0 0
    %2352 = vmatprep.subr.bf16.mxu0 0
    %2353 = vmatpush1.bf16.msra.mxu0 0
    %2354 = vmatprep.subr.bf16.mxu0 0
    %2355 = vmatpush1.bf16.msra.mxu0 0
    %2356 = vmatprep.mubr.bf16.mxu0 0
    %2357 = vmatmul.mubr.bf16.gmra.mrb[0].mxu0 %v2282
    %v2358 = vpop.f32.mrb[0].mxu0
    %v2359 = vadd.f32 0.0, %v2358
    %v2360 = vpop.f32.mrb[0].mxu0
    %v2361 = vadd.f32 0.0, %v2360
    %v2362 = vpop.f32.mrb[0].mxu0
    %v2363 = vpop.f32.mrb[0].mxu0
    %2364 = vdwg.mxu0
    %v2366 = vsel %vm404, %v2281, 0
    %2368 = vmatprep.subr.bf16.mxu0 %v373
    %2369 = vmatpush1.bf16.msra.mxu0 %v372
    %2370 = vmatprep.subr.bf16.mxu0 %v377
    %2371 = vmatpush1.bf16.msra.mxu0 %v376
    %2372 = vmatprep.subr.bf16.mxu0 %v381
    %2373 = vmatpush1.bf16.msra.mxu0 %v380
    %2374 = vmatprep.subr.bf16.mxu0 %v385
    %2375 = vmatpush1.bf16.msra.mxu0 %v384
    %2376 = vmatprep.subr.bf16.mxu0 0
    %2377 = vmatpush1.bf16.msra.mxu0 0
    %2378 = vmatprep.subr.bf16.mxu0 0
    %2379 = vmatpush1.bf16.msra.mxu0 0
    %2380 = vmatprep.subr.bf16.mxu0 0
    %2381 = vmatpush1.bf16.msra.mxu0 0
    %2382 = vmatprep.subr.bf16.mxu0 0
    %2383 = vmatpush1.bf16.msra.mxu0 0
    %2384 = vmatprep.subr.bf16.mxu0 0
    %2385 = vmatpush1.bf16.msra.mxu0 0
    %2386 = vmatprep.subr.bf16.mxu0 0
    %2387 = vmatpush1.bf16.msra.mxu0 0
    %2388 = vmatprep.subr.bf16.mxu0 0
    %2389 = vmatpush1.bf16.msra.mxu0 0
    %2390 = vmatprep.subr.bf16.mxu0 0
    %2391 = vmatpush1.bf16.msra.mxu0 0
    %2392 = vmatprep.subr.bf16.mxu0 0
    %2393 = vmatpush1.bf16.msra.mxu0 0
    %2394 = vmatprep.subr.bf16.mxu0 0
    %2395 = vmatpush1.bf16.msra.mxu0 0
    %2396 = vmatprep.subr.bf16.mxu0 0
    %2397 = vmatpush1.bf16.msra.mxu0 0
    %2398 = vmatprep.subr.bf16.mxu0 0
    %2399 = vmatpush1.bf16.msra.mxu0 0
    %2400 = vmatprep.mubr.bf16.mxu0 0
    %2401 = vmatmul.mubr.bf16.gmra.mrb[0].mxu0 %v2366
    %v2402 = vpop.f32.mrb[0].mxu0
    %v2403 = vadd.f32 %v2318, %v2402
    %v2404 = vpop.f32.mrb[0].mxu0
    %v2405 = vadd.f32 %v2320, %v2404
    %v2406 = vpop.f32.mrb[0].mxu0
    %v2407 = vpop.f32.mrb[0].mxu0
    %2408 = vdwg.mxu0
    %2409 = vmatprep.subr.bf16.mxu0 %v375
    %2410 = vmatpush1.bf16.msra.mxu0 %v374
    %2411 = vmatprep.subr.bf16.mxu0 %v379
    %2412 = vmatpush1.bf16.msra.mxu0 %v378
    %2413 = vmatprep.subr.bf16.mxu0 %v383
    %2414 = vmatpush1.bf16.msra.mxu0 %v382
    %2415 = vmatprep.subr.bf16.mxu0 %v387
    %2416 = vmatpush1.bf16.msra.mxu0 %v386
    %2417 = vmatprep.subr.bf16.mxu0 0
    %2418 = vmatpush1.bf16.msra.mxu0 0
    %2419 = vmatprep.subr.bf16.mxu0 0
    %2420 = vmatpush1.bf16.msra.mxu0 0
    %2421 = vmatprep.subr.bf16.mxu0 0
    %2422 = vmatpush1.bf16.msra.mxu0 0
    %2423 = vmatprep.subr.bf16.mxu0 0
    %2424 = vmatpush1.bf16.msra.mxu0 0
    %2425 = vmatprep.subr.bf16.mxu0 0
    %2426 = vmatpush1.bf16.msra.mxu0 0
    %2427 = vmatprep.subr.bf16.mxu0 0
    %2428 = vmatpush1.bf16.msra.mxu0 0
    %2429 = vmatprep.subr.bf16.mxu0 0
    %2430 = vmatpush1.bf16.msra.mxu0 0
    %2431 = vmatprep.subr.bf16.mxu0 0
    %2432 = vmatpush1.bf16.msra.mxu0 0
    %2433 = vmatprep.subr.bf16.mxu0 0
    %2434 = vmatpush1.bf16.msra.mxu0 0
    %2435 = vmatprep.subr.bf16.mxu0 0
    %2436 = vmatpush1.bf16.msra.mxu0 0
    %2437 = vmatprep.subr.bf16.mxu0 0
    %2438 = vmatpush1.bf16.msra.mxu0 0
    %2439 = vmatprep.subr.bf16.mxu0 0
    %2440 = vmatpush1.bf16.msra.mxu0 0
    %2441 = vmatprep.mubr.bf16.mxu0 0
    %2442 = vmatmul.mubr.bf16.gmra.mrb[0].mxu0 %v2366
    %v2443 = vpop.f32.mrb[0].mxu0
    %v2444 = vadd.f32 %v2359, %v2443
    %v2445 = vpop.f32.mrb[0].mxu0
    %v2446 = vadd.f32 %v2361, %v2445
    %v2447 = vpop.f32.mrb[0].mxu0
    %v2448 = vpop.f32.mrb[0].mxu0
    %2449 = vdwg.mxu0
    %v2450 = vadd.f32 %v2403, %v494
    %v2451 = vadd.f32 %v2405, %v498
    %v2452 = vadd.f32 %v2444, %v502
    %v2453 = vadd.f32 %v2446, %v506
    %v2454 = vmul.f32 %v2450, 0.5
    %v2455 = vtanh.pop %v2454
    %v2456 = vmul.f32 %v2455, 0.5
    %v2457 = vadd.f32 %v2456, 0.5
    %v2458 = vmul.f32 %v2451, 0.5
    %v2459 = vtanh.pop %v2458
    %v2460 = vmul.f32 %v2459, 0.5
    %v2461 = vadd.f32 %v2460, 0.5
    %v2462 = vtanh.pop %v2452
    %v2463 = vmul.f32 %v2453, 0.5
    %v2464 = vtanh.pop %v2463
    %v2465 = vmul.f32 %v2464, 0.5
    %v2466 = vadd.f32 %v2465, 0.5
    %v2467 = vmul.f32 %v2461, %v2275
    %v2468 = vmul.f32 %v2457, %v2462
    %v2469 = vadd.f32 %v2467, %v2468
    %v2470 = vtanh.pop %v2469
    %v2471 = vmul.f32 %v2466, %v2470
    %s2472 = scalar_lea.vmem %s4, 80
    %2473 = vst [vmem:[%s2472] sm:$0xff] %v2471
    %s2474 = scalar_lea.vmem %s0, 44
    %v2475 = vld [vmem:[%s2474] sm:$0xf]
    %v2476 = vpack.c.bf16 %v2471, %v2471
    %2477 = vmatprep.subr.bf16.mxu0 %v179
    %2478 = vmatpush1.bf16.msra.mxu0 %v178
    %2479 = vmatprep.subr.bf16.mxu0 %v183
    %2480 = vmatpush1.bf16.msra.mxu0 %v182
    %2481 = vmatprep.subr.bf16.mxu0 %v187
    %2482 = vmatpush1.bf16.msra.mxu0 %v186
    %2483 = vmatprep.subr.bf16.mxu0 %v191
    %2484 = vmatpush1.bf16.msra.mxu0 %v190
    %2485 = vmatprep.subr.bf16.mxu0 %v195
    %2486 = vmatpush1.bf16.msra.mxu0 %v194
    %2487 = vmatprep.subr.bf16.mxu0 %v199
    %2488 = vmatpush1.bf16.msra.mxu0 %v198
    %2489 = vmatprep.subr.bf16.mxu0 %v203
    %2490 = vmatpush1.bf16.msra.mxu0 %v202
    %2491 = vmatprep.subr.bf16.mxu0 %v207
    %2492 = vmatpush1.bf16.msra.mxu0 %v206
    %2493 = vmatprep.subr.bf16.mxu0 0
    %2494 = vmatpush1.bf16.msra.mxu0 0
    %2495 = vmatprep.subr.bf16.mxu0 0
    %2496 = vmatpush1.bf16.msra.mxu0 0
    %2497 = vmatprep.subr.bf16.mxu0 0
    %2498 = vmatpush1.bf16.msra.mxu0 0
    %2499 = vmatprep.subr.bf16.mxu0 0
    %2500 = vmatpush1.bf16.msra.mxu0 0
    %2501 = vmatprep.subr.bf16.mxu0 0
    %2502 = vmatpush1.bf16.msra.mxu0 0
    %2503 = vmatprep.subr.bf16.mxu0 0
    %2504 = vmatpush1.bf16.msra.mxu0 0
    %2505 = vmatprep.subr.bf16.mxu0 0
    %2506 = vmatpush1.bf16.msra.mxu0 0
    %2507 = vmatprep.subr.bf16.mxu0 0
    %2508 = vmatpush1.bf16.msra.mxu0 0
    %2509 = vmatprep.mubr.bf16.mxu0 0
    %2510 = vmatmul.mubr.bf16.gmra.mrb[0].mxu0 %v2476
    %v2511 = vpop.f32.mrb[0].mxu0
    %v2512 = vadd.f32 0.0, %v2511
    %v2513 = vpop.f32.mrb[0].mxu0
    %v2514 = vadd.f32 0.0, %v2513
    %v2515 = vpop.f32.mrb[0].mxu0
    %v2516 = vpop.f32.mrb[0].mxu0
    %2517 = vdwg.mxu0
    %2518 = vmatprep.subr.bf16.mxu0 %v181
    %2519 = vmatpush1.bf16.msra.mxu0 %v180
    %2520 = vmatprep.subr.bf16.mxu0 %v185
    %2521 = vmatpush1.bf16.msra.mxu0 %v184
    %2522 = vmatprep.subr.bf16.mxu0 %v189
    %2523 = vmatpush1.bf16.msra.mxu0 %v188
    %2524 = vmatprep.subr.bf16.mxu0 %v193
    %2525 = vmatpush1.bf16.msra.mxu0 %v192
    %2526 = vmatprep.subr.bf16.mxu0 %v197
    %2527 = vmatpush1.bf16.msra.mxu0 %v196
    %2528 = vmatprep.subr.bf16.mxu0 %v201
    %2529 = vmatpush1.bf16.msra.mxu0 %v200
    %2530 = vmatprep.subr.bf16.mxu0 %v205
    %2531 = vmatpush1.bf16.msra.mxu0 %v204
    %2532 = vmatprep.subr.bf16.mxu0 %v209
    %2533 = vmatpush1.bf16.msra.mxu0 %v208
    %2534 = vmatprep.subr.bf16.mxu0 0
    %2535 = vmatpush1.bf16.msra.mxu0 0
    %2536 = vmatprep.subr.bf16.mxu0 0
    %2537 = vmatpush1.bf16.msra.mxu0 0
    %2538 = vmatprep.subr.bf16.mxu0 0
    %2539 = vmatpush1.bf16.msra.mxu0 0
    %2540 = vmatprep.subr.bf16.mxu0 0
    %2541 = vmatpush1.bf16.msra.mxu0 0
    %2542 = vmatprep.subr.bf16.mxu0 0
    %2543 = vmatpush1.bf16.msra.mxu0 0
    %2544 = vmatprep.subr.bf16.mxu0 0
    %2545 = vmatpush1.bf16.msra.mxu0 0
    %2546 = vmatprep.subr.bf16.mxu0 0
    %2547 = vmatpush1.bf16.msra.mxu0 0
    %2548 = vmatprep.subr.bf16.mxu0 0
    %2549 = vmatpush1.bf16.msra.mxu0 0
    %2550 = vmatprep.mubr.bf16.mxu0 0
    %2551 = vmatmul.mubr.bf16.gmra.mrb[0].mxu0 %v2476
    %v2552 = vpop.f32.mrb[0].mxu0
    %v2553 = vadd.f32 0.0, %v2552
    %v2554 = vpop.f32.mrb[0].mxu0
    %v2555 = vadd.f32 0.0, %v2554
    %v2556 = vpop.f32.mrb[0].mxu0
    %v2557 = vpop.f32.mrb[0].mxu0
    %2558 = vdwg.mxu0
    %v2560 = vsel %vm404, %v2475, 0
    %2562 = vmatprep.subr.bf16.mxu0 %v373
    %2563 = vmatpush1.bf16.msra.mxu0 %v372
    %2564 = vmatprep.subr.bf16.mxu0 %v377
    %2565 = vmatpush1.bf16.msra.mxu0 %v376
    %2566 = vmatprep.subr.bf16.mxu0 %v381
    %2567 = vmatpush1.bf16.msra.mxu0 %v380
    %2568 = vmatprep.subr.bf16.mxu0 %v385
    %2569 = vmatpush1.bf16.msra.mxu0 %v384
    %2570 = vmatprep.subr.bf16.mxu0 0
    %2571 = vmatpush1.bf16.msra.mxu0 0
    %2572 = vmatprep.subr.bf16.mxu0 0
    %2573 = vmatpush1.bf16.msra.mxu0 0
    %2574 = vmatprep.subr.bf16.mxu0 0
    %2575 = vmatpush1.bf16.msra.mxu0 0
    %2576 = vmatprep.subr.bf16.mxu0 0
    %2577 = vmatpush1.bf16.msra.mxu0 0
    %2578 = vmatprep.subr.bf16.mxu0 0
    %2579 = vmatpush1.bf16.msra.mxu0 0
    %2580 = vmatprep.subr.bf16.mxu0 0
    %2581 = vmatpush1.bf16.msra.mxu0 0
    %2582 = vmatprep.subr.bf16.mxu0 0
    %2583 = vmatpush1.bf16.msra.mxu0 0
    %2584 = vmatprep.subr.bf16.mxu0 0
    %2585 = vmatpush1.bf16.msra.mxu0 0
    %2586 = vmatprep.subr.bf16.mxu0 0
    %2587 = vmatpush1.bf16.msra.mxu0 0
    %2588 = vmatprep.subr.bf16.mxu0 0
    %2589 = vmatpush1.bf16.msra.mxu0 0
    %2590 = vmatprep.subr.bf16.mxu0 0
    %2591 = vmatpush1.bf16.msra.mxu0 0
    %2592 = vmatprep.subr.bf16.mxu0 0
    %2593 = vmatpush1.bf16.msra.mxu0 0
    %2594 = vmatprep.mubr.bf16.mxu0 0
    %2595 = vmatmul.mubr.bf16.gmra.mrb[0].mxu0 %v2560
    %v2596 = vpop.f32.mrb[0].mxu0
    %v2597 = vadd.f32 %v2512, %v2596
    %v2598 = vpop.f32.mrb[0].mxu0
    %v2599 = vadd.f32 %v2514, %v2598
    %v2600 = vpop.f32.mrb[0].mxu0
    %v2601 = vpop.f32.mrb[0].mxu0
    %2602 = vdwg.mxu0
    %2603 = vmatprep.subr.bf16.mxu0 %v375
    %2604 = vmatpush1.bf16.msra.mxu0 %v374
    %2605 = vmatprep.subr.bf16.mxu0 %v379
    %2606 = vmatpush1.bf16.msra.mxu0 %v378
    %2607 = vmatprep.subr.bf16.mxu0 %v383
    %2608 = vmatpush1.bf16.msra.mxu0 %v382
    %2609 = vmatprep.subr.bf16.mxu0 %v387
    %2610 = vmatpush1.bf16.msra.mxu0 %v386
    %2611 = vmatprep.subr.bf16.mxu0 0
    %2612 = vmatpush1.bf16.msra.mxu0 0
    %2613 = vmatprep.subr.bf16.mxu0 0
    %2614 = vmatpush1.bf16.msra.mxu0 0
    %2615 = vmatprep.subr.bf16.mxu0 0
    %2616 = vmatpush1.bf16.msra.mxu0 0
    %2617 = vmatprep.subr.bf16.mxu0 0
    %2618 = vmatpush1.bf16.msra.mxu0 0
    %2619 = vmatprep.subr.bf16.mxu0 0
    %2620 = vmatpush1.bf16.msra.mxu0 0
    %2621 = vmatprep.subr.bf16.mxu0 0
    %2622 = vmatpush1.bf16.msra.mxu0 0
    %2623 = vmatprep.subr.bf16.mxu0 0
    %2624 = vmatpush1.bf16.msra.mxu0 0
    %2625 = vmatprep.subr.bf16.mxu0 0
    %2626 = vmatpush1.bf16.msra.mxu0 0
    %2627 = vmatprep.subr.bf16.mxu0 0
    %2628 = vmatpush1.bf16.msra.mxu0 0
    %2629 = vmatprep.subr.bf16.mxu0 0
    %2630 = vmatpush1.bf16.msra.mxu0 0
    %2631 = vmatprep.subr.bf16.mxu0 0
    %2632 = vmatpush1.bf16.msra.mxu0 0
    %2633 = vmatprep.subr.bf16.mxu0 0
    %2634 = vmatpush1.bf16.msra.mxu0 0
    %2635 = vmatprep.mubr.bf16.mxu0 0
    %2636 = vmatmul.mubr.bf16.gmra.mrb[0].mxu0 %v2560
    %v2637 = vpop.f32.mrb[0].mxu0
    %v2638 = vadd.f32 %v2553, %v2637
    %v2639 = vpop.f32.mrb[0].mxu0
    %v2640 = vadd.f32 %v2555, %v2639
    %v2641 = vpop.f32.mrb[0].mxu0
    %v2642 = vpop.f32.mrb[0].mxu0
    %2643 = vdwg.mxu0
    %v2644 = vadd.f32 %v2597, %v494
    %v2645 = vadd.f32 %v2599, %v498
    %v2646 = vadd.f32 %v2638, %v502
    %v2647 = vadd.f32 %v2640, %v506
    %v2648 = vmul.f32 %v2644, 0.5
    %v2649 = vtanh.pop %v2648
    %v2650 = vmul.f32 %v2649, 0.5
    %v2651 = vadd.f32 %v2650, 0.5
    %v2652 = vmul.f32 %v2645, 0.5
    %v2653 = vtanh.pop %v2652
    %v2654 = vmul.f32 %v2653, 0.5
    %v2655 = vadd.f32 %v2654, 0.5
    %v2656 = vtanh.pop %v2646
    %v2657 = vmul.f32 %v2647, 0.5
    %v2658 = vtanh.pop %v2657
    %v2659 = vmul.f32 %v2658, 0.5
    %v2660 = vadd.f32 %v2659, 0.5
    %v2661 = vmul.f32 %v2655, %v2469
    %v2662 = vmul.f32 %v2651, %v2656
    %v2663 = vadd.f32 %v2661, %v2662
    %v2664 = vtanh.pop %v2663
    %v2665 = vmul.f32 %v2660, %v2664
    %s2666 = scalar_lea.vmem %s4, 88
    %2667 = vst [vmem:[%s2666] sm:$0xff] %v2665
    %s2668 = scalar_lea.vmem %s0, 48
    %v2669 = vld [vmem:[%s2668] sm:$0xf]
    %v2670 = vpack.c.bf16 %v2665, %v2665
    %2671 = vmatprep.subr.bf16.mxu0 %v179
    %2672 = vmatpush1.bf16.msra.mxu0 %v178
    %2673 = vmatprep.subr.bf16.mxu0 %v183
    %2674 = vmatpush1.bf16.msra.mxu0 %v182
    %2675 = vmatprep.subr.bf16.mxu0 %v187
    %2676 = vmatpush1.bf16.msra.mxu0 %v186
    %2677 = vmatprep.subr.bf16.mxu0 %v191
    %2678 = vmatpush1.bf16.msra.mxu0 %v190
    %2679 = vmatprep.subr.bf16.mxu0 %v195
    %2680 = vmatpush1.bf16.msra.mxu0 %v194
    %2681 = vmatprep.subr.bf16.mxu0 %v199
    %2682 = vmatpush1.bf16.msra.mxu0 %v198
    %2683 = vmatprep.subr.bf16.mxu0 %v203
    %2684 = vmatpush1.bf16.msra.mxu0 %v202
    %2685 = vmatprep.subr.bf16.mxu0 %v207
    %2686 = vmatpush1.bf16.msra.mxu0 %v206
    %2687 = vmatprep.subr.bf16.mxu0 0
    %2688 = vmatpush1.bf16.msra.mxu0 0
    %2689 = vmatprep.subr.bf16.mxu0 0
    %2690 = vmatpush1.bf16.msra.mxu0 0
    %2691 = vmatprep.subr.bf16.mxu0 0
    %2692 = vmatpush1.bf16.msra.mxu0 0
    %2693 = vmatprep.subr.bf16.mxu0 0
    %2694 = vmatpush1.bf16.msra.mxu0 0
    %2695 = vmatprep.subr.bf16.mxu0 0
    %2696 = vmatpush1.bf16.msra.mxu0 0
    %2697 = vmatprep.subr.bf16.mxu0 0
    %2698 = vmatpush1.bf16.msra.mxu0 0
    %2699 = vmatprep.subr.bf16.mxu0 0
    %2700 = vmatpush1.bf16.msra.mxu0 0
    %2701 = vmatprep.subr.bf16.mxu0 0
    %2702 = vmatpush1.bf16.msra.mxu0 0
    %2703 = vmatprep.mubr.bf16.mxu0 0
    %2704 = vmatmul.mubr.bf16.gmra.mrb[0].mxu0 %v2670
    %v2705 = vpop.f32.mrb[0].mxu0
    %v2706 = vadd.f32 0.0, %v2705
    %v2707 = vpop.f32.mrb[0].mxu0
    %v2708 = vadd.f32 0.0, %v2707
    %v2709 = vpop.f32.mrb[0].mxu0
    %v2710 = vpop.f32.mrb[0].mxu0
    %2711 = vdwg.mxu0
    %2712 = vmatprep.subr.bf16.mxu0 %v181
    %2713 = vmatpush1.bf16.msra.mxu0 %v180
    %2714 = vmatprep.subr.bf16.mxu0 %v185
    %2715 = vmatpush1.bf16.msra.mxu0 %v184
    %2716 = vmatprep.subr.bf16.mxu0 %v189
    %2717 = vmatpush1.bf16.msra.mxu0 %v188
    %2718 = vmatprep.subr.bf16.mxu0 %v193
    %2719 = vmatpush1.bf16.msra.mxu0 %v192
    %2720 = vmatprep.subr.bf16.mxu0 %v197
    %2721 = vmatpush1.bf16.msra.mxu0 %v196
    %2722 = vmatprep.subr.bf16.mxu0 %v201
    %2723 = vmatpush1.bf16.msra.mxu0 %v200
    %2724 = vmatprep.subr.bf16.mxu0 %v205
    %2725 = vmatpush1.bf16.msra.mxu0 %v204
    %2726 = vmatprep.subr.bf16.mxu0 %v209
    %2727 = vmatpush1.bf16.msra.mxu0 %v208
    %2728 = vmatprep.subr.bf16.mxu0 0
    %2729 = vmatpush1.bf16.msra.mxu0 0
    %2730 = vmatprep.subr.bf16.mxu0 0
    %2731 = vmatpush1.bf16.msra.mxu0 0
    %2732 = vmatprep.subr.bf16.mxu0 0
    %2733 = vmatpush1.bf16.msra.mxu0 0
    %2734 = vmatprep.subr.bf16.mxu0 0
    %2735 = vmatpush1.bf16.msra.mxu0 0
    %2736 = vmatprep.subr.bf16.mxu0 0
    %2737 = vmatpush1.bf16.msra.mxu0 0
    %2738 = vmatprep.subr.bf16.mxu0 0
    %2739 = vmatpush1.bf16.msra.mxu0 0
    %2740 = vmatprep.subr.bf16.mxu0 0
    %2741 = vmatpush1.bf16.msra.mxu0 0
    %2742 = vmatprep.subr.bf16.mxu0 0
    %2743 = vmatpush1.bf16.msra.mxu0 0
    %2744 = vmatprep.mubr.bf16.mxu0 0
    %2745 = vmatmul.mubr.bf16.gmra.mrb[0].mxu0 %v2670
    %v2746 = vpop.f32.mrb[0].mxu0
    %v2747 = vadd.f32 0.0, %v2746
    %v2748 = vpop.f32.mrb[0].mxu0
    %v2749 = vadd.f32 0.0, %v2748
    %v2750 = vpop.f32.mrb[0].mxu0
    %v2751 = vpop.f32.mrb[0].mxu0
    %2752 = vdwg.mxu0
    %v2754 = vsel %vm404, %v2669, 0
    %2756 = vmatprep.subr.bf16.mxu0 %v373
    %2757 = vmatpush1.bf16.msra.mxu0 %v372
    %2758 = vmatprep.subr.bf16.mxu0 %v377
    %2759 = vmatpush1.bf16.msra.mxu0 %v376
    %2760 = vmatprep.subr.bf16.mxu0 %v381
    %2761 = vmatpush1.bf16.msra.mxu0 %v380
    %2762 = vmatprep.subr.bf16.mxu0 %v385
    %2763 = vmatpush1.bf16.msra.mxu0 %v384
    %2764 = vmatprep.subr.bf16.mxu0 0
    %2765 = vmatpush1.bf16.msra.mxu0 0
    %2766 = vmatprep.subr.bf16.mxu0 0
    %2767 = vmatpush1.bf16.msra.mxu0 0
    %2768 = vmatprep.subr.bf16.mxu0 0
    %2769 = vmatpush1.bf16.msra.mxu0 0
    %2770 = vmatprep.subr.bf16.mxu0 0
    %2771 = vmatpush1.bf16.msra.mxu0 0
    %2772 = vmatprep.subr.bf16.mxu0 0
    %2773 = vmatpush1.bf16.msra.mxu0 0
    %2774 = vmatprep.subr.bf16.mxu0 0
    %2775 = vmatpush1.bf16.msra.mxu0 0
    %2776 = vmatprep.subr.bf16.mxu0 0
    %2777 = vmatpush1.bf16.msra.mxu0 0
    %2778 = vmatprep.subr.bf16.mxu0 0
    %2779 = vmatpush1.bf16.msra.mxu0 0
    %2780 = vmatprep.subr.bf16.mxu0 0
    %2781 = vmatpush1.bf16.msra.mxu0 0
    %2782 = vmatprep.subr.bf16.mxu0 0
    %2783 = vmatpush1.bf16.msra.mxu0 0
    %2784 = vmatprep.subr.bf16.mxu0 0
    %2785 = vmatpush1.bf16.msra.mxu0 0
    %2786 = vmatprep.subr.bf16.mxu0 0
    %2787 = vmatpush1.bf16.msra.mxu0 0
    %2788 = vmatprep.mubr.bf16.mxu0 0
    %2789 = vmatmul.mubr.bf16.gmra.mrb[0].mxu0 %v2754
    %v2790 = vpop.f32.mrb[0].mxu0
    %v2791 = vadd.f32 %v2706, %v2790
    %v2792 = vpop.f32.mrb[0].mxu0
    %v2793 = vadd.f32 %v2708, %v2792
    %v2794 = vpop.f32.mrb[0].mxu0
    %v2795 = vpop.f32.mrb[0].mxu0
    %2796 = vdwg.mxu0
    %2797 = vmatprep.subr.bf16.mxu0 %v375
    %2798 = vmatpush1.bf16.msra.mxu0 %v374
    %2799 = vmatprep.subr.bf16.mxu0 %v379
    %2800 = vmatpush1.bf16.msra.mxu0 %v378
    %2801 = vmatprep.subr.bf16.mxu0 %v383
    %2802 = vmatpush1.bf16.msra.mxu0 %v382
    %2803 = vmatprep.subr.bf16.mxu0 %v387
    %2804 = vmatpush1.bf16.msra.mxu0 %v386
    %2805 = vmatprep.subr.bf16.mxu0 0
    %2806 = vmatpush1.bf16.msra.mxu0 0
    %2807 = vmatprep.subr.bf16.mxu0 0
    %2808 = vmatpush1.bf16.msra.mxu0 0
    %2809 = vmatprep.subr.bf16.mxu0 0
    %2810 = vmatpush1.bf16.msra.mxu0 0
    %2811 = vmatprep.subr.bf16.mxu0 0
    %2812 = vmatpush1.bf16.msra.mxu0 0
    %2813 = vmatprep.subr.bf16.mxu0 0
    %2814 = vmatpush1.bf16.msra.mxu0 0
    %2815 = vmatprep.subr.bf16.mxu0 0
    %2816 = vmatpush1.bf16.msra.mxu0 0
    %2817 = vmatprep.subr.bf16.mxu0 0
    %2818 = vmatpush1.bf16.msra.mxu0 0
    %2819 = vmatprep.subr.bf16.mxu0 0
    %2820 = vmatpush1.bf16.msra.mxu0 0
    %2821 = vmatprep.subr.bf16.mxu0 0
    %2822 = vmatpush1.bf16.msra.mxu0 0
    %2823 = vmatprep.subr.bf16.mxu0 0
    %2824 = vmatpush1.bf16.msra.mxu0 0
    %2825 = vmatprep.subr.bf16.mxu0 0
    %2826 = vmatpush1.bf16.msra.mxu0 0
    %2827 = vmatprep.subr.bf16.mxu0 0
    %2828 = vmatpush1.bf16.msra.mxu0 0
    %2829 = vmatprep.mubr.bf16.mxu0 0
    %2830 = vmatmul.mubr.bf16.gmra.mrb[0].mxu0 %v2754
    %v2831 = vpop.f32.mrb[0].mxu0
    %v2832 = vadd.f32 %v2747, %v2831
    %v2833 = vpop.f32.mrb[0].mxu0
    %v2834 = vadd.f32 %v2749, %v2833
    %v2835 = vpop.f32.mrb[0].mxu0
    %v2836 = vpop.f32.mrb[0].mxu0
    %2837 = vdwg.mxu0
    %v2838 = vadd.f32 %v2791, %v494
    %v2839 = vadd.f32 %v2793, %v498
    %v2840 = vadd.f32 %v2832, %v502
    %v2841 = vadd.f32 %v2834, %v506
    %v2842 = vmul.f32 %v2838, 0.5
    %v2843 = vtanh.pop %v2842
    %v2844 = vmul.f32 %v2843, 0.5
    %v2845 = vadd.f32 %v2844, 0.5
    %v2846 = vmul.f32 %v2839, 0.5
    %v2847 = vtanh.pop %v2846
    %v2848 = vmul.f32 %v2847, 0.5
    %v2849 = vadd.f32 %v2848, 0.5
    %v2850 = vtanh.pop %v2840
    %v2851 = vmul.f32 %v2841, 0.5
    %v2852 = vtanh.pop %v2851
    %v2853 = vmul.f32 %v2852, 0.5
    %v2854 = vadd.f32 %v2853, 0.5
    %v2855 = vmul.f32 %v2849, %v2663
    %v2856 = vmul.f32 %v2845, %v2850
    %v2857 = vadd.f32 %v2855, %v2856
    %v2858 = vtanh.pop %v2857
    %v2859 = vmul.f32 %v2854, %v2858
    %s2860 = scalar_lea.vmem %s4, 96
    %2861 = vst [vmem:[%s2860] sm:$0xff] %v2859
    %s2862 = scalar_lea.vmem %s0, 52
    %v2863 = vld [vmem:[%s2862] sm:$0xf]
    %v2864 = vpack.c.bf16 %v2859, %v2859
    %2865 = vmatprep.subr.bf16.mxu0 %v179
    %2866 = vmatpush1.bf16.msra.mxu0 %v178
    %2867 = vmatprep.subr.bf16.mxu0 %v183
    %2868 = vmatpush1.bf16.msra.mxu0 %v182
    %2869 = vmatprep.subr.bf16.mxu0 %v187
    %2870 = vmatpush1.bf16.msra.mxu0 %v186
    %2871 = vmatprep.subr.bf16.mxu0 %v191
    %2872 = vmatpush1.bf16.msra.mxu0 %v190
    %2873 = vmatprep.subr.bf16.mxu0 %v195
    %2874 = vmatpush1.bf16.msra.mxu0 %v194
    %2875 = vmatprep.subr.bf16.mxu0 %v199
    %2876 = vmatpush1.bf16.msra.mxu0 %v198
    %2877 = vmatprep.subr.bf16.mxu0 %v203
    %2878 = vmatpush1.bf16.msra.mxu0 %v202
    %2879 = vmatprep.subr.bf16.mxu0 %v207
    %2880 = vmatpush1.bf16.msra.mxu0 %v206
    %2881 = vmatprep.subr.bf16.mxu0 0
    %2882 = vmatpush1.bf16.msra.mxu0 0
    %2883 = vmatprep.subr.bf16.mxu0 0
    %2884 = vmatpush1.bf16.msra.mxu0 0
    %2885 = vmatprep.subr.bf16.mxu0 0
    %2886 = vmatpush1.bf16.msra.mxu0 0
    %2887 = vmatprep.subr.bf16.mxu0 0
    %2888 = vmatpush1.bf16.msra.mxu0 0
    %2889 = vmatprep.subr.bf16.mxu0 0
    %2890 = vmatpush1.bf16.msra.mxu0 0
    %2891 = vmatprep.subr.bf16.mxu0 0
    %2892 = vmatpush1.bf16.msra.mxu0 0
    %2893 = vmatprep.subr.bf16.mxu0 0
    %2894 = vmatpush1.bf16.msra.mxu0 0
    %2895 = vmatprep.subr.bf16.mxu0 0
    %2896 = vmatpush1.bf16.msra.mxu0 0
    %2897 = vmatprep.mubr.bf16.mxu0 0
    %2898 = vmatmul.mubr.bf16.gmra.mrb[0].mxu0 %v2864
    %v2899 = vpop.f32.mrb[0].mxu0
    %v2900 = vadd.f32 0.0, %v2899
    %v2901 = vpop.f32.mrb[0].mxu0
    %v2902 = vadd.f32 0.0, %v2901
    %v2903 = vpop.f32.mrb[0].mxu0
    %v2904 = vpop.f32.mrb[0].mxu0
    %2905 = vdwg.mxu0
    %2906 = vmatprep.subr.bf16.mxu0 %v181
    %2907 = vmatpush1.bf16.msra.mxu0 %v180
    %2908 = vmatprep.subr.bf16.mxu0 %v185
    %2909 = vmatpush1.bf16.msra.mxu0 %v184
    %2910 = vmatprep.subr.bf16.mxu0 %v189
    %2911 = vmatpush1.bf16.msra.mxu0 %v188
    %2912 = vmatprep.subr.bf16.mxu0 %v193
    %2913 = vmatpush1.bf16.msra.mxu0 %v192
    %2914 = vmatprep.subr.bf16.mxu0 %v197
    %2915 = vmatpush1.bf16.msra.mxu0 %v196
    %2916 = vmatprep.subr.bf16.mxu0 %v201
    %2917 = vmatpush1.bf16.msra.mxu0 %v200
    %2918 = vmatprep.subr.bf16.mxu0 %v205
    %2919 = vmatpush1.bf16.msra.mxu0 %v204
    %2920 = vmatprep.subr.bf16.mxu0 %v209
    %2921 = vmatpush1.bf16.msra.mxu0 %v208
    %2922 = vmatprep.subr.bf16.mxu0 0
    %2923 = vmatpush1.bf16.msra.mxu0 0
    %2924 = vmatprep.subr.bf16.mxu0 0
    %2925 = vmatpush1.bf16.msra.mxu0 0
    %2926 = vmatprep.subr.bf16.mxu0 0
    %2927 = vmatpush1.bf16.msra.mxu0 0
    %2928 = vmatprep.subr.bf16.mxu0 0
    %2929 = vmatpush1.bf16.msra.mxu0 0
    %2930 = vmatprep.subr.bf16.mxu0 0
    %2931 = vmatpush1.bf16.msra.mxu0 0
    %2932 = vmatprep.subr.bf16.mxu0 0
    %2933 = vmatpush1.bf16.msra.mxu0 0
    %2934 = vmatprep.subr.bf16.mxu0 0
    %2935 = vmatpush1.bf16.msra.mxu0 0
    %2936 = vmatprep.subr.bf16.mxu0 0
    %2937 = vmatpush1.bf16.msra.mxu0 0
    %2938 = vmatprep.mubr.bf16.mxu0 0
    %2939 = vmatmul.mubr.bf16.gmra.mrb[0].mxu0 %v2864
    %v2940 = vpop.f32.mrb[0].mxu0
    %v2941 = vadd.f32 0.0, %v2940
    %v2942 = vpop.f32.mrb[0].mxu0
    %v2943 = vadd.f32 0.0, %v2942
    %v2944 = vpop.f32.mrb[0].mxu0
    %v2945 = vpop.f32.mrb[0].mxu0
    %2946 = vdwg.mxu0
    %v2948 = vsel %vm404, %v2863, 0
    %2950 = vmatprep.subr.bf16.mxu0 %v373
    %2951 = vmatpush1.bf16.msra.mxu0 %v372
    %2952 = vmatprep.subr.bf16.mxu0 %v377
    %2953 = vmatpush1.bf16.msra.mxu0 %v376
    %2954 = vmatprep.subr.bf16.mxu0 %v381
    %2955 = vmatpush1.bf16.msra.mxu0 %v380
    %2956 = vmatprep.subr.bf16.mxu0 %v385
    %2957 = vmatpush1.bf16.msra.mxu0 %v384
    %2958 = vmatprep.subr.bf16.mxu0 0
    %2959 = vmatpush1.bf16.msra.mxu0 0
    %2960 = vmatprep.subr.bf16.mxu0 0
    %2961 = vmatpush1.bf16.msra.mxu0 0
    %2962 = vmatprep.subr.bf16.mxu0 0
    %2963 = vmatpush1.bf16.msra.mxu0 0
    %2964 = vmatprep.subr.bf16.mxu0 0
    %2965 = vmatpush1.bf16.msra.mxu0 0
    %2966 = vmatprep.subr.bf16.mxu0 0
    %2967 = vmatpush1.bf16.msra.mxu0 0
    %2968 = vmatprep.subr.bf16.mxu0 0
    %2969 = vmatpush1.bf16.msra.mxu0 0
    %2970 = vmatprep.subr.bf16.mxu0 0
    %2971 = vmatpush1.bf16.msra.mxu0 0
    %2972 = vmatprep.subr.bf16.mxu0 0
    %2973 = vmatpush1.bf16.msra.mxu0 0
    %2974 = vmatprep.subr.bf16.mxu0 0
    %2975 = vmatpush1.bf16.msra.mxu0 0
    %2976 = vmatprep.subr.bf16.mxu0 0
    %2977 = vmatpush1.bf16.msra.mxu0 0
    %2978 = vmatprep.subr.bf16.mxu0 0
    %2979 = vmatpush1.bf16.msra.mxu0 0
    %2980 = vmatprep.subr.bf16.mxu0 0
    %2981 = vmatpush1.bf16.msra.mxu0 0
    %2982 = vmatprep.mubr.bf16.mxu0 0
    %2983 = vmatmul.mubr.bf16.gmra.mrb[0].mxu0 %v2948
    %v2984 = vpop.f32.mrb[0].mxu0
    %v2985 = vadd.f32 %v2900, %v2984
    %v2986 = vpop.f32.mrb[0].mxu0
    %v2987 = vadd.f32 %v2902, %v2986
    %v2988 = vpop.f32.mrb[0].mxu0
    %v2989 = vpop.f32.mrb[0].mxu0
    %2990 = vdwg.mxu0
    %2991 = vmatprep.subr.bf16.mxu0 %v375
    %2992 = vmatpush1.bf16.msra.mxu0 %v374
    %2993 = vmatprep.subr.bf16.mxu0 %v379
    %2994 = vmatpush1.bf16.msra.mxu0 %v378
    %2995 = vmatprep.subr.bf16.mxu0 %v383
    %2996 = vmatpush1.bf16.msra.mxu0 %v382
    %2997 = vmatprep.subr.bf16.mxu0 %v387
    %2998 = vmatpush1.bf16.msra.mxu0 %v386
    %2999 = vmatprep.subr.bf16.mxu0 0
    %3000 = vmatpush1.bf16.msra.mxu0 0
    %3001 = vmatprep.subr.bf16.mxu0 0
    %3002 = vmatpush1.bf16.msra.mxu0 0
    %3003 = vmatprep.subr.bf16.mxu0 0
    %3004 = vmatpush1.bf16.msra.mxu0 0
    %3005 = vmatprep.subr.bf16.mxu0 0
    %3006 = vmatpush1.bf16.msra.mxu0 0
    %3007 = vmatprep.subr.bf16.mxu0 0
    %3008 = vmatpush1.bf16.msra.mxu0 0
    %3009 = vmatprep.subr.bf16.mxu0 0
    %3010 = vmatpush1.bf16.msra.mxu0 0
    %3011 = vmatprep.subr.bf16.mxu0 0
    %3012 = vmatpush1.bf16.msra.mxu0 0
    %3013 = vmatprep.subr.bf16.mxu0 0
    %3014 = vmatpush1.bf16.msra.mxu0 0
    %3015 = vmatprep.subr.bf16.mxu0 0
    %3016 = vmatpush1.bf16.msra.mxu0 0
    %3017 = vmatprep.subr.bf16.mxu0 0
    %3018 = vmatpush1.bf16.msra.mxu0 0
    %3019 = vmatprep.subr.bf16.mxu0 0
    %3020 = vmatpush1.bf16.msra.mxu0 0
    %3021 = vmatprep.subr.bf16.mxu0 0
    %3022 = vmatpush1.bf16.msra.mxu0 0
    %3023 = vmatprep.mubr.bf16.mxu0 0
    %3024 = vmatmul.mubr.bf16.gmra.mrb[0].mxu0 %v2948
    %v3025 = vpop.f32.mrb[0].mxu0
    %v3026 = vadd.f32 %v2941, %v3025
    %v3027 = vpop.f32.mrb[0].mxu0
    %v3028 = vadd.f32 %v2943, %v3027
    %v3029 = vpop.f32.mrb[0].mxu0
    %v3030 = vpop.f32.mrb[0].mxu0
    %3031 = vdwg.mxu0
    %v3032 = vadd.f32 %v2985, %v494
    %v3033 = vadd.f32 %v2987, %v498
    %v3034 = vadd.f32 %v3026, %v502
    %v3035 = vadd.f32 %v3028, %v506
    %v3036 = vmul.f32 %v3032, 0.5
    %v3037 = vtanh.pop %v3036
    %v3038 = vmul.f32 %v3037, 0.5
    %v3039 = vadd.f32 %v3038, 0.5
    %v3040 = vmul.f32 %v3033, 0.5
    %v3041 = vtanh.pop %v3040
    %v3042 = vmul.f32 %v3041, 0.5
    %v3043 = vadd.f32 %v3042, 0.5
    %v3044 = vtanh.pop %v3034
    %v3045 = vmul.f32 %v3035, 0.5
    %v3046 = vtanh.pop %v3045
    %v3047 = vmul.f32 %v3046, 0.5
    %v3048 = vadd.f32 %v3047, 0.5
    %v3049 = vmul.f32 %v3043, %v2857
    %v3050 = vmul.f32 %v3039, %v3044
    %v3051 = vadd.f32 %v3049, %v3050
    %v3052 = vtanh.pop %v3051
    %v3053 = vmul.f32 %v3048, %v3052
    %s3054 = scalar_lea.vmem %s4, 104
    %3055 = vst [vmem:[%s3054] sm:$0xff] %v3053
    %s3056 = scalar_lea.vmem %s0, 56
    %v3057 = vld [vmem:[%s3056] sm:$0xf]
    %v3058 = vpack.c.bf16 %v3053, %v3053
    %3059 = vmatprep.subr.bf16.mxu0 %v179
    %3060 = vmatpush1.bf16.msra.mxu0 %v178
    %3061 = vmatprep.subr.bf16.mxu0 %v183
    %3062 = vmatpush1.bf16.msra.mxu0 %v182
    %3063 = vmatprep.subr.bf16.mxu0 %v187
    %3064 = vmatpush1.bf16.msra.mxu0 %v186
    %3065 = vmatprep.subr.bf16.mxu0 %v191
    %3066 = vmatpush1.bf16.msra.mxu0 %v190
    %3067 = vmatprep.subr.bf16.mxu0 %v195
    %3068 = vmatpush1.bf16.msra.mxu0 %v194
    %3069 = vmatprep.subr.bf16.mxu0 %v199
    %3070 = vmatpush1.bf16.msra.mxu0 %v198
    %3071 = vmatprep.subr.bf16.mxu0 %v203
    %3072 = vmatpush1.bf16.msra.mxu0 %v202
    %3073 = vmatprep.subr.bf16.mxu0 %v207
    %3074 = vmatpush1.bf16.msra.mxu0 %v206
    %3075 = vmatprep.subr.bf16.mxu0 0
    %3076 = vmatpush1.bf16.msra.mxu0 0
    %3077 = vmatprep.subr.bf16.mxu0 0
    %3078 = vmatpush1.bf16.msra.mxu0 0
    %3079 = vmatprep.subr.bf16.mxu0 0
    %3080 = vmatpush1.bf16.msra.mxu0 0
    %3081 = vmatprep.subr.bf16.mxu0 0
    %3082 = vmatpush1.bf16.msra.mxu0 0
    %3083 = vmatprep.subr.bf16.mxu0 0
    %3084 = vmatpush1.bf16.msra.mxu0 0
    %3085 = vmatprep.subr.bf16.mxu0 0
    %3086 = vmatpush1.bf16.msra.mxu0 0
    %3087 = vmatprep.subr.bf16.mxu0 0
    %3088 = vmatpush1.bf16.msra.mxu0 0
    %3089 = vmatprep.subr.bf16.mxu0 0
    %3090 = vmatpush1.bf16.msra.mxu0 0
    %3091 = vmatprep.mubr.bf16.mxu0 0
    %3092 = vmatmul.mubr.bf16.gmra.mrb[0].mxu0 %v3058
    %v3093 = vpop.f32.mrb[0].mxu0
    %v3094 = vadd.f32 0.0, %v3093
    %v3095 = vpop.f32.mrb[0].mxu0
    %v3096 = vadd.f32 0.0, %v3095
    %v3097 = vpop.f32.mrb[0].mxu0
    %v3098 = vpop.f32.mrb[0].mxu0
    %3099 = vdwg.mxu0
    %3100 = vmatprep.subr.bf16.mxu0 %v181
    %3101 = vmatpush1.bf16.msra.mxu0 %v180
    %3102 = vmatprep.subr.bf16.mxu0 %v185
    %3103 = vmatpush1.bf16.msra.mxu0 %v184
    %3104 = vmatprep.subr.bf16.mxu0 %v189
    %3105 = vmatpush1.bf16.msra.mxu0 %v188
    %3106 = vmatprep.subr.bf16.mxu0 %v193
    %3107 = vmatpush1.bf16.msra.mxu0 %v192
    %3108 = vmatprep.subr.bf16.mxu0 %v197
    %3109 = vmatpush1.bf16.msra.mxu0 %v196
    %3110 = vmatprep.subr.bf16.mxu0 %v201
    %3111 = vmatpush1.bf16.msra.mxu0 %v200
    %3112 = vmatprep.subr.bf16.mxu0 %v205
    %3113 = vmatpush1.bf16.msra.mxu0 %v204
    %3114 = vmatprep.subr.bf16.mxu0 %v209
    %3115 = vmatpush1.bf16.msra.mxu0 %v208
    %3116 = vmatprep.subr.bf16.mxu0 0
    %3117 = vmatpush1.bf16.msra.mxu0 0
    %3118 = vmatprep.subr.bf16.mxu0 0
    %3119 = vmatpush1.bf16.msra.mxu0 0
    %3120 = vmatprep.subr.bf16.mxu0 0
    %3121 = vmatpush1.bf16.msra.mxu0 0
    %3122 = vmatprep.subr.bf16.mxu0 0
    %3123 = vmatpush1.bf16.msra.mxu0 0
    %3124 = vmatprep.subr.bf16.mxu0 0
    %3125 = vmatpush1.bf16.msra.mxu0 0
    %3126 = vmatprep.subr.bf16.mxu0 0
    %3127 = vmatpush1.bf16.msra.mxu0 0
    %3128 = vmatprep.subr.bf16.mxu0 0
    %3129 = vmatpush1.bf16.msra.mxu0 0
    %3130 = vmatprep.subr.bf16.mxu0 0
    %3131 = vmatpush1.bf16.msra.mxu0 0
    %3132 = vmatprep.mubr.bf16.mxu0 0
    %3133 = vmatmul.mubr.bf16.gmra.mrb[0].mxu0 %v3058
    %v3134 = vpop.f32.mrb[0].mxu0
    %v3135 = vadd.f32 0.0, %v3134
    %v3136 = vpop.f32.mrb[0].mxu0
    %v3137 = vadd.f32 0.0, %v3136
    %v3138 = vpop.f32.mrb[0].mxu0
    %v3139 = vpop.f32.mrb[0].mxu0
    %3140 = vdwg.mxu0
    %v3142 = vsel %vm404, %v3057, 0
    %3144 = vmatprep.subr.bf16.mxu0 %v373
    %3145 = vmatpush1.bf16.msra.mxu0 %v372
    %3146 = vmatprep.subr.bf16.mxu0 %v377
    %3147 = vmatpush1.bf16.msra.mxu0 %v376
    %3148 = vmatprep.subr.bf16.mxu0 %v381
    %3149 = vmatpush1.bf16.msra.mxu0 %v380
    %3150 = vmatprep.subr.bf16.mxu0 %v385
    %3151 = vmatpush1.bf16.msra.mxu0 %v384
    %3152 = vmatprep.subr.bf16.mxu0 0
    %3153 = vmatpush1.bf16.msra.mxu0 0
    %3154 = vmatprep.subr.bf16.mxu0 0
    %3155 = vmatpush1.bf16.msra.mxu0 0
    %3156 = vmatprep.subr.bf16.mxu0 0
    %3157 = vmatpush1.bf16.msra.mxu0 0
    %3158 = vmatprep.subr.bf16.mxu0 0
    %3159 = vmatpush1.bf16.msra.mxu0 0
    %3160 = vmatprep.subr.bf16.mxu0 0
    %3161 = vmatpush1.bf16.msra.mxu0 0
    %3162 = vmatprep.subr.bf16.mxu0 0
    %3163 = vmatpush1.bf16.msra.mxu0 0
    %3164 = vmatprep.subr.bf16.mxu0 0
    %3165 = vmatpush1.bf16.msra.mxu0 0
    %3166 = vmatprep.subr.bf16.mxu0 0
    %3167 = vmatpush1.bf16.msra.mxu0 0
    %3168 = vmatprep.subr.bf16.mxu0 0
    %3169 = vmatpush1.bf16.msra.mxu0 0
    %3170 = vmatprep.subr.bf16.mxu0 0
    %3171 = vmatpush1.bf16.msra.mxu0 0
    %3172 = vmatprep.subr.bf16.mxu0 0
    %3173 = vmatpush1.bf16.msra.mxu0 0
    %3174 = vmatprep.subr.bf16.mxu0 0
    %3175 = vmatpush1.bf16.msra.mxu0 0
    %3176 = vmatprep.mubr.bf16.mxu0 0
    %3177 = vmatmul.mubr.bf16.gmra.mrb[0].mxu0 %v3142
    %v3178 = vpop.f32.mrb[0].mxu0
    %v3179 = vadd.f32 %v3094, %v3178
    %v3180 = vpop.f32.mrb[0].mxu0
    %v3181 = vadd.f32 %v3096, %v3180
    %v3182 = vpop.f32.mrb[0].mxu0
    %v3183 = vpop.f32.mrb[0].mxu0
    %3184 = vdwg.mxu0
    %3185 = vmatprep.subr.bf16.mxu0 %v375
    %3186 = vmatpush1.bf16.msra.mxu0 %v374
    %3187 = vmatprep.subr.bf16.mxu0 %v379
    %3188 = vmatpush1.bf16.msra.mxu0 %v378
    %3189 = vmatprep.subr.bf16.mxu0 %v383
    %3190 = vmatpush1.bf16.msra.mxu0 %v382
    %3191 = vmatprep.subr.bf16.mxu0 %v387
    %3192 = vmatpush1.bf16.msra.mxu0 %v386
    %3193 = vmatprep.subr.bf16.mxu0 0
    %3194 = vmatpush1.bf16.msra.mxu0 0
    %3195 = vmatprep.subr.bf16.mxu0 0
    %3196 = vmatpush1.bf16.msra.mxu0 0
    %3197 = vmatprep.subr.bf16.mxu0 0
    %3198 = vmatpush1.bf16.msra.mxu0 0
    %3199 = vmatprep.subr.bf16.mxu0 0
    %3200 = vmatpush1.bf16.msra.mxu0 0
    %3201 = vmatprep.subr.bf16.mxu0 0
    %3202 = vmatpush1.bf16.msra.mxu0 0
    %3203 = vmatprep.subr.bf16.mxu0 0
    %3204 = vmatpush1.bf16.msra.mxu0 0
    %3205 = vmatprep.subr.bf16.mxu0 0
    %3206 = vmatpush1.bf16.msra.mxu0 0
    %3207 = vmatprep.subr.bf16.mxu0 0
    %3208 = vmatpush1.bf16.msra.mxu0 0
    %3209 = vmatprep.subr.bf16.mxu0 0
    %3210 = vmatpush1.bf16.msra.mxu0 0
    %3211 = vmatprep.subr.bf16.mxu0 0
    %3212 = vmatpush1.bf16.msra.mxu0 0
    %3213 = vmatprep.subr.bf16.mxu0 0
    %3214 = vmatpush1.bf16.msra.mxu0 0
    %3215 = vmatprep.subr.bf16.mxu0 0
    %3216 = vmatpush1.bf16.msra.mxu0 0
    %3217 = vmatprep.mubr.bf16.mxu0 0
    %3218 = vmatmul.mubr.bf16.gmra.mrb[0].mxu0 %v3142
    %v3219 = vpop.f32.mrb[0].mxu0
    %v3220 = vadd.f32 %v3135, %v3219
    %v3221 = vpop.f32.mrb[0].mxu0
    %v3222 = vadd.f32 %v3137, %v3221
    %v3223 = vpop.f32.mrb[0].mxu0
    %v3224 = vpop.f32.mrb[0].mxu0
    %3225 = vdwg.mxu0
    %v3226 = vadd.f32 %v3179, %v494
    %v3227 = vadd.f32 %v3181, %v498
    %v3228 = vadd.f32 %v3220, %v502
    %v3229 = vadd.f32 %v3222, %v506
    %v3230 = vmul.f32 %v3226, 0.5
    %v3231 = vtanh.pop %v3230
    %v3232 = vmul.f32 %v3231, 0.5
    %v3233 = vadd.f32 %v3232, 0.5
    %v3234 = vmul.f32 %v3227, 0.5
    %v3235 = vtanh.pop %v3234
    %v3236 = vmul.f32 %v3235, 0.5
    %v3237 = vadd.f32 %v3236, 0.5
    %v3238 = vtanh.pop %v3228
    %v3239 = vmul.f32 %v3229, 0.5
    %v3240 = vtanh.pop %v3239
    %v3241 = vmul.f32 %v3240, 0.5
    %v3242 = vadd.f32 %v3241, 0.5
    %v3243 = vmul.f32 %v3237, %v3051
    %v3244 = vmul.f32 %v3233, %v3238
    %v3245 = vadd.f32 %v3243, %v3244
    %v3246 = vtanh.pop %v3245
    %v3247 = vmul.f32 %v3242, %v3246
    %s3248 = scalar_lea.vmem %s4, 112
    %3249 = vst [vmem:[%s3248] sm:$0xff] %v3247
    %s3250 = scalar_lea.vmem %s0, 60
    %v3251 = vld [vmem:[%s3250] sm:$0xf]
    %v3252 = vpack.c.bf16 %v3247, %v3247
    %3253 = vmatprep.subr.bf16.mxu0 %v179
    %3254 = vmatpush1.bf16.msra.mxu0 %v178
    %3255 = vmatprep.subr.bf16.mxu0 %v183
    %3256 = vmatpush1.bf16.msra.mxu0 %v182
    %3257 = vmatprep.subr.bf16.mxu0 %v187
    %3258 = vmatpush1.bf16.msra.mxu0 %v186
    %3259 = vmatprep.subr.bf16.mxu0 %v191
    %3260 = vmatpush1.bf16.msra.mxu0 %v190
    %3261 = vmatprep.subr.bf16.mxu0 %v195
    %3262 = vmatpush1.bf16.msra.mxu0 %v194
    %3263 = vmatprep.subr.bf16.mxu0 %v199
    %3264 = vmatpush1.bf16.msra.mxu0 %v198
    %3265 = vmatprep.subr.bf16.mxu0 %v203
    %3266 = vmatpush1.bf16.msra.mxu0 %v202
    %3267 = vmatprep.subr.bf16.mxu0 %v207
    %3268 = vmatpush1.bf16.msra.mxu0 %v206
    %3269 = vmatprep.subr.bf16.mxu0 0
    %3270 = vmatpush1.bf16.msra.mxu0 0
    %3271 = vmatprep.subr.bf16.mxu0 0
    %3272 = vmatpush1.bf16.msra.mxu0 0
    %3273 = vmatprep.subr.bf16.mxu0 0
    %3274 = vmatpush1.bf16.msra.mxu0 0
    %3275 = vmatprep.subr.bf16.mxu0 0
    %3276 = vmatpush1.bf16.msra.mxu0 0
    %3277 = vmatprep.subr.bf16.mxu0 0
    %3278 = vmatpush1.bf16.msra.mxu0 0
    %3279 = vmatprep.subr.bf16.mxu0 0
    %3280 = vmatpush1.bf16.msra.mxu0 0
    %3281 = vmatprep.subr.bf16.mxu0 0
    %3282 = vmatpush1.bf16.msra.mxu0 0
    %3283 = vmatprep.subr.bf16.mxu0 0
    %3284 = vmatpush1.bf16.msra.mxu0 0
    %3285 = vmatprep.mubr.bf16.mxu0 0
    %3286 = vmatmul.mubr.bf16.gmra.mrb[0].mxu0 %v3252
    %v3287 = vpop.f32.mrb[0].mxu0
    %v3288 = vadd.f32 0.0, %v3287
    %v3289 = vpop.f32.mrb[0].mxu0
    %v3290 = vadd.f32 0.0, %v3289
    %v3291 = vpop.f32.mrb[0].mxu0
    %v3292 = vpop.f32.mrb[0].mxu0
    %3293 = vdwg.mxu0
    %3294 = vmatprep.subr.bf16.mxu0 %v181
    %3295 = vmatpush1.bf16.msra.mxu0 %v180
    %3296 = vmatprep.subr.bf16.mxu0 %v185
    %3297 = vmatpush1.bf16.msra.mxu0 %v184
    %3298 = vmatprep.subr.bf16.mxu0 %v189
    %3299 = vmatpush1.bf16.msra.mxu0 %v188
    %3300 = vmatprep.subr.bf16.mxu0 %v193
    %3301 = vmatpush1.bf16.msra.mxu0 %v192
    %3302 = vmatprep.subr.bf16.mxu0 %v197
    %3303 = vmatpush1.bf16.msra.mxu0 %v196
    %3304 = vmatprep.subr.bf16.mxu0 %v201
    %3305 = vmatpush1.bf16.msra.mxu0 %v200
    %3306 = vmatprep.subr.bf16.mxu0 %v205
    %3307 = vmatpush1.bf16.msra.mxu0 %v204
    %3308 = vmatprep.subr.bf16.mxu0 %v209
    %3309 = vmatpush1.bf16.msra.mxu0 %v208
    %3310 = vmatprep.subr.bf16.mxu0 0
    %3311 = vmatpush1.bf16.msra.mxu0 0
    %3312 = vmatprep.subr.bf16.mxu0 0
    %3313 = vmatpush1.bf16.msra.mxu0 0
    %3314 = vmatprep.subr.bf16.mxu0 0
    %3315 = vmatpush1.bf16.msra.mxu0 0
    %3316 = vmatprep.subr.bf16.mxu0 0
    %3317 = vmatpush1.bf16.msra.mxu0 0
    %3318 = vmatprep.subr.bf16.mxu0 0
    %3319 = vmatpush1.bf16.msra.mxu0 0
    %3320 = vmatprep.subr.bf16.mxu0 0
    %3321 = vmatpush1.bf16.msra.mxu0 0
    %3322 = vmatprep.subr.bf16.mxu0 0
    %3323 = vmatpush1.bf16.msra.mxu0 0
    %3324 = vmatprep.subr.bf16.mxu0 0
    %3325 = vmatpush1.bf16.msra.mxu0 0
    %3326 = vmatprep.mubr.bf16.mxu0 0
    %3327 = vmatmul.mubr.bf16.gmra.mrb[0].mxu0 %v3252
    %v3328 = vpop.f32.mrb[0].mxu0
    %v3329 = vadd.f32 0.0, %v3328
    %v3330 = vpop.f32.mrb[0].mxu0
    %v3331 = vadd.f32 0.0, %v3330
    %v3332 = vpop.f32.mrb[0].mxu0
    %v3333 = vpop.f32.mrb[0].mxu0
    %3334 = vdwg.mxu0
    %v3336 = vsel %vm404, %v3251, 0
    %3338 = vmatprep.subr.bf16.mxu0 %v373
    %3339 = vmatpush1.bf16.msra.mxu0 %v372
    %3340 = vmatprep.subr.bf16.mxu0 %v377
    %3341 = vmatpush1.bf16.msra.mxu0 %v376
    %3342 = vmatprep.subr.bf16.mxu0 %v381
    %3343 = vmatpush1.bf16.msra.mxu0 %v380
    %3344 = vmatprep.subr.bf16.mxu0 %v385
    %3345 = vmatpush1.bf16.msra.mxu0 %v384
    %3346 = vmatprep.subr.bf16.mxu0 0
    %3347 = vmatpush1.bf16.msra.mxu0 0
    %3348 = vmatprep.subr.bf16.mxu0 0
    %3349 = vmatpush1.bf16.msra.mxu0 0
    %3350 = vmatprep.subr.bf16.mxu0 0
    %3351 = vmatpush1.bf16.msra.mxu0 0
    %3352 = vmatprep.subr.bf16.mxu0 0
    %3353 = vmatpush1.bf16.msra.mxu0 0
    %3354 = vmatprep.subr.bf16.mxu0 0
    %3355 = vmatpush1.bf16.msra.mxu0 0
    %3356 = vmatprep.subr.bf16.mxu0 0
    %3357 = vmatpush1.bf16.msra.mxu0 0
    %3358 = vmatprep.subr.bf16.mxu0 0
    %3359 = vmatpush1.bf16.msra.mxu0 0
    %3360 = vmatprep.subr.bf16.mxu0 0
    %3361 = vmatpush1.bf16.msra.mxu0 0
    %3362 = vmatprep.subr.bf16.mxu0 0
    %3363 = vmatpush1.bf16.msra.mxu0 0
    %3364 = vmatprep.subr.bf16.mxu0 0
    %3365 = vmatpush1.bf16.msra.mxu0 0
    %3366 = vmatprep.subr.bf16.mxu0 0
    %3367 = vmatpush1.bf16.msra.mxu0 0
    %3368 = vmatprep.subr.bf16.mxu0 0
    %3369 = vmatpush1.bf16.msra.mxu0 0
    %3370 = vmatprep.mubr.bf16.mxu0 0
    %3371 = vmatmul.mubr.bf16.gmra.mrb[0].mxu0 %v3336
    %v3372 = vpop.f32.mrb[0].mxu0
    %v3373 = vadd.f32 %v3288, %v3372
    %v3374 = vpop.f32.mrb[0].mxu0
    %v3375 = vadd.f32 %v3290, %v3374
    %v3376 = vpop.f32.mrb[0].mxu0
    %v3377 = vpop.f32.mrb[0].mxu0
    %3378 = vdwg.mxu0
    %3379 = vmatprep.subr.bf16.mxu0 %v375
    %3380 = vmatpush1.bf16.msra.mxu0 %v374
    %3381 = vmatprep.subr.bf16.mxu0 %v379
    %3382 = vmatpush1.bf16.msra.mxu0 %v378
    %3383 = vmatprep.subr.bf16.mxu0 %v383
    %3384 = vmatpush1.bf16.msra.mxu0 %v382
    %3385 = vmatprep.subr.bf16.mxu0 %v387
    %3386 = vmatpush1.bf16.msra.mxu0 %v386
    %3387 = vmatprep.subr.bf16.mxu0 0
    %3388 = vmatpush1.bf16.msra.mxu0 0
    %3389 = vmatprep.subr.bf16.mxu0 0
    %3390 = vmatpush1.bf16.msra.mxu0 0
    %3391 = vmatprep.subr.bf16.mxu0 0
    %3392 = vmatpush1.bf16.msra.mxu0 0
    %3393 = vmatprep.subr.bf16.mxu0 0
    %3394 = vmatpush1.bf16.msra.mxu0 0
    %3395 = vmatprep.subr.bf16.mxu0 0
    %3396 = vmatpush1.bf16.msra.mxu0 0
    %3397 = vmatprep.subr.bf16.mxu0 0
    %3398 = vmatpush1.bf16.msra.mxu0 0
    %3399 = vmatprep.subr.bf16.mxu0 0
    %3400 = vmatpush1.bf16.msra.mxu0 0
    %3401 = vmatprep.subr.bf16.mxu0 0
    %3402 = vmatpush1.bf16.msra.mxu0 0
    %3403 = vmatprep.subr.bf16.mxu0 0
    %3404 = vmatpush1.bf16.msra.mxu0 0
    %3405 = vmatprep.subr.bf16.mxu0 0
    %3406 = vmatpush1.bf16.msra.mxu0 0
    %3407 = vmatprep.subr.bf16.mxu0 0
    %3408 = vmatpush1.bf16.msra.mxu0 0
    %3409 = vmatprep.subr.bf16.mxu0 0
    %3410 = vmatpush1.bf16.msra.mxu0 0
    %3411 = vmatprep.mubr.bf16.mxu0 0
    %3412 = vmatmul.mubr.bf16.gmra.mrb[0].mxu0 %v3336
    %v3413 = vpop.f32.mrb[0].mxu0
    %v3414 = vadd.f32 %v3329, %v3413
    %v3415 = vpop.f32.mrb[0].mxu0
    %v3416 = vadd.f32 %v3331, %v3415
    %v3417 = vpop.f32.mrb[0].mxu0
    %v3418 = vpop.f32.mrb[0].mxu0
    %3419 = vdwg.mxu0
    %v3420 = vadd.f32 %v3373, %v494
    %v3421 = vadd.f32 %v3375, %v498
    %v3422 = vadd.f32 %v3414, %v502
    %v3423 = vadd.f32 %v3416, %v506
    %v3424 = vmul.f32 %v3420, 0.5
    %v3425 = vtanh.pop %v3424
    %v3426 = vmul.f32 %v3425, 0.5
    %v3427 = vadd.f32 %v3426, 0.5
    %v3428 = vmul.f32 %v3421, 0.5
    %v3429 = vtanh.pop %v3428
    %v3430 = vmul.f32 %v3429, 0.5
    %v3431 = vadd.f32 %v3430, 0.5
    %v3432 = vtanh.pop %v3422
    %v3433 = vmul.f32 %v3423, 0.5
    %v3434 = vtanh.pop %v3433
    %v3435 = vmul.f32 %v3434, 0.5
    %v3436 = vadd.f32 %v3435, 0.5
    %v3437 = vmul.f32 %v3431, %v3245
    %v3438 = vmul.f32 %v3427, %v3432
    %v3439 = vadd.f32 %v3437, %v3438
    %v3440 = vtanh.pop %v3439
    %v3441 = vmul.f32 %v3436, %v3440
    %s3442 = scalar_lea.vmem %s4, 120
    %3443 = vst [vmem:[%s3442] sm:$0xff] %v3441
    %3444 = vst [vmem:[#allocation2] sm:$0xff] %v3441
    %3445 = vst [vmem:[#allocation4] sm:$0xff] %v3439
    // Predicated region
    $region22: #{rnn_forward.1} parent=1 // pred_check
      _
    $region23: #{rnn_forward.1} parent=1 // pred_check_branch
      %3447 = sbr.rel (0) target = $region25
    $region24: #{rnn_forward.1} parent=1 // pred_region
      _
    $region25: #{rnn_forward.1} parent=1 // pred_fallthru
      _
    // Predicated region
    $region26: #{rnn_forward.1} parent=1 // pred_check
      _
    $region27: #{rnn_forward.1} parent=1 // pred_check_branch
      %3449 = sbr.rel (0) target = $region29
    $region28: #{rnn_forward.1} parent=1 // pred_region
      %s3451 = ssub.s32 128, 128
      %3452 = vsyncadd [#allocation3], %s3451
      %s3454 = sshll.u32 [#allocation2], 4
      %s3455 = int_to_ptr.vmem [resolvable:$true] %s3454
      %3457 = dma.vmem_to_hbm [thread:$0]  %s3455, 128, %s5, [#allocation3]
    $region29: #{rnn_forward.1} parent=1 // pred_fallthru
      _
    // Predicated region
    $region30: #{rnn_forward.1} parent=1 // pred_check
      _
    $region31: #{rnn_forward.1} parent=1 // pred_check_branch
      %3459 = sbr.rel (0) target = $region33
    $region32: #{rnn_forward.1} parent=1 // pred_region
      %s3461 = ssub.s32 128, 128
      %3462 = vsyncadd [#allocation5], %s3461
      %s3464 = sshll.u32 [#allocation4], 4
      %s3465 = int_to_ptr.vmem [resolvable:$true] %s3464
      %3467 = dma.vmem_to_hbm [thread:$0]  %s3465, 128, %s6, [#allocation5]
    $region33: #{rnn_forward.1} parent=1 // pred_fallthru
      _
    // Predicated region
    $region34: #{rnn_forward.1} parent=1 // pred_check
      _
    $region35: #{rnn_forward.1} parent=1 // pred_check_branch
      %3469 = sbr.rel (0) target = $region37
    $region36: #{rnn_forward.1} parent=1 // pred_region
      _
    $region37: #{rnn_forward.1} parent=1 // pred_fallthru
      _
    // Predicated region
    $region38: #{rnn_forward.1} parent=1 // pred_check
      _
    $region39: #{rnn_forward.1} parent=1 // pred_check_branch
      %3471 = sbr.rel (0) target = $region41
    $region40: #{rnn_forward.1} parent=1 // pred_region
      %3472 = dma.done [#allocation3], 128
    $region41: #{rnn_forward.1} parent=1 // pred_fallthru
      _
    // Predicated region
    $region42: #{rnn_forward.1} parent=1 // pred_check
      _
    $region43: #{rnn_forward.1} parent=1 // pred_check_branch
      %3474 = sbr.rel (0) target = $region45
    $region44: #{rnn_forward.1} parent=1 // pred_region
      %3475 = dma.done [#allocation5], 128
    $region45: #{rnn_forward.1} parent=1 // pred_fallthru
      _
    %3476 = vsyncpa [#allocation3], 1
    %3477 = vsyncpa [#allocation5], 1

</llo_original>
